<compile_context>
chip_gen: v5e
topology: v5e:2x2
jax: 0.10.0
libtpu: 0.0.40
codegen_flags: <defaults>
</compile_context>

<pallas_src>
import jax
import jax.numpy as jnp
from jax.experimental import pallas as pl
from jax.experimental.pallas import tpu as pltpu  # noqa: F401  (TPU backend assumed)


# ------------------------------------------------------------------
# Model dimensions (same synthetic encoder/decoder as v1)
# ------------------------------------------------------------------
C_IN, C_HID, LATENT = 4, 8, 32
H_IN = W_IN = 16
HP = WP = H_IN + 2                 # conv pad = 1 on each side
H_LAT = W_LAT = H_IN // 2          # encoder conv stride 2
FLAT = C_HID * H_LAT * W_LAT       # 8 * 8 * 8 = 512
ENC_K = HP * WP * C_IN             # 18 * 18 * 4 = 1296
OUT_N = H_IN * W_IN * C_IN         # 16 * 16 * 4 = 1024
B_PAD = 8                          # pad batch rows to one full sublane


# ------------------------------------------------------------------
# Fused Pallas kernel: whole VAE forward in one launch
# ------------------------------------------------------------------
def _vae_fused_kernel(x_ref, eps_ref,
                      g_enc_ref, b_enc_ref,
                      w_heads_ref, b_heads_ref,
                      w_dfc_ref, b_dfc_ref,
                      g_dec_ref, b_dec_ref,
                      recon_ref, mulv_ref):
    f32, bf16 = jnp.float32, jnp.bfloat16

    # --- encoder conv (3x3, stride 2, pad 1) + ReLU, folded into one MXU matmul
    h = jnp.dot(x_ref[...].astype(bf16), g_enc_ref[...],
                preferred_element_type=f32)                      # (8, 512)
    h = jnp.maximum(h + b_enc_ref[...], 0.0)

    # --- fused mu | logvar heads: single (512, 64) matmul -----------------
    mulv = jnp.dot(h.astype(bf16), w_heads_ref[...],
                   preferred_element_type=f32) + b_heads_ref[...]   # (8, 64)
    mulv_ref[...] = mulv

    # --- reparameterization (fused epilogue; eps == 0 in eval mode) -------
    mu = mulv[:, :LATENT]
    logvar = mulv[:, LATENT:]
    z = mu + eps_ref[...] * jnp.exp(logvar * 0.5)                   # (8, 32) f32

    # --- decoder fc + ReLU -------------------------------------------------
    d = jnp.dot(z.astype(bf16), w_dfc_ref[...],
                preferred_element_type=f32) + b_dfc_ref[...]        # (8, 512)
    d = jnp.maximum(d, 0.0)

    # --- 2x nearest upsample + pad 1 + conv 3x3, folded into one matmul ----
    rec = jnp.dot(d.astype(bf16), g_dec_ref[...],
                  preferred_element_type=f32)                        # (8, 1024)
    recon_ref[...] = rec + b_dec_ref[...]                            # lane-dense store


def fused_vae_call(x_flat, eps, ops):
    args = (x_flat, eps,
            ops["g_enc"], ops["b_enc"],
            ops["w_heads"], ops["b_heads"],
            ops["w_dfc"], ops["b_dfc"],
            ops["g_dec"], ops["b_dec"])
    in_specs = [pl.BlockSpec(a.shape, lambda i: (0, 0)) for a in args]
    out_shape = (jax.ShapeDtypeStruct((B_PAD, OUT_N), jnp.float32),
                 jax.ShapeDtypeStruct((B_PAD, 2 * LATENT), jnp.float32))
    out_specs = (pl.BlockSpec((B_PAD, OUT_N), lambda i: (0, 0)),
                 pl.BlockSpec((B_PAD, 2 * LATENT), lambda i: (0, 0)))
    return pl.pallas_call(
        _vae_fused_kernel,
        grid=(1,),
        in_specs=in_specs,
        out_specs=out_specs,
        out_shape=out_shape,
    )(*args)


# ------------------------------------------------------------------
# Parameters (natural conv / fc layout) and one-time operand packing
# ------------------------------------------------------------------
def init_params(key):
    ks = jax.random.split(key, 10)
    s = 0.05
    return {
        # encoder: Conv2d(C_IN -> C_HID, 3x3, stride 2, pad 1) + ReLU   (HWIO)
        "enc_conv_w": s * jax.random.normal(ks[0], (3, 3, C_IN, C_HID), jnp.float32),
        "enc_conv_b": s * jax.random.normal(ks[1], (C_HID,), jnp.float32),
        # encoder heads: Linear(FLAT -> LATENT) for mean and log-variance
        "fc_mu_w": s * jax.random.normal(ks[2], (FLAT, LATENT), jnp.float32),
        "fc_mu_b": s * jax.random.normal(ks[3], (LATENT,), jnp.float32),
        "fc_lv_w": s * jax.random.normal(ks[4], (FLAT, LATENT), jnp.float32),
        "fc_lv_b": s * jax.random.normal(ks[5], (LATENT,), jnp.float32),
        # decoder: Linear(LATENT -> FLAT) + ReLU
        "dec_fc_w": s * jax.random.normal(ks[6], (LATENT, FLAT), jnp.float32),
        "dec_fc_b": s * jax.random.normal(ks[7], (FLAT,), jnp.float32),
        # decoder output conv: Conv2d(C_HID -> C_IN, 3x3, stride 1, pad 1)  (HWIO)
        "dec_conv_w": s * jax.random.normal(ks[8], (3, 3, C_HID, C_IN), jnp.float32),
        "dec_conv_b": s * jax.random.normal(ks[9], (C_IN,), jnp.float32),
    }


def pack_operands(params):
    """One-time, host/XLA-side folding of encoder/decoder into kernel operands.

    The conv (and upsample+pad+conv) blocks are linear maps on the flattened
    NHWC activations, so they are materialized once as dense matrices by
    pushing basis vectors through the reference ops.  Big matrices are cast to
    bf16 (halves HBM->VMEM traffic; accumulation stays f32 in-kernel).
    """
    dn = ("NHWC", "HWIO", "NHWC")

    # encoder conv (stride 2, VALID on pre-padded 18x18) as a (1296, 512) map
    eye_e = jnp.eye(ENC_K, dtype=jnp.float32).reshape(ENC_K, HP, WP, C_IN)
    g_enc = jax.lax.conv_general_dilated(
        eye_e, params["enc_conv_w"], window_strides=(2, 2), padding="VALID",
        dimension_numbers=dn).reshape(ENC_K, FLAT)

    # decoder: 2x nearest upsample + pad 1 + conv (stride 1) as a (512, 1024) map
    eye_d = jnp.eye(FLAT, dtype=jnp.float32).reshape(FLAT, H_LAT, W_LAT, C_HID)
    up = jnp.repeat(jnp.repeat(eye_d, 2, axis=1), 2, axis=2)
    up = jnp.pad(up, ((0, 0), (1, 1), (1, 1), (0, 0)))
    g_dec = jax.lax.conv_general_dilated(
        up, params["dec_conv_w"], window_strides=(1, 1), padding="VALID",
        dimension_numbers=dn).reshape(FLAT, OUT_N)

    return {
        "g_enc": g_enc.astype(jnp.bfloat16),
        "b_enc": jnp.tile(params["enc_conv_b"], H_LAT * W_LAT).reshape(1, FLAT),
        "w_heads": jnp.concatenate(
            [params["fc_mu_w"], params["fc_lv_w"]], axis=1).astype(jnp.bfloat16),
        "b_heads": jnp.concatenate(
            [params["fc_mu_b"], params["fc_lv_b"]]).reshape(1, 2 * LATENT),
        "w_dfc": params["dec_fc_w"].astype(jnp.bfloat16),
        "b_dfc": params["dec_fc_b"].reshape(1, FLAT),
        "g_dec": g_dec.astype(jnp.bfloat16),
        "b_dec": jnp.tile(params["dec_conv_b"], H_IN * W_IN).reshape(1, OUT_N),
    }


# ------------------------------------------------------------------
# Forward pass (matches VariationalAutoEncoder.forward semantics)
# ------------------------------------------------------------------
@jax.jit
def _vae_apply(ops, x_nchw, eps):
    B = x_nchw.shape[0]
    assert B <= B_PAD
    # boundary layout glue on the tiny input tensor
    x_nhwc = jnp.transpose(x_nchw, (0, 2, 3, 1))
    x_pad = jnp.pad(x_nhwc, ((0, 0), (1, 1), (1, 1), (0, 0)))       # conv pad = 1
    x_flat = jnp.pad(x_pad.reshape(B, ENC_K), ((0, B_PAD - B), (0, 0)))  # M: 2 -> 8
    eps_p = jnp.pad(eps, ((0, B_PAD - B), (0, 0)))

    recon_flat, mulv = fused_vae_call(x_flat, eps_p, ops)

    x_mean = mulv[:B, :LATENT]
    x_logvar = mulv[:B, LATENT:]
    x_rec = recon_flat[:B].reshape(B, H_IN, W_IN, C_IN).transpose(0, 3, 1, 2)
    return x_rec, x_mean, x_logvar


def vae_forward(ops, x_nchw, *, training=False, rng=None):
    """Returns (x_recon, x_mean, x_variance) like the PyTorch module.
    (x_variance is the log-variance, consistent with the reference model.)"""
    B = x_nchw.shape[0]
    if training:
        eps = jax.random.normal(rng, (B, LATENT), jnp.float32)
    else:
        eps = jnp.zeros((B, LATENT), jnp.float32)   # z = mean exactly
    return _vae_apply(ops, x_nchw, eps)


# ------------------------------------------------------------------
# Pure-JAX f32 reference of the same architecture (correctness check)
# ------------------------------------------------------------------
def reference_forward(params, x_nchw, eps):
    dn = ("NHWC", "HWIO", "NHWC")
    x = jnp.transpose(x_nchw, (0, 2, 3, 1))
    h = jax.lax.conv_general_dilated(x, params["enc_conv_w"], (2, 2),
                                     ((1, 1), (1, 1)), dimension_numbers=dn)
    h = jnp.maximum(h + params["enc_conv_b"], 0.0)
    flat = h.reshape(x.shape[0], -1)
    mu = flat @ params["fc_mu_w"] + params["fc_mu_b"]
    lv = flat @ params["fc_lv_w"] + params["fc_lv_b"]
    z = mu + eps * jnp.exp(0.5 * lv)
    d = jnp.maximum(z @ params["dec_fc_w"] + params["dec_fc_b"], 0.0)
    d = d.reshape(x.shape[0], H_LAT, W_LAT, C_HID)
    d = jnp.repeat(jnp.repeat(d, 2, axis=1), 2, axis=2)
    r = jax.lax.conv_general_dilated(d, params["dec_conv_w"], (1, 1),
                                     ((1, 1), (1, 1)), dimension_numbers=dn)
    r = r + params["dec_conv_b"]
    return jnp.transpose(r, (0, 3, 1, 2)), mu, lv


# ------------------------------------------------------------------
# main
# ------------------------------------------------------------------
if __name__ == "__main__":
    key = jax.random.PRNGKey(0)
    k_param, k_x, k_eps = jax.random.split(key, 3)

    params = init_params(k_param)
    ops = pack_operands(params)                                   # one-time packing
    x = jax.random.normal(k_x, (2, C_IN, H_IN, W_IN), jnp.float32)  # NCHW like PyTorch

    # eval path (z = mean)
    x_rec, x_mean, x_var = vae_forward(ops, x, training=False)
    jax.block_until_ready((x_rec, x_mean, x_var))

    # training path (fused reparameterization)
    x_rec_t, x_mean_t, x_var_t = vae_forward(ops, x, training=True, rng=k_eps)
    jax.block_until_ready((x_rec_t, x_mean_t, x_var_t))

    # shape / sanity checks
    assert x_rec.shape == (2, C_IN, H_IN, W_IN)
    assert x_mean.shape == (2, LATENT) and x_var.shape == (2, LATENT)
    assert bool(jnp.all(jnp.isfinite(x_rec))) and bool(jnp.all(jnp.isfinite(x_rec_t)))

    # numerical check against the pure-JAX f32 reference (eval mode);
    # loose tolerance accounts for bf16 MXU operands in the fused kernel.
    ref_rec, ref_mu, ref_lv = reference_forward(
        params, x, jnp.zeros((2, LATENT), jnp.float32))
    assert float(jnp.max(jnp.abs(x_rec - ref_rec))) < 5e-2
    assert float(jnp.max(jnp.abs(x_mean - ref_mu))) < 5e-2
    assert float(jnp.max(jnp.abs(x_var - ref_lv))) < 5e-2

    print("KERNEL_OK")
</pallas_src>

<mosaic_0001>
module attributes {stable_mosaic.version = 11 : i64} {
  func.func @_vae_fused_kernel(%arg0: i32, %arg1: memref<8x1296xf32, #tpu.memory_space<vmem>>, %arg2: memref<8x32xf32, #tpu.memory_space<vmem>>, %arg3: memref<1296x512xbf16, #tpu.memory_space<vmem>>, %arg4: memref<1x512xf32, #tpu.memory_space<vmem>>, %arg5: memref<512x64xbf16, #tpu.memory_space<vmem>>, %arg6: memref<1x64xf32, #tpu.memory_space<vmem>>, %arg7: memref<32x512xbf16, #tpu.memory_space<vmem>>, %arg8: memref<1x512xf32, #tpu.memory_space<vmem>>, %arg9: memref<512x1024xbf16, #tpu.memory_space<vmem>>, %arg10: memref<1x1024xf32, #tpu.memory_space<vmem>>, %arg11: memref<8x1024xf32, #tpu.memory_space<vmem>>, %arg12: memref<8x64xf32, #tpu.memory_space<vmem>>) attributes {dimension_semantics = [#tpu.dimension_semantics<arbitrary>], iteration_bounds = array<i64: 1>, scalar_prefetch = 0 : i64, scratch_operands = 0 : i64, tpu.core_type = #tpu.core_type<tc>, window_params = [{pipeline_mode = #tpu.pipeline_mode<synchronous>, transform_indices = @transform_0, window_bounds = array<i64: 8, 1296>}, {pipeline_mode = #tpu.pipeline_mode<synchronous>, transform_indices = @transform_1, window_bounds = array<i64: 8, 32>}, {pipeline_mode = #tpu.pipeline_mode<synchronous>, transform_indices = @transform_2, window_bounds = array<i64: 1296, 512>}, {pipeline_mode = #tpu.pipeline_mode<synchronous>, transform_indices = @transform_3, window_bounds = array<i64: 1, 512>}, {pipeline_mode = #tpu.pipeline_mode<synchronous>, transform_indices = @transform_4, window_bounds = array<i64: 512, 64>}, {pipeline_mode = #tpu.pipeline_mode<synchronous>, transform_indices = @transform_5, window_bounds = array<i64: 1, 64>}, {pipeline_mode = #tpu.pipeline_mode<synchronous>, transform_indices = @transform_6, window_bounds = array<i64: 32, 512>}, {pipeline_mode = #tpu.pipeline_mode<synchronous>, transform_indices = @transform_7, window_bounds = array<i64: 1, 512>}, {pipeline_mode = #tpu.pipeline_mode<synchronous>, transform_indices = @transform_8, window_bounds = array<i64: 512, 1024>}, {pipeline_mode = #tpu.pipeline_mode<synchronous>, transform_indices = @transform_9, window_bounds = array<i64: 1, 1024>}, {pipeline_mode = #tpu.pipeline_mode<synchronous>, transform_indices = @transform_10, window_bounds = array<i64: 8, 1024>}, {pipeline_mode = #tpu.pipeline_mode<synchronous>, transform_indices = @transform_11, window_bounds = array<i64: 8, 64>}]} {
    %c0 = arith.constant 0 : index
    %c0_0 = arith.constant 0 : index
    %0 = vector.load %arg1[%c0, %c0_0] : memref<8x1296xf32, #tpu.memory_space<vmem>>, vector<8x1296xf32>
    %1 = arith.truncf %0 : vector<8x1296xf32> to vector<8x1296xbf16>
    %c0_1 = arith.constant 0 : index
    %c0_2 = arith.constant 0 : index
    %2 = vector.load %arg3[%c0_1, %c0_2] : memref<1296x512xbf16, #tpu.memory_space<vmem>>, vector<1296x512xbf16>
    %cst = arith.constant dense<0.000000e+00> : vector<8x512xf32>
    %3 = tpu.matmul %1, %2, %cst {dimension_numbers = #tpu.dot_dimension_numbers<[1], [0], [0], [1], [0, 0, 1, 1], [], []>} : vector<8x1296xbf16>, vector<1296x512xbf16>, vector<8x512xf32> -> vector<8x512xf32>
    %c0_3 = arith.constant 0 : index
    %c0_4 = arith.constant 0 : index
    %4 = vector.load %arg4[%c0_3, %c0_4] : memref<1x512xf32, #tpu.memory_space<vmem>>, vector<1x512xf32>
    %5 = vector.broadcast %4 : vector<1x512xf32> to vector<8x512xf32>
    %6 = arith.addf %3, %5 : vector<8x512xf32>
    %cst_5 = arith.constant 0.000000e+00 : f32
    %7 = vector.broadcast %cst_5 : f32 to vector<8x512xf32>
    %8 = arith.maximumf %6, %7 : vector<8x512xf32>
    %9 = arith.truncf %8 : vector<8x512xf32> to vector<8x512xbf16>
    %c0_6 = arith.constant 0 : index
    %c0_7 = arith.constant 0 : index
    %10 = vector.load %arg5[%c0_6, %c0_7] : memref<512x64xbf16, #tpu.memory_space<vmem>>, vector<512x64xbf16>
    %cst_8 = arith.constant dense<0.000000e+00> : vector<8x64xf32>
    %11 = tpu.matmul %9, %10, %cst_8 {dimension_numbers = #tpu.dot_dimension_numbers<[1], [0], [0], [1], [0, 0, 1, 1], [], []>} : vector<8x512xbf16>, vector<512x64xbf16>, vector<8x64xf32> -> vector<8x64xf32>
    %c0_9 = arith.constant 0 : index
    %c0_10 = arith.constant 0 : index
    %12 = vector.load %arg6[%c0_9, %c0_10] : memref<1x64xf32, #tpu.memory_space<vmem>>, vector<1x64xf32>
    %13 = vector.broadcast %12 : vector<1x64xf32> to vector<8x64xf32>
    %14 = arith.addf %11, %13 : vector<8x64xf32>
    %c0_11 = arith.constant 0 : index
    %c0_12 = arith.constant 0 : index
    %15 = vector.load %arg12[%c0_11, %c0_12] : memref<8x64xf32, #tpu.memory_space<vmem>>, vector<8x64xf32>
    tpu.vector_store %arg12[%c0_11, %c0_12], %14 {strides = array<i32>} : memref<8x64xf32, #tpu.memory_space<vmem>>, vector<8x64xf32>,
    %16 = vector.extract_strided_slice %14 {offsets = [0, 0], sizes = [8, 32], strides = [1, 1]} : vector<8x64xf32> to vector<8x32xf32>
    %17 = vector.extract_strided_slice %14 {offsets = [0, 32], sizes = [8, 32], strides = [1, 1]} : vector<8x64xf32> to vector<8x32xf32>
    %c0_13 = arith.constant 0 : index
    %c0_14 = arith.constant 0 : index
    %18 = vector.load %arg2[%c0_13, %c0_14] : memref<8x32xf32, #tpu.memory_space<vmem>>, vector<8x32xf32>
    %cst_15 = arith.constant 5.000000e-01 : f32
    %19 = vector.broadcast %cst_15 : f32 to vector<8x32xf32>
    %20 = arith.mulf %17, %19 : vector<8x32xf32>
    %21 = math.exp %20 : vector<8x32xf32>
    %22 = arith.mulf %18, %21 : vector<8x32xf32>
    %23 = arith.addf %16, %22 : vector<8x32xf32>
    %24 = arith.truncf %23 : vector<8x32xf32> to vector<8x32xbf16>
    %c0_16 = arith.constant 0 : index
    %c0_17 = arith.constant 0 : index
    %25 = vector.load %arg7[%c0_16, %c0_17] : memref<32x512xbf16, #tpu.memory_space<vmem>>, vector<32x512xbf16>
    %cst_18 = arith.constant dense<0.000000e+00> : vector<8x512xf32>
    %26 = tpu.matmul %24, %25, %cst_18 {dimension_numbers = #tpu.dot_dimension_numbers<[1], [0], [0], [1], [0, 0, 1, 1], [], []>} : vector<8x32xbf16>, vector<32x512xbf16>, vector<8x512xf32> -> vector<8x512xf32>
    %c0_19 = arith.constant 0 : index
    %c0_20 = arith.constant 0 : index
    %27 = vector.load %arg8[%c0_19, %c0_20] : memref<1x512xf32, #tpu.memory_space<vmem>>, vector<1x512xf32>
    %28 = vector.broadcast %27 : vector<1x512xf32> to vector<8x512xf32>
    %29 = arith.addf %26, %28 : vector<8x512xf32>
    %cst_21 = arith.constant 0.000000e+00 : f32
    %30 = vector.broadcast %cst_21 : f32 to vector<8x512xf32>
    %31 = arith.maximumf %29, %30 : vector<8x512xf32>
    %32 = arith.truncf %31 : vector<8x512xf32> to vector<8x512xbf16>
    %c0_22 = arith.constant 0 : index
    %c0_23 = arith.constant 0 : index
    %33 = vector.load %arg9[%c0_22, %c0_23] : memref<512x1024xbf16, #tpu.memory_space<vmem>>, vector<512x1024xbf16>
    %cst_24 = arith.constant dense<0.000000e+00> : vector<8x1024xf32>
    %34 = tpu.matmul %32, %33, %cst_24 {dimension_numbers = #tpu.dot_dimension_numbers<[1], [0], [0], [1], [0, 0, 1, 1], [], []>} : vector<8x512xbf16>, vector<512x1024xbf16>, vector<8x1024xf32> -> vector<8x1024xf32>
    %c0_25 = arith.constant 0 : index
    %c0_26 = arith.constant 0 : index
    %35 = vector.load %arg10[%c0_25, %c0_26] : memref<1x1024xf32, #tpu.memory_space<vmem>>, vector<1x1024xf32>
    %36 = vector.broadcast %35 : vector<1x1024xf32> to vector<8x1024xf32>
    %37 = arith.addf %34, %36 : vector<8x1024xf32>
    %c0_27 = arith.constant 0 : index
    %c0_28 = arith.constant 0 : index
    %38 = vector.load %arg11[%c0_27, %c0_28] : memref<8x1024xf32, #tpu.memory_space<vmem>>, vector<8x1024xf32>
    tpu.vector_store %arg11[%c0_27, %c0_28], %37 {strides = array<i32>} : memref<8x1024xf32, #tpu.memory_space<vmem>>, vector<8x1024xf32>,
    return
  }
  func.func @transform_0(%arg0: i32) -> (i32, i32) {
    %c0_i32 = arith.constant 0 : i32
    %c0_i32_0 = arith.constant 0 : i32
    %c0_i32_1 = arith.constant 0 : i32
    return %c0_i32, %c0_i32_0 : i32, i32
  }
  func.func @transform_1(%arg0: i32) -> (i32, i32) {
    %c0_i32 = arith.constant 0 : i32
    %c0_i32_0 = arith.constant 0 : i32
    %c0_i32_1 = arith.constant 0 : i32
    return %c0_i32, %c0_i32_0 : i32, i32
  }
  func.func @transform_2(%arg0: i32) -> (i32, i32) {
    %c0_i32 = arith.constant 0 : i32
    %c0_i32_0 = arith.constant 0 : i32
    %c0_i32_1 = arith.constant 0 : i32
    return %c0_i32, %c0_i32_0 : i32, i32
  }
  func.func @transform_3(%arg0: i32) -> (i32, i32) {
    %c0_i32 = arith.constant 0 : i32
    %c0_i32_0 = arith.constant 0 : i32
    %c0_i32_1 = arith.constant 0 : i32
    return %c0_i32, %c0_i32_0 : i32, i32
  }
  func.func @transform_4(%arg0: i32) -> (i32, i32) {
    %c0_i32 = arith.constant 0 : i32
    %c0_i32_0 = arith.constant 0 : i32
    %c0_i32_1 = arith.constant 0 : i32
    return %c0_i32, %c0_i32_0 : i32, i32
  }
  func.func @transform_5(%arg0: i32) -> (i32, i32) {
    %c0_i32 = arith.constant 0 : i32
    %c0_i32_0 = arith.constant 0 : i32
    %c0_i32_1 = arith.constant 0 : i32
    return %c0_i32, %c0_i32_0 : i32, i32
  }
  func.func @transform_6(%arg0: i32) -> (i32, i32) {
    %c0_i32 = arith.constant 0 : i32
    %c0_i32_0 = arith.constant 0 : i32
    %c0_i32_1 = arith.constant 0 : i32
    return %c0_i32, %c0_i32_0 : i32, i32
  }
  func.func @transform_7(%arg0: i32) -> (i32, i32) {
    %c0_i32 = arith.constant 0 : i32
    %c0_i32_0 = arith.constant 0 : i32
    %c0_i32_1 = arith.constant 0 : i32
    return %c0_i32, %c0_i32_0 : i32, i32
  }
  func.func @transform_8(%arg0: i32) -> (i32, i32) {
    %c0_i32 = arith.constant 0 : i32
    %c0_i32_0 = arith.constant 0 : i32
    %c0_i32_1 = arith.constant 0 : i32
    return %c0_i32, %c0_i32_0 : i32, i32
  }
  func.func @transform_9(%arg0: i32) -> (i32, i32) {
    %c0_i32 = arith.constant 0 : i32
    %c0_i32_0 = arith.constant 0 : i32
    %c0_i32_1 = arith.constant 0 : i32
    return %c0_i32, %c0_i32_0 : i32, i32
  }
  func.func @transform_10(%arg0: i32) -> (i32, i32) {
    %c0_i32 = arith.constant 0 : i32
    %c0_i32_0 = arith.constant 0 : i32
    %c0_i32_1 = arith.constant 0 : i32
    return %c0_i32, %c0_i32_0 : i32, i32
  }
  func.func @transform_11(%arg0: i32) -> (i32, i32) {
    %c0_i32 = arith.constant 0 : i32
    %c0_i32_0 = arith.constant 0 : i32
    %c0_i32_1 = arith.constant 0 : i32
    return %c0_i32, %c0_i32_0 : i32, i32
  }
}

</mosaic_0001>

<llo_original>
// kernel: _vae_apply.1
$region0: #{_vae_apply.1}
  #allocation0 [shape = 'u32[]', space=smem, size = 0x4, offset = 0x4, fixed_abs, tag = 'smem constant byte address 0x4 - core index']
  #allocation1 [shape = 'u32[72,128]{1,0:T(1,128)}', space=vmem, size = 0x9000, scoped, tag = 'internal scratch']
  %s0 = inlined_call_operand.vmem [shape: f32[8,1296], index: 0, kind: input, shape index: {}]
  %s1 = inlined_call_operand.vmem [shape: f32[8,32], index: 1, kind: input, shape index: {}]
  %s2 = inlined_call_operand.vmem [shape: bf16[1296,512], index: 2, kind: input, shape index: {}]
  %s3 = inlined_call_operand.vmem [shape: f32[1,512], index: 3, kind: input, shape index: {}]
  %s4 = inlined_call_operand.vmem [shape: bf16[512,64], index: 4, kind: input, shape index: {}]
  %s5 = inlined_call_operand.vmem [shape: f32[1,64], index: 5, kind: input, shape index: {}]
  %s6 = inlined_call_operand.vmem [shape: bf16[32,512], index: 6, kind: input, shape index: {}]
  %s7 = inlined_call_operand.vmem [shape: f32[1,512], index: 7, kind: input, shape index: {}]
  %s8 = inlined_call_operand.hbm [shape: bf16[512,1024], index: 8, kind: input, shape index: {}]
  %s9 = inlined_call_operand.vmem [shape: f32[1,1024], index: 9, kind: input, shape index: {}]
  %s10 = inlined_call_operand.vmem [shape: f32[8,1024], index: 10, kind: output, shape index: {0}]
  %s11 = inlined_call_operand.vmem [shape: f32[8,64], index: 11, kind: output, shape index: {1}]
  %12 = xla_tuple %s10, %s11
  %s13 = sld [smem:[#allocation0]]
  $region62: #{_vae_apply.1} parent=0
    _
  %s15 = ssub.s32 1, %s13
  %s16 = scalar_select 0, %s15, %s13
  $region1: #{_vae_apply.1} parent=0
    #allocation2 [shape = 'u8[1048576]{0}', space=vmem, size = 0x100000, scoped, tag = 'input window, operand 8, single buffered']
    #allocation3 [shape = 's32[1]{0}', space=sflag, size = 0x4, scoped, tag = 'scoped memory for _vae_apply.1']
    %17 = vsyncpa [#allocation3], 0
    // Predicated region
    $region2: #{_vae_apply.1} parent=1 // pred_check
      _
    $region3: #{_vae_apply.1} parent=1 // pred_check_branch
      %19 = sbr.rel (0) target = $region5
    $region4: #{_vae_apply.1} parent=1 // pred_region
      _
    $region5: #{_vae_apply.1} parent=1 // pred_fallthru
      _
    // Predicated region
    $region6: #{_vae_apply.1} parent=1 // pred_check
      _
    $region7: #{_vae_apply.1} parent=1 // pred_check_branch
      %21 = sbr.rel (0) target = $region9
    $region8: #{_vae_apply.1} parent=1 // pred_region
      _
    $region9: #{_vae_apply.1} parent=1 // pred_fallthru
      _
    // Predicated region
    $region10: #{_vae_apply.1} parent=1 // pred_check
      _
    $region11: #{_vae_apply.1} parent=1 // pred_check_branch
      %23 = sbr.rel (0) target = $region13
    $region12: #{_vae_apply.1} parent=1 // pred_region
      _
    $region13: #{_vae_apply.1} parent=1 // pred_fallthru
      _
    // Predicated region
    $region14: #{_vae_apply.1} parent=1 // pred_check
      _
    $region15: #{_vae_apply.1} parent=1 // pred_check_branch
      %25 = sbr.rel (0) target = $region17
    $region16: #{_vae_apply.1} parent=1 // pred_region
      _
    $region17: #{_vae_apply.1} parent=1 // pred_fallthru
      _
    // Predicated region
    $region18: #{_vae_apply.1} parent=1 // pred_check
      _
    $region19: #{_vae_apply.1} parent=1 // pred_check_branch
      %27 = sbr.rel (0) target = $region21
    $region20: #{_vae_apply.1} parent=1 // pred_region
      _
    $region21: #{_vae_apply.1} parent=1 // pred_fallthru
      _
    // Predicated region
    $region22: #{_vae_apply.1} parent=1 // pred_check
      _
    $region23: #{_vae_apply.1} parent=1 // pred_check_branch
      %29 = sbr.rel (0) target = $region25
    $region24: #{_vae_apply.1} parent=1 // pred_region
      _
    $region25: #{_vae_apply.1} parent=1 // pred_fallthru
      _
    // Predicated region
    $region26: #{_vae_apply.1} parent=1 // pred_check
      _
    $region27: #{_vae_apply.1} parent=1 // pred_check_branch
      %31 = sbr.rel (0) target = $region29
    $region28: #{_vae_apply.1} parent=1 // pred_region
      _
    $region29: #{_vae_apply.1} parent=1 // pred_fallthru
      _
    // Predicated region
    $region30: #{_vae_apply.1} parent=1 // pred_check
      _
    $region31: #{_vae_apply.1} parent=1 // pred_check_branch
      %33 = sbr.rel (0) target = $region33
    $region32: #{_vae_apply.1} parent=1 // pred_region
      _
    $region33: #{_vae_apply.1} parent=1 // pred_fallthru
      _
    // Predicated region
    $region34: #{_vae_apply.1} parent=1 // pred_check
      _
    $region35: #{_vae_apply.1} parent=1 // pred_check_branch
      %35 = sbr.rel (0) target = $region37
    $region36: #{_vae_apply.1} parent=1 // pred_region
      %37 = vsyncadd [#allocation3], 0
      %s38 = sshll.u32 %s8, 4
      %s39 = int_to_ptr.hbm [resolvable:$true] %s38
      %s40 = sshll.u32 [#allocation2], 4
      %s41 = int_to_ptr.vmem [resolvable:$true] %s40
      %46 = dma.hbm_to_vmem [thread:$0]  %s39, 32768, %s41, [#allocation3], 512, 512, 32
    $region37: #{_vae_apply.1} parent=1 // pred_fallthru
      _
    // Predicated region
    $region38: #{_vae_apply.1} parent=1 // pred_check
      _
    $region39: #{_vae_apply.1} parent=1 // pred_check_branch
      %48 = sbr.rel (0) target = $region41
    $region40: #{_vae_apply.1} parent=1 // pred_region
      _
    $region41: #{_vae_apply.1} parent=1 // pred_fallthru
      _
    // Predicated region
    $region42: #{_vae_apply.1} parent=1 // pred_check
      _
    $region43: #{_vae_apply.1} parent=1 // pred_check_branch
      %50 = sbr.rel (0) target = $region45
    $region44: #{_vae_apply.1} parent=1 // pred_region
      %52 = dma.done [#allocation3], 32768
    $region45: #{_vae_apply.1} parent=1 // pred_fallthru
      _
    %v54 = vld [vmem:[%s0] sm:$0xff]
    %v55 = vld [vmem:[%s0 + $0x8] sm:$0xff]
    %v56 = vld [vmem:[%s0 + $0x10] sm:$0xff]
    %v57 = vld [vmem:[%s0 + $0x18] sm:$0xff]
    %v58 = vld [vmem:[%s0 + $0x20] sm:$0xff]
    %v59 = vld [vmem:[%s0 + $0x28] sm:$0xff]
    %v60 = vld [vmem:[%s0 + $0x30] sm:$0xff]
    %v61 = vld [vmem:[%s0 + $0x38] sm:$0xff]
    %v62 = vld [vmem:[%s0 + $0x40] sm:$0xff]
    %v63 = vld [vmem:[%s0 + $0x48] sm:$0xff]
    %v64 = vld [vmem:[%s0 + $0x50] sm:$0xff]
    %v65 = vpack.c.bf16 %v54, %v54
    %v66 = vpack.c.bf16 %v55, %v55
    %v67 = vpack.c.bf16 %v56, %v56
    %v68 = vpack.c.bf16 %v57, %v57
    %v69 = vpack.c.bf16 %v58, %v58
    %v70 = vpack.c.bf16 %v59, %v59
    %v71 = vpack.c.bf16 %v60, %v60
    %v72 = vpack.c.bf16 %v61, %v61
    %v73 = vpack.c.bf16 %v62, %v62
    %v74 = vpack.c.bf16 %v63, %v63
    %v75 = vpack.c.bf16 %v64, %v64
    %v76 = vld [vmem:[%s2] sm:$0xff]
    %v77 = vld [vmem:[%s2 + $0x8] sm:$0xff]
    %v78 = vld [vmem:[%s2 + $0x10] sm:$0xff]
    %v79 = vld [vmem:[%s2 + $0x18] sm:$0xff]
    %v80 = vld [vmem:[%s2 + $0x20] sm:$0xff]
    %v81 = vld [vmem:[%s2 + $0x28] sm:$0xff]
    %v82 = vld [vmem:[%s2 + $0x30] sm:$0xff]
    %v83 = vld [vmem:[%s2 + $0x38] sm:$0xff]
    %v84 = vld [vmem:[%s2 + $0x40] sm:$0xff]
    %v85 = vld [vmem:[%s2 + $0x48] sm:$0xff]
    %v86 = vld [vmem:[%s2 + $0x50] sm:$0xff]
    %v87 = vld [vmem:[%s2 + $0x58] sm:$0xff]
    %v88 = vld [vmem:[%s2 + $0x60] sm:$0xff]
    %v89 = vld [vmem:[%s2 + $0x68] sm:$0xff]
    %v90 = vld [vmem:[%s2 + $0x70] sm:$0xff]
    %v91 = vld [vmem:[%s2 + $0x78] sm:$0xff]
    %v92 = vld [vmem:[%s2 + $0x80] sm:$0xff]
    %v93 = vld [vmem:[%s2 + $0x88] sm:$0xff]
    %v94 = vld [vmem:[%s2 + $0x90] sm:$0xff]
    %v95 = vld [vmem:[%s2 + $0x98] sm:$0xff]
    %v96 = vld [vmem:[%s2 + $0xa0] sm:$0xff]
    %v97 = vld [vmem:[%s2 + $0xa8] sm:$0xff]
    %v98 = vld [vmem:[%s2 + $0xb0] sm:$0xff]
    %v99 = vld [vmem:[%s2 + $0xb8] sm:$0xff]
    %v100 = vld [vmem:[%s2 + $0xc0] sm:$0xff]
    %v101 = vld [vmem:[%s2 + $0xc8] sm:$0xff]
    %v102 = vld [vmem:[%s2 + $0xd0] sm:$0xff]
    %v103 = vld [vmem:[%s2 + $0xd8] sm:$0xff]
    %v104 = vld [vmem:[%s2 + $0xe0] sm:$0xff]
    %v105 = vld [vmem:[%s2 + $0xe8] sm:$0xff]
    %v106 = vld [vmem:[%s2 + $0xf0] sm:$0xff]
    %v107 = vld [vmem:[%s2 + $0xf8] sm:$0xff]
    %v108 = vld [vmem:[%s2 + $0x100] sm:$0xff]
    %v109 = vld [vmem:[%s2 + $0x108] sm:$0xff]
    %v110 = vld [vmem:[%s2 + $0x110] sm:$0xff]
    %v111 = vld [vmem:[%s2 + $0x118] sm:$0xff]
    %v112 = vld [vmem:[%s2 + $0x120] sm:$0xff]
    %v113 = vld [vmem:[%s2 + $0x128] sm:$0xff]
    %v114 = vld [vmem:[%s2 + $0x130] sm:$0xff]
    %v115 = vld [vmem:[%s2 + $0x138] sm:$0xff]
    %v116 = vld [vmem:[%s2 + $0x140] sm:$0xff]
    %v117 = vld [vmem:[%s2 + $0x148] sm:$0xff]
    %v118 = vld [vmem:[%s2 + $0x150] sm:$0xff]
    %v119 = vld [vmem:[%s2 + $0x158] sm:$0xff]
    %v120 = vld [vmem:[%s2 + $0x160] sm:$0xff]
    %v121 = vld [vmem:[%s2 + $0x168] sm:$0xff]
    %v122 = vld [vmem:[%s2 + $0x170] sm:$0xff]
    %v123 = vld [vmem:[%s2 + $0x178] sm:$0xff]
    %v124 = vld [vmem:[%s2 + $0x180] sm:$0xff]
    %v125 = vld [vmem:[%s2 + $0x188] sm:$0xff]
    %v126 = vld [vmem:[%s2 + $0x190] sm:$0xff]
    %v127 = vld [vmem:[%s2 + $0x198] sm:$0xff]
    %v128 = vld [vmem:[%s2 + $0x1a0] sm:$0xff]
    %v129 = vld [vmem:[%s2 + $0x1a8] sm:$0xff]
    %v130 = vld [vmem:[%s2 + $0x1b0] sm:$0xff]
    %v131 = vld [vmem:[%s2 + $0x1b8] sm:$0xff]
    %v132 = vld [vmem:[%s2 + $0x1c0] sm:$0xff]
    %v133 = vld [vmem:[%s2 + $0x1c8] sm:$0xff]
    %v134 = vld [vmem:[%s2 + $0x1d0] sm:$0xff]
    %v135 = vld [vmem:[%s2 + $0x1d8] sm:$0xff]
    %v136 = vld [vmem:[%s2 + $0x1e0] sm:$0xff]
    %v137 = vld [vmem:[%s2 + $0x1e8] sm:$0xff]
    %v138 = vld [vmem:[%s2 + $0x1f0] sm:$0xff]
    %v139 = vld [vmem:[%s2 + $0x1f8] sm:$0xff]
    %v140 = vld [vmem:[%s2 + $0x200] sm:$0xff]
    %v141 = vld [vmem:[%s2 + $0x208] sm:$0xff]
    %v142 = vld [vmem:[%s2 + $0x210] sm:$0xff]
    %v143 = vld [vmem:[%s2 + $0x218] sm:$0xff]
    %v144 = vld [vmem:[%s2 + $0x220] sm:$0xff]
    %v145 = vld [vmem:[%s2 + $0x228] sm:$0xff]
    %v146 = vld [vmem:[%s2 + $0x230] sm:$0xff]
    %v147 = vld [vmem:[%s2 + $0x238] sm:$0xff]
    %v148 = vld [vmem:[%s2 + $0x240] sm:$0xff]
    %v149 = vld [vmem:[%s2 + $0x248] sm:$0xff]
    %v150 = vld [vmem:[%s2 + $0x250] sm:$0xff]
    %v151 = vld [vmem:[%s2 + $0x258] sm:$0xff]
    %v152 = vld [vmem:[%s2 + $0x260] sm:$0xff]
    %v153 = vld [vmem:[%s2 + $0x268] sm:$0xff]
    %v154 = vld [vmem:[%s2 + $0x270] sm:$0xff]
    %v155 = vld [vmem:[%s2 + $0x278] sm:$0xff]
    %v156 = vld [vmem:[%s2 + $0x280] sm:$0xff]
    %v157 = vld [vmem:[%s2 + $0x288] sm:$0xff]
    %v158 = vld [vmem:[%s2 + $0x290] sm:$0xff]
    %v159 = vld [vmem:[%s2 + $0x298] sm:$0xff]
    %v160 = vld [vmem:[%s2 + $0x2a0] sm:$0xff]
    %v161 = vld [vmem:[%s2 + $0x2a8] sm:$0xff]
    %v162 = vld [vmem:[%s2 + $0x2b0] sm:$0xff]
    %v163 = vld [vmem:[%s2 + $0x2b8] sm:$0xff]
    %v164 = vld [vmem:[%s2 + $0x2c0] sm:$0xff]
    %v165 = vld [vmem:[%s2 + $0x2c8] sm:$0xff]
    %v166 = vld [vmem:[%s2 + $0x2d0] sm:$0xff]
    %v167 = vld [vmem:[%s2 + $0x2d8] sm:$0xff]
    %v168 = vld [vmem:[%s2 + $0x2e0] sm:$0xff]
    %v169 = vld [vmem:[%s2 + $0x2e8] sm:$0xff]
    %v170 = vld [vmem:[%s2 + $0x2f0] sm:$0xff]
    %v171 = vld [vmem:[%s2 + $0x2f8] sm:$0xff]
    %v172 = vld [vmem:[%s2 + $0x300] sm:$0xff]
    %v173 = vld [vmem:[%s2 + $0x308] sm:$0xff]
    %v174 = vld [vmem:[%s2 + $0x310] sm:$0xff]
    %v175 = vld [vmem:[%s2 + $0x318] sm:$0xff]
    %v176 = vld [vmem:[%s2 + $0x320] sm:$0xff]
    %v177 = vld [vmem:[%s2 + $0x328] sm:$0xff]
    %v178 = vld [vmem:[%s2 + $0x330] sm:$0xff]
    %v179 = vld [vmem:[%s2 + $0x338] sm:$0xff]
    %v180 = vld [vmem:[%s2 + $0x340] sm:$0xff]
    %v181 = vld [vmem:[%s2 + $0x348] sm:$0xff]
    %v182 = vld [vmem:[%s2 + $0x350] sm:$0xff]
    %v183 = vld [vmem:[%s2 + $0x358] sm:$0xff]
    %v184 = vld [vmem:[%s2 + $0x360] sm:$0xff]
    %v185 = vld [vmem:[%s2 + $0x368] sm:$0xff]
    %v186 = vld [vmem:[%s2 + $0x370] sm:$0xff]
    %v187 = vld [vmem:[%s2 + $0x378] sm:$0xff]
    %v188 = vld [vmem:[%s2 + $0x380] sm:$0xff]
    %v189 = vld [vmem:[%s2 + $0x388] sm:$0xff]
    %v190 = vld [vmem:[%s2 + $0x390] sm:$0xff]
    %v191 = vld [vmem:[%s2 + $0x398] sm:$0xff]
    %v192 = vld [vmem:[%s2 + $0x3a0] sm:$0xff]
    %v193 = vld [vmem:[%s2 + $0x3a8] sm:$0xff]
    %v194 = vld [vmem:[%s2 + $0x3b0] sm:$0xff]
    %v195 = vld [vmem:[%s2 + $0x3b8] sm:$0xff]
    %v196 = vld [vmem:[%s2 + $0x3c0] sm:$0xff]
    %v197 = vld [vmem:[%s2 + $0x3c8] sm:$0xff]
    %v198 = vld [vmem:[%s2 + $0x3d0] sm:$0xff]
    %v199 = vld [vmem:[%s2 + $0x3d8] sm:$0xff]
    %v200 = vld [vmem:[%s2 + $0x3e0] sm:$0xff]
    %v201 = vld [vmem:[%s2 + $0x3e8] sm:$0xff]
    %v202 = vld [vmem:[%s2 + $0x3f0] sm:$0xff]
    %v203 = vld [vmem:[%s2 + $0x3f8] sm:$0xff]
    %v204 = vld [vmem:[%s2 + $0x400] sm:$0xff]
    %v205 = vld [vmem:[%s2 + $0x408] sm:$0xff]
    %v206 = vld [vmem:[%s2 + $0x410] sm:$0xff]
    %v207 = vld [vmem:[%s2 + $0x418] sm:$0xff]
    %v208 = vld [vmem:[%s2 + $0x420] sm:$0xff]
    %v209 = vld [vmem:[%s2 + $0x428] sm:$0xff]
    %v210 = vld [vmem:[%s2 + $0x430] sm:$0xff]
    %v211 = vld [vmem:[%s2 + $0x438] sm:$0xff]
    %v212 = vld [vmem:[%s2 + $0x440] sm:$0xff]
    %v213 = vld [vmem:[%s2 + $0x448] sm:$0xff]
    %v214 = vld [vmem:[%s2 + $0x450] sm:$0xff]
    %v215 = vld [vmem:[%s2 + $0x458] sm:$0xff]
    %v216 = vld [vmem:[%s2 + $0x460] sm:$0xff]
    %v217 = vld [vmem:[%s2 + $0x468] sm:$0xff]
    %v218 = vld [vmem:[%s2 + $0x470] sm:$0xff]
    %v219 = vld [vmem:[%s2 + $0x478] sm:$0xff]
    %v220 = vld [vmem:[%s2 + $0x480] sm:$0xff]
    %v221 = vld [vmem:[%s2 + $0x488] sm:$0xff]
    %v222 = vld [vmem:[%s2 + $0x490] sm:$0xff]
    %v223 = vld [vmem:[%s2 + $0x498] sm:$0xff]
    %v224 = vld [vmem:[%s2 + $0x4a0] sm:$0xff]
    %v225 = vld [vmem:[%s2 + $0x4a8] sm:$0xff]
    %v226 = vld [vmem:[%s2 + $0x4b0] sm:$0xff]
    %v227 = vld [vmem:[%s2 + $0x4b8] sm:$0xff]
    %v228 = vld [vmem:[%s2 + $0x4c0] sm:$0xff]
    %v229 = vld [vmem:[%s2 + $0x4c8] sm:$0xff]
    %v230 = vld [vmem:[%s2 + $0x4d0] sm:$0xff]
    %v231 = vld [vmem:[%s2 + $0x4d8] sm:$0xff]
    %v232 = vld [vmem:[%s2 + $0x4e0] sm:$0xff]
    %v233 = vld [vmem:[%s2 + $0x4e8] sm:$0xff]
    %v234 = vld [vmem:[%s2 + $0x4f0] sm:$0xff]
    %v235 = vld [vmem:[%s2 + $0x4f8] sm:$0xff]
    %v236 = vld [vmem:[%s2 + $0x500] sm:$0xff]
    %v237 = vld [vmem:[%s2 + $0x508] sm:$0xff]
    %v238 = vld [vmem:[%s2 + $0x510] sm:$0xff]
    %v239 = vld [vmem:[%s2 + $0x518] sm:$0xff]
    %v240 = vld [vmem:[%s2 + $0x520] sm:$0xff]
    %v241 = vld [vmem:[%s2 + $0x528] sm:$0xff]
    %v242 = vld [vmem:[%s2 + $0x530] sm:$0xff]
    %v243 = vld [vmem:[%s2 + $0x538] sm:$0xff]
    %v244 = vld [vmem:[%s2 + $0x540] sm:$0xff]
    %v245 = vld [vmem:[%s2 + $0x548] sm:$0xff]
    %v246 = vld [vmem:[%s2 + $0x550] sm:$0xff]
    %v247 = vld [vmem:[%s2 + $0x558] sm:$0xff]
    %v248 = vld [vmem:[%s2 + $0x560] sm:$0xff]
    %v249 = vld [vmem:[%s2 + $0x568] sm:$0xff]
    %v250 = vld [vmem:[%s2 + $0x570] sm:$0xff]
    %v251 = vld [vmem:[%s2 + $0x578] sm:$0xff]
    %v252 = vld [vmem:[%s2 + $0x580] sm:$0xff]
    %v253 = vld [vmem:[%s2 + $0x588] sm:$0xff]
    %v254 = vld [vmem:[%s2 + $0x590] sm:$0xff]
    %v255 = vld [vmem:[%s2 + $0x598] sm:$0xff]
    %v256 = vld [vmem:[%s2 + $0x5a0] sm:$0xff]
    %v257 = vld [vmem:[%s2 + $0x5a8] sm:$0xff]
    %v258 = vld [vmem:[%s2 + $0x5b0] sm:$0xff]
    %v259 = vld [vmem:[%s2 + $0x5b8] sm:$0xff]
    %v260 = vld [vmem:[%s2 + $0x5c0] sm:$0xff]
    %v261 = vld [vmem:[%s2 + $0x5c8] sm:$0xff]
    %v262 = vld [vmem:[%s2 + $0x5d0] sm:$0xff]
    %v263 = vld [vmem:[%s2 + $0x5d8] sm:$0xff]
    %v264 = vld [vmem:[%s2 + $0x5e0] sm:$0xff]
    %v265 = vld [vmem:[%s2 + $0x5e8] sm:$0xff]
    %v266 = vld [vmem:[%s2 + $0x5f0] sm:$0xff]
    %v267 = vld [vmem:[%s2 + $0x5f8] sm:$0xff]
    %v268 = vld [vmem:[%s2 + $0x600] sm:$0xff]
    %v269 = vld [vmem:[%s2 + $0x608] sm:$0xff]
    %v270 = vld [vmem:[%s2 + $0x610] sm:$0xff]
    %v271 = vld [vmem:[%s2 + $0x618] sm:$0xff]
    %v272 = vld [vmem:[%s2 + $0x620] sm:$0xff]
    %v273 = vld [vmem:[%s2 + $0x628] sm:$0xff]
    %v274 = vld [vmem:[%s2 + $0x630] sm:$0xff]
    %v275 = vld [vmem:[%s2 + $0x638] sm:$0xff]
    %v276 = vld [vmem:[%s2 + $0x640] sm:$0xff]
    %v277 = vld [vmem:[%s2 + $0x648] sm:$0xff]
    %v278 = vld [vmem:[%s2 + $0x650] sm:$0xff]
    %v279 = vld [vmem:[%s2 + $0x658] sm:$0xff]
    %v280 = vld [vmem:[%s2 + $0x660] sm:$0xff]
    %v281 = vld [vmem:[%s2 + $0x668] sm:$0xff]
    %v282 = vld [vmem:[%s2 + $0x670] sm:$0xff]
    %v283 = vld [vmem:[%s2 + $0x678] sm:$0xff]
    %v284 = vld [vmem:[%s2 + $0x680] sm:$0xff]
    %v285 = vld [vmem:[%s2 + $0x688] sm:$0xff]
    %v286 = vld [vmem:[%s2 + $0x690] sm:$0xff]
    %v287 = vld [vmem:[%s2 + $0x698] sm:$0xff]
    %v288 = vld [vmem:[%s2 + $0x6a0] sm:$0xff]
    %v289 = vld [vmem:[%s2 + $0x6a8] sm:$0xff]
    %v290 = vld [vmem:[%s2 + $0x6b0] sm:$0xff]
    %v291 = vld [vmem:[%s2 + $0x6b8] sm:$0xff]
    %v292 = vld [vmem:[%s2 + $0x6c0] sm:$0xff]
    %v293 = vld [vmem:[%s2 + $0x6c8] sm:$0xff]
    %v294 = vld [vmem:[%s2 + $0x6d0] sm:$0xff]
    %v295 = vld [vmem:[%s2 + $0x6d8] sm:$0xff]
    %v296 = vld [vmem:[%s2 + $0x6e0] sm:$0xff]
    %v297 = vld [vmem:[%s2 + $0x6e8] sm:$0xff]
    %v298 = vld [vmem:[%s2 + $0x6f0] sm:$0xff]
    %v299 = vld [vmem:[%s2 + $0x6f8] sm:$0xff]
    %v300 = vld [vmem:[%s2 + $0x700] sm:$0xff]
    %v301 = vld [vmem:[%s2 + $0x708] sm:$0xff]
    %v302 = vld [vmem:[%s2 + $0x710] sm:$0xff]
    %v303 = vld [vmem:[%s2 + $0x718] sm:$0xff]
    %v304 = vld [vmem:[%s2 + $0x720] sm:$0xff]
    %v305 = vld [vmem:[%s2 + $0x728] sm:$0xff]
    %v306 = vld [vmem:[%s2 + $0x730] sm:$0xff]
    %v307 = vld [vmem:[%s2 + $0x738] sm:$0xff]
    %v308 = vld [vmem:[%s2 + $0x740] sm:$0xff]
    %v309 = vld [vmem:[%s2 + $0x748] sm:$0xff]
    %v310 = vld [vmem:[%s2 + $0x750] sm:$0xff]
    %v311 = vld [vmem:[%s2 + $0x758] sm:$0xff]
    %v312 = vld [vmem:[%s2 + $0x760] sm:$0xff]
    %v313 = vld [vmem:[%s2 + $0x768] sm:$0xff]
    %v314 = vld [vmem:[%s2 + $0x770] sm:$0xff]
    %v315 = vld [vmem:[%s2 + $0x778] sm:$0xff]
    %v316 = vld [vmem:[%s2 + $0x780] sm:$0xff]
    %v317 = vld [vmem:[%s2 + $0x788] sm:$0xff]
    %v318 = vld [vmem:[%s2 + $0x790] sm:$0xff]
    %v319 = vld [vmem:[%s2 + $0x798] sm:$0xff]
    %v320 = vld [vmem:[%s2 + $0x7a0] sm:$0xff]
    %v321 = vld [vmem:[%s2 + $0x7a8] sm:$0xff]
    %v322 = vld [vmem:[%s2 + $0x7b0] sm:$0xff]
    %v323 = vld [vmem:[%s2 + $0x7b8] sm:$0xff]
    %v324 = vld [vmem:[%s2 + $0x7c0] sm:$0xff]
    %v325 = vld [vmem:[%s2 + $0x7c8] sm:$0xff]
    %v326 = vld [vmem:[%s2 + $0x7d0] sm:$0xff]
    %v327 = vld [vmem:[%s2 + $0x7d8] sm:$0xff]
    %v328 = vld [vmem:[%s2 + $0x7e0] sm:$0xff]
    %v329 = vld [vmem:[%s2 + $0x7e8] sm:$0xff]
    %v330 = vld [vmem:[%s2 + $0x7f0] sm:$0xff]
    %v331 = vld [vmem:[%s2 + $0x7f8] sm:$0xff]
    %v332 = vld [vmem:[%s2 + $0x800] sm:$0xff]
    %v333 = vld [vmem:[%s2 + $0x808] sm:$0xff]
    %v334 = vld [vmem:[%s2 + $0x810] sm:$0xff]
    %v335 = vld [vmem:[%s2 + $0x818] sm:$0xff]
    %v336 = vld [vmem:[%s2 + $0x820] sm:$0xff]
    %v337 = vld [vmem:[%s2 + $0x828] sm:$0xff]
    %v338 = vld [vmem:[%s2 + $0x830] sm:$0xff]
    %v339 = vld [vmem:[%s2 + $0x838] sm:$0xff]
    %v340 = vld [vmem:[%s2 + $0x840] sm:$0xff]
    %v341 = vld [vmem:[%s2 + $0x848] sm:$0xff]
    %v342 = vld [vmem:[%s2 + $0x850] sm:$0xff]
    %v343 = vld [vmem:[%s2 + $0x858] sm:$0xff]
    %v344 = vld [vmem:[%s2 + $0x860] sm:$0xff]
    %v345 = vld [vmem:[%s2 + $0x868] sm:$0xff]
    %v346 = vld [vmem:[%s2 + $0x870] sm:$0xff]
    %v347 = vld [vmem:[%s2 + $0x878] sm:$0xff]
    %v348 = vld [vmem:[%s2 + $0x880] sm:$0xff]
    %v349 = vld [vmem:[%s2 + $0x888] sm:$0xff]
    %v350 = vld [vmem:[%s2 + $0x890] sm:$0xff]
    %v351 = vld [vmem:[%s2 + $0x898] sm:$0xff]
    %v352 = vld [vmem:[%s2 + $0x8a0] sm:$0xff]
    %v353 = vld [vmem:[%s2 + $0x8a8] sm:$0xff]
    %v354 = vld [vmem:[%s2 + $0x8b0] sm:$0xff]
    %v355 = vld [vmem:[%s2 + $0x8b8] sm:$0xff]
    %v356 = vld [vmem:[%s2 + $0x8c0] sm:$0xff]
    %v357 = vld [vmem:[%s2 + $0x8c8] sm:$0xff]
    %v358 = vld [vmem:[%s2 + $0x8d0] sm:$0xff]
    %v359 = vld [vmem:[%s2 + $0x8d8] sm:$0xff]
    %v360 = vld [vmem:[%s2 + $0x8e0] sm:$0xff]
    %v361 = vld [vmem:[%s2 + $0x8e8] sm:$0xff]
    %v362 = vld [vmem:[%s2 + $0x8f0] sm:$0xff]
    %v363 = vld [vmem:[%s2 + $0x8f8] sm:$0xff]
    %v364 = vld [vmem:[%s2 + $0x900] sm:$0xff]
    %v365 = vld [vmem:[%s2 + $0x908] sm:$0xff]
    %v366 = vld [vmem:[%s2 + $0x910] sm:$0xff]
    %v367 = vld [vmem:[%s2 + $0x918] sm:$0xff]
    %v368 = vld [vmem:[%s2 + $0x920] sm:$0xff]
    %v369 = vld [vmem:[%s2 + $0x928] sm:$0xff]
    %v370 = vld [vmem:[%s2 + $0x930] sm:$0xff]
    %v371 = vld [vmem:[%s2 + $0x938] sm:$0xff]
    %v372 = vld [vmem:[%s2 + $0x940] sm:$0xff]
    %v373 = vld [vmem:[%s2 + $0x948] sm:$0xff]
    %v374 = vld [vmem:[%s2 + $0x950] sm:$0xff]
    %v375 = vld [vmem:[%s2 + $0x958] sm:$0xff]
    %v376 = vld [vmem:[%s2 + $0x960] sm:$0xff]
    %v377 = vld [vmem:[%s2 + $0x968] sm:$0xff]
    %v378 = vld [vmem:[%s2 + $0x970] sm:$0xff]
    %v379 = vld [vmem:[%s2 + $0x978] sm:$0xff]
    %v380 = vld [vmem:[%s2 + $0x980] sm:$0xff]
    %v381 = vld [vmem:[%s2 + $0x988] sm:$0xff]
    %v382 = vld [vmem:[%s2 + $0x990] sm:$0xff]
    %v383 = vld [vmem:[%s2 + $0x998] sm:$0xff]
    %v384 = vld [vmem:[%s2 + $0x9a0] sm:$0xff]
    %v385 = vld [vmem:[%s2 + $0x9a8] sm:$0xff]
    %v386 = vld [vmem:[%s2 + $0x9b0] sm:$0xff]
    %v387 = vld [vmem:[%s2 + $0x9b8] sm:$0xff]
    %v388 = vld [vmem:[%s2 + $0x9c0] sm:$0xff]
    %v389 = vld [vmem:[%s2 + $0x9c8] sm:$0xff]
    %v390 = vld [vmem:[%s2 + $0x9d0] sm:$0xff]
    %v391 = vld [vmem:[%s2 + $0x9d8] sm:$0xff]
    %v392 = vld [vmem:[%s2 + $0x9e0] sm:$0xff]
    %v393 = vld [vmem:[%s2 + $0x9e8] sm:$0xff]
    %v394 = vld [vmem:[%s2 + $0x9f0] sm:$0xff]
    %v395 = vld [vmem:[%s2 + $0x9f8] sm:$0xff]
    %v396 = vld [vmem:[%s2 + $0xa00] sm:$0xff]
    %v397 = vld [vmem:[%s2 + $0xa08] sm:$0xff]
    %v398 = vld [vmem:[%s2 + $0xa10] sm:$0xff]
    %v399 = vld [vmem:[%s2 + $0xa18] sm:$0xff]
    %v400 = vld [vmem:[%s3] sm:$0xf]
    %v402 = vperm.slane %v400, 0
    %v403 = vperm.slane %v400, 1
    %v404 = vperm.slane %v400, 2
    %v405 = vperm.slane %v400, 3
    %v734 = vunpack.c.l.b16 %v76
    %v735 = vunpack.c.h.b16 %v76
    %v736 = vunpack.c.l.b16 %v77
    %v737 = vunpack.c.h.b16 %v77
    %v738 = vunpack.c.l.b16 %v78
    %v739 = vunpack.c.h.b16 %v78
    %v740 = vunpack.c.l.b16 %v79
    %v741 = vunpack.c.h.b16 %v79
    %v742 = vunpack.c.l.b16 %v80
    %v743 = vunpack.c.h.b16 %v80
    %v744 = vunpack.c.l.b16 %v81
    %v745 = vunpack.c.h.b16 %v81
    %v746 = vunpack.c.l.b16 %v82
    %v747 = vunpack.c.h.b16 %v82
    %v748 = vunpack.c.l.b16 %v83
    %v749 = vunpack.c.h.b16 %v83
    %v750 = vunpack.c.l.b16 %v84
    %v751 = vunpack.c.h.b16 %v84
    %v752 = vunpack.c.l.b16 %v85
    %v753 = vunpack.c.h.b16 %v85
    %v754 = vunpack.c.l.b16 %v86
    %v755 = vunpack.c.h.b16 %v86
    %v756 = vunpack.c.l.b16 %v87
    %v757 = vunpack.c.h.b16 %v87
    %v758 = vunpack.c.l.b16 %v88
    %v759 = vunpack.c.h.b16 %v88
    %v760 = vunpack.c.l.b16 %v89
    %v761 = vunpack.c.h.b16 %v89
    %v762 = vunpack.c.l.b16 %v90
    %v763 = vunpack.c.h.b16 %v90
    %v764 = vunpack.c.l.b16 %v91
    %v765 = vunpack.c.h.b16 %v91
    %v766 = vunpack.c.l.b16 %v92
    %v767 = vunpack.c.h.b16 %v92
    %v768 = vunpack.c.l.b16 %v93
    %v769 = vunpack.c.h.b16 %v93
    %v770 = vunpack.c.l.b16 %v94
    %v771 = vunpack.c.h.b16 %v94
    %v772 = vunpack.c.l.b16 %v95
    %v773 = vunpack.c.h.b16 %v95
    %v774 = vunpack.c.l.b16 %v96
    %v775 = vunpack.c.h.b16 %v96
    %v776 = vunpack.c.l.b16 %v97
    %v777 = vunpack.c.h.b16 %v97
    %v778 = vunpack.c.l.b16 %v98
    %v779 = vunpack.c.h.b16 %v98
    %v780 = vunpack.c.l.b16 %v99
    %v781 = vunpack.c.h.b16 %v99
    %v782 = vunpack.c.l.b16 %v100
    %v783 = vunpack.c.h.b16 %v100
    %v784 = vunpack.c.l.b16 %v101
    %v785 = vunpack.c.h.b16 %v101
    %v786 = vunpack.c.l.b16 %v102
    %v787 = vunpack.c.h.b16 %v102
    %v788 = vunpack.c.l.b16 %v103
    %v789 = vunpack.c.h.b16 %v103
    %v790 = vunpack.c.l.b16 %v104
    %v791 = vunpack.c.h.b16 %v104
    %v792 = vunpack.c.l.b16 %v105
    %v793 = vunpack.c.h.b16 %v105
    %v794 = vunpack.c.l.b16 %v106
    %v795 = vunpack.c.h.b16 %v106
    %v796 = vunpack.c.l.b16 %v107
    %v797 = vunpack.c.h.b16 %v107
    %v798 = vunpack.c.l.b16 %v108
    %v799 = vunpack.c.h.b16 %v108
    %v800 = vunpack.c.l.b16 %v109
    %v801 = vunpack.c.h.b16 %v109
    %v802 = vunpack.c.l.b16 %v110
    %v803 = vunpack.c.h.b16 %v110
    %v804 = vunpack.c.l.b16 %v111
    %v805 = vunpack.c.h.b16 %v111
    %v806 = vunpack.c.l.b16 %v112
    %v807 = vunpack.c.h.b16 %v112
    %v808 = vunpack.c.l.b16 %v113
    %v809 = vunpack.c.h.b16 %v113
    %v810 = vunpack.c.l.b16 %v114
    %v811 = vunpack.c.h.b16 %v114
    %v812 = vunpack.c.l.b16 %v115
    %v813 = vunpack.c.h.b16 %v115
    %v814 = vunpack.c.l.b16 %v116
    %v815 = vunpack.c.h.b16 %v116
    %v816 = vunpack.c.l.b16 %v117
    %v817 = vunpack.c.h.b16 %v117
    %v818 = vunpack.c.l.b16 %v118
    %v819 = vunpack.c.h.b16 %v118
    %v820 = vunpack.c.l.b16 %v119
    %v821 = vunpack.c.h.b16 %v119
    %v822 = vunpack.c.l.b16 %v120
    %v823 = vunpack.c.h.b16 %v120
    %v824 = vunpack.c.l.b16 %v121
    %v825 = vunpack.c.h.b16 %v121
    %v826 = vunpack.c.l.b16 %v122
    %v827 = vunpack.c.h.b16 %v122
    %v828 = vunpack.c.l.b16 %v123
    %v829 = vunpack.c.h.b16 %v123
    %v830 = vunpack.c.l.b16 %v124
    %v831 = vunpack.c.h.b16 %v124
    %v832 = vunpack.c.l.b16 %v125
    %v833 = vunpack.c.h.b16 %v125
    %v834 = vunpack.c.l.b16 %v126
    %v835 = vunpack.c.h.b16 %v126
    %v836 = vunpack.c.l.b16 %v127
    %v837 = vunpack.c.h.b16 %v127
    %v838 = vunpack.c.l.b16 %v128
    %v839 = vunpack.c.h.b16 %v128
    %v840 = vunpack.c.l.b16 %v129
    %v841 = vunpack.c.h.b16 %v129
    %v842 = vunpack.c.l.b16 %v130
    %v843 = vunpack.c.h.b16 %v130
    %v844 = vunpack.c.l.b16 %v131
    %v845 = vunpack.c.h.b16 %v131
    %v846 = vunpack.c.l.b16 %v132
    %v847 = vunpack.c.h.b16 %v132
    %v848 = vunpack.c.l.b16 %v133
    %v849 = vunpack.c.h.b16 %v133
    %v850 = vunpack.c.l.b16 %v134
    %v851 = vunpack.c.h.b16 %v134
    %v852 = vunpack.c.l.b16 %v135
    %v853 = vunpack.c.h.b16 %v135
    %v854 = vunpack.c.l.b16 %v136
    %v855 = vunpack.c.h.b16 %v136
    %v856 = vunpack.c.l.b16 %v137
    %v857 = vunpack.c.h.b16 %v137
    %v858 = vunpack.c.l.b16 %v138
    %v859 = vunpack.c.h.b16 %v138
    %v860 = vunpack.c.l.b16 %v139
    %v861 = vunpack.c.h.b16 %v139
    %v862 = vunpack.c.l.b16 %v140
    %v863 = vunpack.c.h.b16 %v140
    %v864 = vunpack.c.l.b16 %v141
    %v865 = vunpack.c.h.b16 %v141
    %v866 = vunpack.c.l.b16 %v142
    %v867 = vunpack.c.h.b16 %v142
    %v868 = vunpack.c.l.b16 %v143
    %v869 = vunpack.c.h.b16 %v143
    %v870 = vunpack.c.l.b16 %v144
    %v871 = vunpack.c.h.b16 %v144
    %v872 = vunpack.c.l.b16 %v145
    %v873 = vunpack.c.h.b16 %v145
    %v874 = vunpack.c.l.b16 %v146
    %v875 = vunpack.c.h.b16 %v146
    %v876 = vunpack.c.l.b16 %v147
    %v877 = vunpack.c.h.b16 %v147
    %v878 = vunpack.c.l.b16 %v148
    %v879 = vunpack.c.h.b16 %v148
    %v880 = vunpack.c.l.b16 %v149
    %v881 = vunpack.c.h.b16 %v149
    %v882 = vunpack.c.l.b16 %v150
    %v883 = vunpack.c.h.b16 %v150
    %v884 = vunpack.c.l.b16 %v151
    %v885 = vunpack.c.h.b16 %v151
    %v886 = vunpack.c.l.b16 %v152
    %v887 = vunpack.c.h.b16 %v152
    %v888 = vunpack.c.l.b16 %v153
    %v889 = vunpack.c.h.b16 %v153
    %v890 = vunpack.c.l.b16 %v154
    %v891 = vunpack.c.h.b16 %v154
    %v892 = vunpack.c.l.b16 %v155
    %v893 = vunpack.c.h.b16 %v155
    %v894 = vunpack.c.l.b16 %v156
    %v895 = vunpack.c.h.b16 %v156
    %v896 = vunpack.c.l.b16 %v157
    %v897 = vunpack.c.h.b16 %v157
    %v898 = vunpack.c.l.b16 %v158
    %v899 = vunpack.c.h.b16 %v158
    %v900 = vunpack.c.l.b16 %v159
    %v901 = vunpack.c.h.b16 %v159
    %v902 = vunpack.c.l.b16 %v160
    %v903 = vunpack.c.h.b16 %v160
    %v904 = vunpack.c.l.b16 %v161
    %v905 = vunpack.c.h.b16 %v161
    %v906 = vunpack.c.l.b16 %v162
    %v907 = vunpack.c.h.b16 %v162
    %v908 = vunpack.c.l.b16 %v163
    %v909 = vunpack.c.h.b16 %v163
    %v910 = vunpack.c.l.b16 %v164
    %v911 = vunpack.c.h.b16 %v164
    %v912 = vunpack.c.l.b16 %v165
    %v913 = vunpack.c.h.b16 %v165
    %v914 = vunpack.c.l.b16 %v166
    %v915 = vunpack.c.h.b16 %v166
    %v916 = vunpack.c.l.b16 %v167
    %v917 = vunpack.c.h.b16 %v167
    %v918 = vunpack.c.l.b16 %v168
    %v919 = vunpack.c.h.b16 %v168
    %v920 = vunpack.c.l.b16 %v169
    %v921 = vunpack.c.h.b16 %v169
    %v922 = vunpack.c.l.b16 %v170
    %v923 = vunpack.c.h.b16 %v170
    %v924 = vunpack.c.l.b16 %v171
    %v925 = vunpack.c.h.b16 %v171
    %v926 = vunpack.c.l.b16 %v172
    %v927 = vunpack.c.h.b16 %v172
    %v928 = vunpack.c.l.b16 %v173
    %v929 = vunpack.c.h.b16 %v173
    %v930 = vunpack.c.l.b16 %v174
    %v931 = vunpack.c.h.b16 %v174
    %v932 = vunpack.c.l.b16 %v175
    %v933 = vunpack.c.h.b16 %v175
    %v934 = vunpack.c.l.b16 %v176
    %v935 = vunpack.c.h.b16 %v176
    %v936 = vunpack.c.l.b16 %v177
    %v937 = vunpack.c.h.b16 %v177
    %v938 = vunpack.c.l.b16 %v178
    %v939 = vunpack.c.h.b16 %v178
    %v940 = vunpack.c.l.b16 %v179
    %v941 = vunpack.c.h.b16 %v179
    %v942 = vunpack.c.l.b16 %v180
    %v943 = vunpack.c.h.b16 %v180
    %v944 = vunpack.c.l.b16 %v181
    %v945 = vunpack.c.h.b16 %v181
    %v946 = vunpack.c.l.b16 %v182
    %v947 = vunpack.c.h.b16 %v182
    %v948 = vunpack.c.l.b16 %v183
    %v949 = vunpack.c.h.b16 %v183
    %v950 = vunpack.c.l.b16 %v184
    %v951 = vunpack.c.h.b16 %v184
    %v952 = vunpack.c.l.b16 %v185
    %v953 = vunpack.c.h.b16 %v185
    %v954 = vunpack.c.l.b16 %v186
    %v955 = vunpack.c.h.b16 %v186
    %v956 = vunpack.c.l.b16 %v187
    %v957 = vunpack.c.h.b16 %v187
    %v958 = vunpack.c.l.b16 %v188
    %v959 = vunpack.c.h.b16 %v188
    %v960 = vunpack.c.l.b16 %v189
    %v961 = vunpack.c.h.b16 %v189
    %v962 = vunpack.c.l.b16 %v190
    %v963 = vunpack.c.h.b16 %v190
    %v964 = vunpack.c.l.b16 %v191
    %v965 = vunpack.c.h.b16 %v191
    %v966 = vunpack.c.l.b16 %v192
    %v967 = vunpack.c.h.b16 %v192
    %v968 = vunpack.c.l.b16 %v193
    %v969 = vunpack.c.h.b16 %v193
    %v970 = vunpack.c.l.b16 %v194
    %v971 = vunpack.c.h.b16 %v194
    %v972 = vunpack.c.l.b16 %v195
    %v973 = vunpack.c.h.b16 %v195
    %v974 = vunpack.c.l.b16 %v196
    %v975 = vunpack.c.h.b16 %v196
    %v976 = vunpack.c.l.b16 %v197
    %v977 = vunpack.c.h.b16 %v197
    %v978 = vunpack.c.l.b16 %v198
    %v979 = vunpack.c.h.b16 %v198
    %v980 = vunpack.c.l.b16 %v199
    %v981 = vunpack.c.h.b16 %v199
    %v982 = vunpack.c.l.b16 %v200
    %v983 = vunpack.c.h.b16 %v200
    %v984 = vunpack.c.l.b16 %v201
    %v985 = vunpack.c.h.b16 %v201
    %v986 = vunpack.c.l.b16 %v202
    %v987 = vunpack.c.h.b16 %v202
    %v988 = vunpack.c.l.b16 %v203
    %v989 = vunpack.c.h.b16 %v203
    %v990 = vunpack.c.l.b16 %v204
    %v991 = vunpack.c.h.b16 %v204
    %v992 = vunpack.c.l.b16 %v205
    %v993 = vunpack.c.h.b16 %v205
    %v994 = vunpack.c.l.b16 %v206
    %v995 = vunpack.c.h.b16 %v206
    %v996 = vunpack.c.l.b16 %v207
    %v997 = vunpack.c.h.b16 %v207
    %v998 = vunpack.c.l.b16 %v208
    %v999 = vunpack.c.h.b16 %v208
    %v1000 = vunpack.c.l.b16 %v209
    %v1001 = vunpack.c.h.b16 %v209
    %v1002 = vunpack.c.l.b16 %v210
    %v1003 = vunpack.c.h.b16 %v210
    %v1004 = vunpack.c.l.b16 %v211
    %v1005 = vunpack.c.h.b16 %v211
    %v1006 = vunpack.c.l.b16 %v212
    %v1007 = vunpack.c.h.b16 %v212
    %v1008 = vunpack.c.l.b16 %v213
    %v1009 = vunpack.c.h.b16 %v213
    %v1010 = vunpack.c.l.b16 %v214
    %v1011 = vunpack.c.h.b16 %v214
    %v1012 = vunpack.c.l.b16 %v215
    %v1013 = vunpack.c.h.b16 %v215
    %v1014 = vunpack.c.l.b16 %v216
    %v1015 = vunpack.c.h.b16 %v216
    %v1016 = vunpack.c.l.b16 %v217
    %v1017 = vunpack.c.h.b16 %v217
    %v1018 = vunpack.c.l.b16 %v218
    %v1019 = vunpack.c.h.b16 %v218
    %v1020 = vunpack.c.l.b16 %v219
    %v1021 = vunpack.c.h.b16 %v219
    %v1022 = vunpack.c.l.b16 %v220
    %v1023 = vunpack.c.h.b16 %v220
    %v1024 = vunpack.c.l.b16 %v221
    %v1025 = vunpack.c.h.b16 %v221
    %v1026 = vunpack.c.l.b16 %v222
    %v1027 = vunpack.c.h.b16 %v222
    %v1028 = vunpack.c.l.b16 %v223
    %v1029 = vunpack.c.h.b16 %v223
    %v1030 = vunpack.c.l.b16 %v224
    %v1031 = vunpack.c.h.b16 %v224
    %v1032 = vunpack.c.l.b16 %v225
    %v1033 = vunpack.c.h.b16 %v225
    %v1034 = vunpack.c.l.b16 %v226
    %v1035 = vunpack.c.h.b16 %v226
    %v1036 = vunpack.c.l.b16 %v227
    %v1037 = vunpack.c.h.b16 %v227
    %v1038 = vunpack.c.l.b16 %v228
    %v1039 = vunpack.c.h.b16 %v228
    %v1040 = vunpack.c.l.b16 %v229
    %v1041 = vunpack.c.h.b16 %v229
    %v1042 = vunpack.c.l.b16 %v230
    %v1043 = vunpack.c.h.b16 %v230
    %v1044 = vunpack.c.l.b16 %v231
    %v1045 = vunpack.c.h.b16 %v231
    %v1046 = vunpack.c.l.b16 %v232
    %v1047 = vunpack.c.h.b16 %v232
    %v1048 = vunpack.c.l.b16 %v233
    %v1049 = vunpack.c.h.b16 %v233
    %v1050 = vunpack.c.l.b16 %v234
    %v1051 = vunpack.c.h.b16 %v234
    %v1052 = vunpack.c.l.b16 %v235
    %v1053 = vunpack.c.h.b16 %v235
    %v1054 = vunpack.c.l.b16 %v236
    %v1055 = vunpack.c.h.b16 %v236
    %v1056 = vunpack.c.l.b16 %v237
    %v1057 = vunpack.c.h.b16 %v237
    %v1058 = vunpack.c.l.b16 %v238
    %v1059 = vunpack.c.h.b16 %v238
    %v1060 = vunpack.c.l.b16 %v239
    %v1061 = vunpack.c.h.b16 %v239
    %v1062 = vunpack.c.l.b16 %v240
    %v1063 = vunpack.c.h.b16 %v240
    %v1064 = vunpack.c.l.b16 %v241
    %v1065 = vunpack.c.h.b16 %v241
    %v1066 = vunpack.c.l.b16 %v242
    %v1067 = vunpack.c.h.b16 %v242
    %v1068 = vunpack.c.l.b16 %v243
    %v1069 = vunpack.c.h.b16 %v243
    %v1070 = vunpack.c.l.b16 %v244
    %v1071 = vunpack.c.h.b16 %v244
    %v1072 = vunpack.c.l.b16 %v245
    %v1073 = vunpack.c.h.b16 %v245
    %v1074 = vunpack.c.l.b16 %v246
    %v1075 = vunpack.c.h.b16 %v246
    %v1076 = vunpack.c.l.b16 %v247
    %v1077 = vunpack.c.h.b16 %v247
    %v1078 = vunpack.c.l.b16 %v248
    %v1079 = vunpack.c.h.b16 %v248
    %v1080 = vunpack.c.l.b16 %v249
    %v1081 = vunpack.c.h.b16 %v249
    %v1082 = vunpack.c.l.b16 %v250
    %v1083 = vunpack.c.h.b16 %v250
    %v1084 = vunpack.c.l.b16 %v251
    %v1085 = vunpack.c.h.b16 %v251
    %v1086 = vunpack.c.l.b16 %v252
    %v1087 = vunpack.c.h.b16 %v252
    %v1088 = vunpack.c.l.b16 %v253
    %v1089 = vunpack.c.h.b16 %v253
    %v1090 = vunpack.c.l.b16 %v254
    %v1091 = vunpack.c.h.b16 %v254
    %v1092 = vunpack.c.l.b16 %v255
    %v1093 = vunpack.c.h.b16 %v255
    %v1094 = vunpack.c.l.b16 %v256
    %v1095 = vunpack.c.h.b16 %v256
    %v1096 = vunpack.c.l.b16 %v257
    %v1097 = vunpack.c.h.b16 %v257
    %v1098 = vunpack.c.l.b16 %v258
    %v1099 = vunpack.c.h.b16 %v258
    %v1100 = vunpack.c.l.b16 %v259
    %v1101 = vunpack.c.h.b16 %v259
    %v1102 = vunpack.c.l.b16 %v260
    %v1103 = vunpack.c.h.b16 %v260
    %v1104 = vunpack.c.l.b16 %v261
    %v1105 = vunpack.c.h.b16 %v261
    %v1106 = vunpack.c.l.b16 %v262
    %v1107 = vunpack.c.h.b16 %v262
    %v1108 = vunpack.c.l.b16 %v263
    %v1109 = vunpack.c.h.b16 %v263
    %v1110 = vunpack.c.l.b16 %v264
    %v1111 = vunpack.c.h.b16 %v264
    %v1112 = vunpack.c.l.b16 %v265
    %v1113 = vunpack.c.h.b16 %v265
    %v1114 = vunpack.c.l.b16 %v266
    %v1115 = vunpack.c.h.b16 %v266
    %v1116 = vunpack.c.l.b16 %v267
    %v1117 = vunpack.c.h.b16 %v267
    %v1118 = vunpack.c.l.b16 %v268
    %v1119 = vunpack.c.h.b16 %v268
    %v1120 = vunpack.c.l.b16 %v269
    %v1121 = vunpack.c.h.b16 %v269
    %v1122 = vunpack.c.l.b16 %v270
    %v1123 = vunpack.c.h.b16 %v270
    %v1124 = vunpack.c.l.b16 %v271
    %v1125 = vunpack.c.h.b16 %v271
    %v1126 = vunpack.c.l.b16 %v272
    %v1127 = vunpack.c.h.b16 %v272
    %v1128 = vunpack.c.l.b16 %v273
    %v1129 = vunpack.c.h.b16 %v273
    %v1130 = vunpack.c.l.b16 %v274
    %v1131 = vunpack.c.h.b16 %v274
    %v1132 = vunpack.c.l.b16 %v275
    %v1133 = vunpack.c.h.b16 %v275
    %v1134 = vunpack.c.l.b16 %v276
    %v1135 = vunpack.c.h.b16 %v276
    %v1136 = vunpack.c.l.b16 %v277
    %v1137 = vunpack.c.h.b16 %v277
    %v1138 = vunpack.c.l.b16 %v278
    %v1139 = vunpack.c.h.b16 %v278
    %v1140 = vunpack.c.l.b16 %v279
    %v1141 = vunpack.c.h.b16 %v279
    %v1142 = vunpack.c.l.b16 %v280
    %v1143 = vunpack.c.h.b16 %v280
    %v1144 = vunpack.c.l.b16 %v281
    %v1145 = vunpack.c.h.b16 %v281
    %v1146 = vunpack.c.l.b16 %v282
    %v1147 = vunpack.c.h.b16 %v282
    %v1148 = vunpack.c.l.b16 %v283
    %v1149 = vunpack.c.h.b16 %v283
    %v1150 = vunpack.c.l.b16 %v284
    %v1151 = vunpack.c.h.b16 %v284
    %v1152 = vunpack.c.l.b16 %v285
    %v1153 = vunpack.c.h.b16 %v285
    %v1154 = vunpack.c.l.b16 %v286
    %v1155 = vunpack.c.h.b16 %v286
    %v1156 = vunpack.c.l.b16 %v287
    %v1157 = vunpack.c.h.b16 %v287
    %v1158 = vunpack.c.l.b16 %v288
    %v1159 = vunpack.c.h.b16 %v288
    %v1160 = vunpack.c.l.b16 %v289
    %v1161 = vunpack.c.h.b16 %v289
    %v1162 = vunpack.c.l.b16 %v290
    %v1163 = vunpack.c.h.b16 %v290
    %v1164 = vunpack.c.l.b16 %v291
    %v1165 = vunpack.c.h.b16 %v291
    %v1166 = vunpack.c.l.b16 %v292
    %v1167 = vunpack.c.h.b16 %v292
    %v1168 = vunpack.c.l.b16 %v293
    %v1169 = vunpack.c.h.b16 %v293
    %v1170 = vunpack.c.l.b16 %v294
    %v1171 = vunpack.c.h.b16 %v294
    %v1172 = vunpack.c.l.b16 %v295
    %v1173 = vunpack.c.h.b16 %v295
    %v1174 = vunpack.c.l.b16 %v296
    %v1175 = vunpack.c.h.b16 %v296
    %v1176 = vunpack.c.l.b16 %v297
    %v1177 = vunpack.c.h.b16 %v297
    %v1178 = vunpack.c.l.b16 %v298
    %v1179 = vunpack.c.h.b16 %v298
    %v1180 = vunpack.c.l.b16 %v299
    %v1181 = vunpack.c.h.b16 %v299
    %v1182 = vunpack.c.l.b16 %v300
    %v1183 = vunpack.c.h.b16 %v300
    %v1184 = vunpack.c.l.b16 %v301
    %v1185 = vunpack.c.h.b16 %v301
    %v1186 = vunpack.c.l.b16 %v302
    %v1187 = vunpack.c.h.b16 %v302
    %v1188 = vunpack.c.l.b16 %v303
    %v1189 = vunpack.c.h.b16 %v303
    %v1190 = vunpack.c.l.b16 %v304
    %v1191 = vunpack.c.h.b16 %v304
    %v1192 = vunpack.c.l.b16 %v305
    %v1193 = vunpack.c.h.b16 %v305
    %v1194 = vunpack.c.l.b16 %v306
    %v1195 = vunpack.c.h.b16 %v306
    %v1196 = vunpack.c.l.b16 %v307
    %v1197 = vunpack.c.h.b16 %v307
    %v1198 = vunpack.c.l.b16 %v308
    %v1199 = vunpack.c.h.b16 %v308
    %v1200 = vunpack.c.l.b16 %v309
    %v1201 = vunpack.c.h.b16 %v309
    %v1202 = vunpack.c.l.b16 %v310
    %v1203 = vunpack.c.h.b16 %v310
    %v1204 = vunpack.c.l.b16 %v311
    %v1205 = vunpack.c.h.b16 %v311
    %v1206 = vunpack.c.l.b16 %v312
    %v1207 = vunpack.c.h.b16 %v312
    %v1208 = vunpack.c.l.b16 %v313
    %v1209 = vunpack.c.h.b16 %v313
    %v1210 = vunpack.c.l.b16 %v314
    %v1211 = vunpack.c.h.b16 %v314
    %v1212 = vunpack.c.l.b16 %v315
    %v1213 = vunpack.c.h.b16 %v315
    %v1214 = vunpack.c.l.b16 %v316
    %v1215 = vunpack.c.h.b16 %v316
    %v1216 = vunpack.c.l.b16 %v317
    %v1217 = vunpack.c.h.b16 %v317
    %v1218 = vunpack.c.l.b16 %v318
    %v1219 = vunpack.c.h.b16 %v318
    %v1220 = vunpack.c.l.b16 %v319
    %v1221 = vunpack.c.h.b16 %v319
    %v1222 = vunpack.c.l.b16 %v320
    %v1223 = vunpack.c.h.b16 %v320
    %v1224 = vunpack.c.l.b16 %v321
    %v1225 = vunpack.c.h.b16 %v321
    %v1226 = vunpack.c.l.b16 %v322
    %v1227 = vunpack.c.h.b16 %v322
    %v1228 = vunpack.c.l.b16 %v323
    %v1229 = vunpack.c.h.b16 %v323
    %v1230 = vunpack.c.l.b16 %v324
    %v1231 = vunpack.c.h.b16 %v324
    %v1232 = vunpack.c.l.b16 %v325
    %v1233 = vunpack.c.h.b16 %v325
    %v1234 = vunpack.c.l.b16 %v326
    %v1235 = vunpack.c.h.b16 %v326
    %v1236 = vunpack.c.l.b16 %v327
    %v1237 = vunpack.c.h.b16 %v327
    %v1238 = vunpack.c.l.b16 %v328
    %v1239 = vunpack.c.h.b16 %v328
    %v1240 = vunpack.c.l.b16 %v329
    %v1241 = vunpack.c.h.b16 %v329
    %v1242 = vunpack.c.l.b16 %v330
    %v1243 = vunpack.c.h.b16 %v330
    %v1244 = vunpack.c.l.b16 %v331
    %v1245 = vunpack.c.h.b16 %v331
    %v1246 = vunpack.c.l.b16 %v332
    %v1247 = vunpack.c.h.b16 %v332
    %v1248 = vunpack.c.l.b16 %v333
    %v1249 = vunpack.c.h.b16 %v333
    %v1250 = vunpack.c.l.b16 %v334
    %v1251 = vunpack.c.h.b16 %v334
    %v1252 = vunpack.c.l.b16 %v335
    %v1253 = vunpack.c.h.b16 %v335
    %v1254 = vunpack.c.l.b16 %v336
    %v1255 = vunpack.c.h.b16 %v336
    %v1256 = vunpack.c.l.b16 %v337
    %v1257 = vunpack.c.h.b16 %v337
    %v1258 = vunpack.c.l.b16 %v338
    %v1259 = vunpack.c.h.b16 %v338
    %v1260 = vunpack.c.l.b16 %v339
    %v1261 = vunpack.c.h.b16 %v339
    %v1262 = vunpack.c.l.b16 %v340
    %v1263 = vunpack.c.h.b16 %v340
    %v1264 = vunpack.c.l.b16 %v341
    %v1265 = vunpack.c.h.b16 %v341
    %v1266 = vunpack.c.l.b16 %v342
    %v1267 = vunpack.c.h.b16 %v342
    %v1268 = vunpack.c.l.b16 %v343
    %v1269 = vunpack.c.h.b16 %v343
    %v1270 = vunpack.c.l.b16 %v344
    %v1271 = vunpack.c.h.b16 %v344
    %v1272 = vunpack.c.l.b16 %v345
    %v1273 = vunpack.c.h.b16 %v345
    %v1274 = vunpack.c.l.b16 %v346
    %v1275 = vunpack.c.h.b16 %v346
    %v1276 = vunpack.c.l.b16 %v347
    %v1277 = vunpack.c.h.b16 %v347
    %v1278 = vunpack.c.l.b16 %v348
    %v1279 = vunpack.c.h.b16 %v348
    %v1280 = vunpack.c.l.b16 %v349
    %v1281 = vunpack.c.h.b16 %v349
    %v1282 = vunpack.c.l.b16 %v350
    %v1283 = vunpack.c.h.b16 %v350
    %v1284 = vunpack.c.l.b16 %v351
    %v1285 = vunpack.c.h.b16 %v351
    %v1286 = vunpack.c.l.b16 %v352
    %v1287 = vunpack.c.h.b16 %v352
    %v1288 = vunpack.c.l.b16 %v353
    %v1289 = vunpack.c.h.b16 %v353
    %v1290 = vunpack.c.l.b16 %v354
    %v1291 = vunpack.c.h.b16 %v354
    %v1292 = vunpack.c.l.b16 %v355
    %v1293 = vunpack.c.h.b16 %v355
    %v1294 = vunpack.c.l.b16 %v356
    %v1295 = vunpack.c.h.b16 %v356
    %v1296 = vunpack.c.l.b16 %v357
    %v1297 = vunpack.c.h.b16 %v357
    %v1298 = vunpack.c.l.b16 %v358
    %v1299 = vunpack.c.h.b16 %v358
    %v1300 = vunpack.c.l.b16 %v359
    %v1301 = vunpack.c.h.b16 %v359
    %v1302 = vunpack.c.l.b16 %v360
    %v1303 = vunpack.c.h.b16 %v360
    %v1304 = vunpack.c.l.b16 %v361
    %v1305 = vunpack.c.h.b16 %v361
    %v1306 = vunpack.c.l.b16 %v362
    %v1307 = vunpack.c.h.b16 %v362
    %v1308 = vunpack.c.l.b16 %v363
    %v1309 = vunpack.c.h.b16 %v363
    %v1310 = vunpack.c.l.b16 %v364
    %v1311 = vunpack.c.h.b16 %v364
    %v1312 = vunpack.c.l.b16 %v365
    %v1313 = vunpack.c.h.b16 %v365
    %v1314 = vunpack.c.l.b16 %v366
    %v1315 = vunpack.c.h.b16 %v366
    %v1316 = vunpack.c.l.b16 %v367
    %v1317 = vunpack.c.h.b16 %v367
    %v1318 = vunpack.c.l.b16 %v368
    %v1319 = vunpack.c.h.b16 %v368
    %v1320 = vunpack.c.l.b16 %v369
    %v1321 = vunpack.c.h.b16 %v369
    %v1322 = vunpack.c.l.b16 %v370
    %v1323 = vunpack.c.h.b16 %v370
    %v1324 = vunpack.c.l.b16 %v371
    %v1325 = vunpack.c.h.b16 %v371
    %v1326 = vunpack.c.l.b16 %v372
    %v1327 = vunpack.c.h.b16 %v372
    %v1328 = vunpack.c.l.b16 %v373
    %v1329 = vunpack.c.h.b16 %v373
    %v1330 = vunpack.c.l.b16 %v374
    %v1331 = vunpack.c.h.b16 %v374
    %v1332 = vunpack.c.l.b16 %v375
    %v1333 = vunpack.c.h.b16 %v375
    %v1334 = vunpack.c.l.b16 %v376
    %v1335 = vunpack.c.h.b16 %v376
    %v1336 = vunpack.c.l.b16 %v377
    %v1337 = vunpack.c.h.b16 %v377
    %v1338 = vunpack.c.l.b16 %v378
    %v1339 = vunpack.c.h.b16 %v378
    %v1340 = vunpack.c.l.b16 %v379
    %v1341 = vunpack.c.h.b16 %v379
    %v1342 = vunpack.c.l.b16 %v380
    %v1343 = vunpack.c.h.b16 %v380
    %v1344 = vunpack.c.l.b16 %v381
    %v1345 = vunpack.c.h.b16 %v381
    %v1346 = vunpack.c.l.b16 %v382
    %v1347 = vunpack.c.h.b16 %v382
    %v1348 = vunpack.c.l.b16 %v383
    %v1349 = vunpack.c.h.b16 %v383
    %v1350 = vunpack.c.l.b16 %v384
    %v1351 = vunpack.c.h.b16 %v384
    %v1352 = vunpack.c.l.b16 %v385
    %v1353 = vunpack.c.h.b16 %v385
    %v1354 = vunpack.c.l.b16 %v386
    %v1355 = vunpack.c.h.b16 %v386
    %v1356 = vunpack.c.l.b16 %v387
    %v1357 = vunpack.c.h.b16 %v387
    %v1358 = vunpack.c.l.b16 %v388
    %v1359 = vunpack.c.h.b16 %v388
    %v1360 = vunpack.c.l.b16 %v389
    %v1361 = vunpack.c.h.b16 %v389
    %v1362 = vunpack.c.l.b16 %v390
    %v1363 = vunpack.c.h.b16 %v390
    %v1364 = vunpack.c.l.b16 %v391
    %v1365 = vunpack.c.h.b16 %v391
    %v1366 = vunpack.c.l.b16 %v392
    %v1367 = vunpack.c.h.b16 %v392
    %v1368 = vunpack.c.l.b16 %v393
    %v1369 = vunpack.c.h.b16 %v393
    %v1370 = vunpack.c.l.b16 %v394
    %v1371 = vunpack.c.h.b16 %v394
    %v1372 = vunpack.c.l.b16 %v395
    %v1373 = vunpack.c.h.b16 %v395
    %v1374 = vunpack.c.l.b16 %v396
    %v1375 = vunpack.c.h.b16 %v396
    %v1376 = vunpack.c.l.b16 %v397
    %v1377 = vunpack.c.h.b16 %v397
    %v1378 = vunpack.c.l.b16 %v398
    %v1379 = vunpack.c.h.b16 %v398
    %v1380 = vunpack.c.l.b16 %v399
    %v1381 = vunpack.c.h.b16 %v399
    %v1382 = vpack.c.b16 %v738, %v734
    %v1383 = vpack.c.b16 %v739, %v735
    %v1384 = vpack.c.b16 %v740, %v736
    %v1385 = vpack.c.b16 %v741, %v737
    %v1386 = vpack.c.b16 %v746, %v742
    %v1387 = vpack.c.b16 %v747, %v743
    %v1388 = vpack.c.b16 %v748, %v744
    %v1389 = vpack.c.b16 %v749, %v745
    %v1390 = vpack.c.b16 %v754, %v750
    %v1391 = vpack.c.b16 %v755, %v751
    %v1392 = vpack.c.b16 %v756, %v752
    %v1393 = vpack.c.b16 %v757, %v753
    %v1394 = vpack.c.b16 %v762, %v758
    %v1395 = vpack.c.b16 %v763, %v759
    %v1396 = vpack.c.b16 %v764, %v760
    %v1397 = vpack.c.b16 %v765, %v761
    %v1398 = vpack.c.b16 %v770, %v766
    %v1399 = vpack.c.b16 %v771, %v767
    %v1400 = vpack.c.b16 %v772, %v768
    %v1401 = vpack.c.b16 %v773, %v769
    %v1402 = vpack.c.b16 %v778, %v774
    %v1403 = vpack.c.b16 %v779, %v775
    %v1404 = vpack.c.b16 %v780, %v776
    %v1405 = vpack.c.b16 %v781, %v777
    %v1406 = vpack.c.b16 %v786, %v782
    %v1407 = vpack.c.b16 %v787, %v783
    %v1408 = vpack.c.b16 %v788, %v784
    %v1409 = vpack.c.b16 %v789, %v785
    %v1410 = vpack.c.b16 %v794, %v790
    %v1411 = vpack.c.b16 %v795, %v791
    %v1412 = vpack.c.b16 %v796, %v792
    %v1413 = vpack.c.b16 %v797, %v793
    %v1414 = vpack.c.b16 %v802, %v798
    %v1415 = vpack.c.b16 %v803, %v799
    %v1416 = vpack.c.b16 %v804, %v800
    %v1417 = vpack.c.b16 %v805, %v801
    %v1418 = vpack.c.b16 %v810, %v806
    %v1419 = vpack.c.b16 %v811, %v807
    %v1420 = vpack.c.b16 %v812, %v808
    %v1421 = vpack.c.b16 %v813, %v809
    %v1422 = vpack.c.b16 %v818, %v814
    %v1423 = vpack.c.b16 %v819, %v815
    %v1424 = vpack.c.b16 %v820, %v816
    %v1425 = vpack.c.b16 %v821, %v817
    %v1426 = vpack.c.b16 %v826, %v822
    %v1427 = vpack.c.b16 %v827, %v823
    %v1428 = vpack.c.b16 %v828, %v824
    %v1429 = vpack.c.b16 %v829, %v825
    %v1430 = vpack.c.b16 %v834, %v830
    %v1431 = vpack.c.b16 %v835, %v831
    %v1432 = vpack.c.b16 %v836, %v832
    %v1433 = vpack.c.b16 %v837, %v833
    %v1434 = vpack.c.b16 %v842, %v838
    %v1435 = vpack.c.b16 %v843, %v839
    %v1436 = vpack.c.b16 %v844, %v840
    %v1437 = vpack.c.b16 %v845, %v841
    %v1438 = vpack.c.b16 %v850, %v846
    %v1439 = vpack.c.b16 %v851, %v847
    %v1440 = vpack.c.b16 %v852, %v848
    %v1441 = vpack.c.b16 %v853, %v849
    %v1442 = vpack.c.b16 %v858, %v854
    %v1443 = vpack.c.b16 %v859, %v855
    %v1444 = vpack.c.b16 %v860, %v856
    %v1445 = vpack.c.b16 %v861, %v857
    %v1446 = vpack.c.b16 %v866, %v862
    %v1447 = vpack.c.b16 %v867, %v863
    %v1448 = vpack.c.b16 %v868, %v864
    %v1449 = vpack.c.b16 %v869, %v865
    %v1450 = vpack.c.b16 %v874, %v870
    %v1451 = vpack.c.b16 %v875, %v871
    %v1452 = vpack.c.b16 %v876, %v872
    %v1453 = vpack.c.b16 %v877, %v873
    %v1454 = vpack.c.b16 %v882, %v878
    %v1455 = vpack.c.b16 %v883, %v879
    %v1456 = vpack.c.b16 %v884, %v880
    %v1457 = vpack.c.b16 %v885, %v881
    %v1458 = vpack.c.b16 %v890, %v886
    %v1459 = vpack.c.b16 %v891, %v887
    %v1460 = vpack.c.b16 %v892, %v888
    %v1461 = vpack.c.b16 %v893, %v889
    %v1462 = vpack.c.b16 %v898, %v894
    %v1463 = vpack.c.b16 %v899, %v895
    %v1464 = vpack.c.b16 %v900, %v896
    %v1465 = vpack.c.b16 %v901, %v897
    %v1466 = vpack.c.b16 %v906, %v902
    %v1467 = vpack.c.b16 %v907, %v903
    %v1468 = vpack.c.b16 %v908, %v904
    %v1469 = vpack.c.b16 %v909, %v905
    %v1470 = vpack.c.b16 %v914, %v910
    %v1471 = vpack.c.b16 %v915, %v911
    %v1472 = vpack.c.b16 %v916, %v912
    %v1473 = vpack.c.b16 %v917, %v913
    %v1474 = vpack.c.b16 %v922, %v918
    %v1475 = vpack.c.b16 %v923, %v919
    %v1476 = vpack.c.b16 %v924, %v920
    %v1477 = vpack.c.b16 %v925, %v921
    %v1478 = vpack.c.b16 %v930, %v926
    %v1479 = vpack.c.b16 %v931, %v927
    %v1480 = vpack.c.b16 %v932, %v928
    %v1481 = vpack.c.b16 %v933, %v929
    %v1482 = vpack.c.b16 %v938, %v934
    %v1483 = vpack.c.b16 %v939, %v935
    %v1484 = vpack.c.b16 %v940, %v936
    %v1485 = vpack.c.b16 %v941, %v937
    %v1486 = vpack.c.b16 %v946, %v942
    %v1487 = vpack.c.b16 %v947, %v943
    %v1488 = vpack.c.b16 %v948, %v944
    %v1489 = vpack.c.b16 %v949, %v945
    %v1490 = vpack.c.b16 %v954, %v950
    %v1491 = vpack.c.b16 %v955, %v951
    %v1492 = vpack.c.b16 %v956, %v952
    %v1493 = vpack.c.b16 %v957, %v953
    %v1494 = vpack.c.b16 %v962, %v958
    %v1495 = vpack.c.b16 %v963, %v959
    %v1496 = vpack.c.b16 %v964, %v960
    %v1497 = vpack.c.b16 %v965, %v961
    %v1498 = vpack.c.b16 %v970, %v966
    %v1499 = vpack.c.b16 %v971, %v967
    %v1500 = vpack.c.b16 %v972, %v968
    %v1501 = vpack.c.b16 %v973, %v969
    %v1502 = vpack.c.b16 %v978, %v974
    %v1503 = vpack.c.b16 %v979, %v975
    %v1504 = vpack.c.b16 %v980, %v976
    %v1505 = vpack.c.b16 %v981, %v977
    %v1506 = vpack.c.b16 %v986, %v982
    %v1507 = vpack.c.b16 %v987, %v983
    %v1508 = vpack.c.b16 %v988, %v984
    %v1509 = vpack.c.b16 %v989, %v985
    %v1510 = vpack.c.b16 %v994, %v990
    %v1511 = vpack.c.b16 %v995, %v991
    %v1512 = vpack.c.b16 %v996, %v992
    %v1513 = vpack.c.b16 %v997, %v993
    %v1514 = vpack.c.b16 %v1002, %v998
    %v1515 = vpack.c.b16 %v1003, %v999
    %v1516 = vpack.c.b16 %v1004, %v1000
    %v1517 = vpack.c.b16 %v1005, %v1001
    %v1518 = vpack.c.b16 %v1010, %v1006
    %v1519 = vpack.c.b16 %v1011, %v1007
    %v1520 = vpack.c.b16 %v1012, %v1008
    %v1521 = vpack.c.b16 %v1013, %v1009
    %v1522 = vpack.c.b16 %v1018, %v1014
    %v1523 = vpack.c.b16 %v1019, %v1015
    %v1524 = vpack.c.b16 %v1020, %v1016
    %v1525 = vpack.c.b16 %v1021, %v1017
    %v1526 = vpack.c.b16 %v1026, %v1022
    %v1527 = vpack.c.b16 %v1027, %v1023
    %v1528 = vpack.c.b16 %v1028, %v1024
    %v1529 = vpack.c.b16 %v1029, %v1025
    %v1530 = vpack.c.b16 %v1034, %v1030
    %v1531 = vpack.c.b16 %v1035, %v1031
    %v1532 = vpack.c.b16 %v1036, %v1032
    %v1533 = vpack.c.b16 %v1037, %v1033
    %v1534 = vpack.c.b16 %v1042, %v1038
    %v1535 = vpack.c.b16 %v1043, %v1039
    %v1536 = vpack.c.b16 %v1044, %v1040
    %v1537 = vpack.c.b16 %v1045, %v1041
    %v1538 = vpack.c.b16 %v1050, %v1046
    %v1539 = vpack.c.b16 %v1051, %v1047
    %v1540 = vpack.c.b16 %v1052, %v1048
    %v1541 = vpack.c.b16 %v1053, %v1049
    %v1542 = vpack.c.b16 %v1058, %v1054
    %v1543 = vpack.c.b16 %v1059, %v1055
    %v1544 = vpack.c.b16 %v1060, %v1056
    %v1545 = vpack.c.b16 %v1061, %v1057
    %v1546 = vpack.c.b16 %v1066, %v1062
    %v1547 = vpack.c.b16 %v1067, %v1063
    %v1548 = vpack.c.b16 %v1068, %v1064
    %v1549 = vpack.c.b16 %v1069, %v1065
    %v1550 = vpack.c.b16 %v1074, %v1070
    %v1551 = vpack.c.b16 %v1075, %v1071
    %v1552 = vpack.c.b16 %v1076, %v1072
    %v1553 = vpack.c.b16 %v1077, %v1073
    %v1554 = vpack.c.b16 %v1082, %v1078
    %v1555 = vpack.c.b16 %v1083, %v1079
    %v1556 = vpack.c.b16 %v1084, %v1080
    %v1557 = vpack.c.b16 %v1085, %v1081
    %v1558 = vpack.c.b16 %v1090, %v1086
    %v1559 = vpack.c.b16 %v1091, %v1087
    %v1560 = vpack.c.b16 %v1092, %v1088
    %v1561 = vpack.c.b16 %v1093, %v1089
    %v1562 = vpack.c.b16 %v1098, %v1094
    %v1563 = vpack.c.b16 %v1099, %v1095
    %v1564 = vpack.c.b16 %v1100, %v1096
    %v1565 = vpack.c.b16 %v1101, %v1097
    %v1566 = vpack.c.b16 %v1106, %v1102
    %v1567 = vpack.c.b16 %v1107, %v1103
    %v1568 = vpack.c.b16 %v1108, %v1104
    %v1569 = vpack.c.b16 %v1109, %v1105
    %v1570 = vpack.c.b16 %v1114, %v1110
    %v1571 = vpack.c.b16 %v1115, %v1111
    %v1572 = vpack.c.b16 %v1116, %v1112
    %v1573 = vpack.c.b16 %v1117, %v1113
    %v1574 = vpack.c.b16 %v1122, %v1118
    %v1575 = vpack.c.b16 %v1123, %v1119
    %v1576 = vpack.c.b16 %v1124, %v1120
    %v1577 = vpack.c.b16 %v1125, %v1121
    %v1578 = vpack.c.b16 %v1130, %v1126
    %v1579 = vpack.c.b16 %v1131, %v1127
    %v1580 = vpack.c.b16 %v1132, %v1128
    %v1581 = vpack.c.b16 %v1133, %v1129
    %v1582 = vpack.c.b16 %v1138, %v1134
    %v1583 = vpack.c.b16 %v1139, %v1135
    %v1584 = vpack.c.b16 %v1140, %v1136
    %v1585 = vpack.c.b16 %v1141, %v1137
    %v1586 = vpack.c.b16 %v1146, %v1142
    %v1587 = vpack.c.b16 %v1147, %v1143
    %v1588 = vpack.c.b16 %v1148, %v1144
    %v1589 = vpack.c.b16 %v1149, %v1145
    %v1590 = vpack.c.b16 %v1154, %v1150
    %v1591 = vpack.c.b16 %v1155, %v1151
    %v1592 = vpack.c.b16 %v1156, %v1152
    %v1593 = vpack.c.b16 %v1157, %v1153
    %v1594 = vpack.c.b16 %v1162, %v1158
    %v1595 = vpack.c.b16 %v1163, %v1159
    %v1596 = vpack.c.b16 %v1164, %v1160
    %v1597 = vpack.c.b16 %v1165, %v1161
    %v1598 = vpack.c.b16 %v1170, %v1166
    %v1599 = vpack.c.b16 %v1171, %v1167
    %v1600 = vpack.c.b16 %v1172, %v1168
    %v1601 = vpack.c.b16 %v1173, %v1169
    %v1602 = vpack.c.b16 %v1178, %v1174
    %v1603 = vpack.c.b16 %v1179, %v1175
    %v1604 = vpack.c.b16 %v1180, %v1176
    %v1605 = vpack.c.b16 %v1181, %v1177
    %v1606 = vpack.c.b16 %v1186, %v1182
    %v1607 = vpack.c.b16 %v1187, %v1183
    %v1608 = vpack.c.b16 %v1188, %v1184
    %v1609 = vpack.c.b16 %v1189, %v1185
    %v1610 = vpack.c.b16 %v1194, %v1190
    %v1611 = vpack.c.b16 %v1195, %v1191
    %v1612 = vpack.c.b16 %v1196, %v1192
    %v1613 = vpack.c.b16 %v1197, %v1193
    %v1614 = vpack.c.b16 %v1202, %v1198
    %v1615 = vpack.c.b16 %v1203, %v1199
    %v1616 = vpack.c.b16 %v1204, %v1200
    %v1617 = vpack.c.b16 %v1205, %v1201
    %v1618 = vpack.c.b16 %v1210, %v1206
    %v1619 = vpack.c.b16 %v1211, %v1207
    %v1620 = vpack.c.b16 %v1212, %v1208
    %v1621 = vpack.c.b16 %v1213, %v1209
    %v1622 = vpack.c.b16 %v1218, %v1214
    %v1623 = vpack.c.b16 %v1219, %v1215
    %v1624 = vpack.c.b16 %v1220, %v1216
    %v1625 = vpack.c.b16 %v1221, %v1217
    %v1626 = vpack.c.b16 %v1226, %v1222
    %v1627 = vpack.c.b16 %v1227, %v1223
    %v1628 = vpack.c.b16 %v1228, %v1224
    %v1629 = vpack.c.b16 %v1229, %v1225
    %v1630 = vpack.c.b16 %v1234, %v1230
    %v1631 = vpack.c.b16 %v1235, %v1231
    %v1632 = vpack.c.b16 %v1236, %v1232
    %v1633 = vpack.c.b16 %v1237, %v1233
    %v1634 = vpack.c.b16 %v1242, %v1238
    %v1635 = vpack.c.b16 %v1243, %v1239
    %v1636 = vpack.c.b16 %v1244, %v1240
    %v1637 = vpack.c.b16 %v1245, %v1241
    %v1638 = vpack.c.b16 %v1250, %v1246
    %v1639 = vpack.c.b16 %v1251, %v1247
    %v1640 = vpack.c.b16 %v1252, %v1248
    %v1641 = vpack.c.b16 %v1253, %v1249
    %v1642 = vpack.c.b16 %v1258, %v1254
    %v1643 = vpack.c.b16 %v1259, %v1255
    %v1644 = vpack.c.b16 %v1260, %v1256
    %v1645 = vpack.c.b16 %v1261, %v1257
    %v1646 = vpack.c.b16 %v1266, %v1262
    %v1647 = vpack.c.b16 %v1267, %v1263
    %v1648 = vpack.c.b16 %v1268, %v1264
    %v1649 = vpack.c.b16 %v1269, %v1265
    %v1650 = vpack.c.b16 %v1274, %v1270
    %v1651 = vpack.c.b16 %v1275, %v1271
    %v1652 = vpack.c.b16 %v1276, %v1272
    %v1653 = vpack.c.b16 %v1277, %v1273
    %v1654 = vpack.c.b16 %v1282, %v1278
    %v1655 = vpack.c.b16 %v1283, %v1279
    %v1656 = vpack.c.b16 %v1284, %v1280
    %v1657 = vpack.c.b16 %v1285, %v1281
    %v1658 = vpack.c.b16 %v1290, %v1286
    %v1659 = vpack.c.b16 %v1291, %v1287
    %v1660 = vpack.c.b16 %v1292, %v1288
    %v1661 = vpack.c.b16 %v1293, %v1289
    %v1662 = vpack.c.b16 %v1298, %v1294
    %v1663 = vpack.c.b16 %v1299, %v1295
    %v1664 = vpack.c.b16 %v1300, %v1296
    %v1665 = vpack.c.b16 %v1301, %v1297
    %v1666 = vpack.c.b16 %v1306, %v1302
    %v1667 = vpack.c.b16 %v1307, %v1303
    %v1668 = vpack.c.b16 %v1308, %v1304
    %v1669 = vpack.c.b16 %v1309, %v1305
    %v1670 = vpack.c.b16 %v1314, %v1310
    %v1671 = vpack.c.b16 %v1315, %v1311
    %v1672 = vpack.c.b16 %v1316, %v1312
    %v1673 = vpack.c.b16 %v1317, %v1313
    %v1674 = vpack.c.b16 %v1322, %v1318
    %v1675 = vpack.c.b16 %v1323, %v1319
    %v1676 = vpack.c.b16 %v1324, %v1320
    %v1677 = vpack.c.b16 %v1325, %v1321
    %v1678 = vpack.c.b16 %v1330, %v1326
    %v1679 = vpack.c.b16 %v1331, %v1327
    %v1680 = vpack.c.b16 %v1332, %v1328
    %v1681 = vpack.c.b16 %v1333, %v1329
    %v1682 = vpack.c.b16 %v1338, %v1334
    %v1683 = vpack.c.b16 %v1339, %v1335
    %v1684 = vpack.c.b16 %v1340, %v1336
    %v1685 = vpack.c.b16 %v1341, %v1337
    %v1686 = vpack.c.b16 %v1346, %v1342
    %v1687 = vpack.c.b16 %v1347, %v1343
    %v1688 = vpack.c.b16 %v1348, %v1344
    %v1689 = vpack.c.b16 %v1349, %v1345
    %v1690 = vpack.c.b16 %v1354, %v1350
    %v1691 = vpack.c.b16 %v1355, %v1351
    %v1692 = vpack.c.b16 %v1356, %v1352
    %v1693 = vpack.c.b16 %v1357, %v1353
    %v1694 = vpack.c.b16 %v1362, %v1358
    %v1695 = vpack.c.b16 %v1363, %v1359
    %v1696 = vpack.c.b16 %v1364, %v1360
    %v1697 = vpack.c.b16 %v1365, %v1361
    %v1698 = vpack.c.b16 %v1370, %v1366
    %v1699 = vpack.c.b16 %v1371, %v1367
    %v1700 = vpack.c.b16 %v1372, %v1368
    %v1701 = vpack.c.b16 %v1373, %v1369
    %v1702 = vpack.c.b16 %v1378, %v1374
    %v1703 = vpack.c.b16 %v1379, %v1375
    %v1704 = vpack.c.b16 %v1380, %v1376
    %v1705 = vpack.c.b16 %v1381, %v1377
    %vm2030 = vcmask 130048
    %v2032 = vsel %vm2030, %v75, 0
    %2034 = vmatpush.bf16.msra.mxu0 %v1410
    %2035 = vmatpush.bf16.msra.mxu0 %v1406
    %2036 = vmatpush.bf16.msra.mxu0 %v1402
    %2037 = vmatpush.bf16.msra.mxu0 %v1398
    %2038 = vmatpush.bf16.msra.mxu0 %v1394
    %2039 = vmatpush.bf16.msra.mxu0 %v1390
    %2040 = vmatpush.bf16.msra.mxu0 %v1386
    %2041 = vmatpush.bf16.msra.mxu0 %v1382
    %2042 = vmatmul.bf16.gmra.mxu0 %v65
    %v2043 = vpop.f32.mrf.mxu0
    %v2044 = vadd.f32 %v402, %v2043
    %v2045 = vpop.f32.mrf.mxu0
    %2046 = vdwg.mxu0
    %2047 = vmatpush.bf16.msra.mxu0 %v1442
    %2048 = vmatpush.bf16.msra.mxu0 %v1438
    %2049 = vmatpush.bf16.msra.mxu0 %v1434
    %2050 = vmatpush.bf16.msra.mxu0 %v1430
    %2051 = vmatpush.bf16.msra.mxu0 %v1426
    %2052 = vmatpush.bf16.msra.mxu0 %v1422
    %2053 = vmatpush.bf16.msra.mxu0 %v1418
    %2054 = vmatpush.bf16.msra.mxu0 %v1414
    %2055 = vmatmul.bf16.gmra.mxu0 %v66
    %v2056 = vpop.f32.mrf.mxu0
    %v2057 = vadd.f32 %v2044, %v2056
    %v2058 = vpop.f32.mrf.mxu0
    %2059 = vdwg.mxu0
    %2060 = vmatpush.bf16.msra.mxu0 %v1474
    %2061 = vmatpush.bf16.msra.mxu0 %v1470
    %2062 = vmatpush.bf16.msra.mxu0 %v1466
    %2063 = vmatpush.bf16.msra.mxu0 %v1462
    %2064 = vmatpush.bf16.msra.mxu0 %v1458
    %2065 = vmatpush.bf16.msra.mxu0 %v1454
    %2066 = vmatpush.bf16.msra.mxu0 %v1450
    %2067 = vmatpush.bf16.msra.mxu0 %v1446
    %2068 = vmatmul.bf16.gmra.mxu0 %v67
    %v2069 = vpop.f32.mrf.mxu0
    %v2070 = vadd.f32 %v2057, %v2069
    %v2071 = vpop.f32.mrf.mxu0
    %2072 = vdwg.mxu0
    %2073 = vmatpush.bf16.msra.mxu0 %v1506
    %2074 = vmatpush.bf16.msra.mxu0 %v1502
    %2075 = vmatpush.bf16.msra.mxu0 %v1498
    %2076 = vmatpush.bf16.msra.mxu0 %v1494
    %2077 = vmatpush.bf16.msra.mxu0 %v1490
    %2078 = vmatpush.bf16.msra.mxu0 %v1486
    %2079 = vmatpush.bf16.msra.mxu0 %v1482
    %2080 = vmatpush.bf16.msra.mxu0 %v1478
    %2081 = vmatmul.bf16.gmra.mxu0 %v68
    %v2082 = vpop.f32.mrf.mxu0
    %v2083 = vadd.f32 %v2070, %v2082
    %v2084 = vpop.f32.mrf.mxu0
    %2085 = vdwg.mxu0
    %2086 = vmatpush.bf16.msra.mxu0 %v1538
    %2087 = vmatpush.bf16.msra.mxu0 %v1534
    %2088 = vmatpush.bf16.msra.mxu0 %v1530
    %2089 = vmatpush.bf16.msra.mxu0 %v1526
    %2090 = vmatpush.bf16.msra.mxu0 %v1522
    %2091 = vmatpush.bf16.msra.mxu0 %v1518
    %2092 = vmatpush.bf16.msra.mxu0 %v1514
    %2093 = vmatpush.bf16.msra.mxu0 %v1510
    %2094 = vmatmul.bf16.gmra.mxu0 %v69
    %v2095 = vpop.f32.mrf.mxu0
    %v2096 = vadd.f32 %v2083, %v2095
    %v2097 = vpop.f32.mrf.mxu0
    %2098 = vdwg.mxu0
    %2099 = vmatpush.bf16.msra.mxu0 %v1570
    %2100 = vmatpush.bf16.msra.mxu0 %v1566
    %2101 = vmatpush.bf16.msra.mxu0 %v1562
    %2102 = vmatpush.bf16.msra.mxu0 %v1558
    %2103 = vmatpush.bf16.msra.mxu0 %v1554
    %2104 = vmatpush.bf16.msra.mxu0 %v1550
    %2105 = vmatpush.bf16.msra.mxu0 %v1546
    %2106 = vmatpush.bf16.msra.mxu0 %v1542
    %2107 = vmatmul.bf16.gmra.mxu0 %v70
    %v2108 = vpop.f32.mrf.mxu0
    %v2109 = vadd.f32 %v2096, %v2108
    %v2110 = vpop.f32.mrf.mxu0
    %2111 = vdwg.mxu0
    %2112 = vmatpush.bf16.msra.mxu0 %v1602
    %2113 = vmatpush.bf16.msra.mxu0 %v1598
    %2114 = vmatpush.bf16.msra.mxu0 %v1594
    %2115 = vmatpush.bf16.msra.mxu0 %v1590
    %2116 = vmatpush.bf16.msra.mxu0 %v1586
    %2117 = vmatpush.bf16.msra.mxu0 %v1582
    %2118 = vmatpush.bf16.msra.mxu0 %v1578
    %2119 = vmatpush.bf16.msra.mxu0 %v1574
    %2120 = vmatmul.bf16.gmra.mxu0 %v71
    %v2121 = vpop.f32.mrf.mxu0
    %v2122 = vadd.f32 %v2109, %v2121
    %v2123 = vpop.f32.mrf.mxu0
    %2124 = vdwg.mxu0
    %2125 = vmatpush.bf16.msra.mxu0 %v1634
    %2126 = vmatpush.bf16.msra.mxu0 %v1630
    %2127 = vmatpush.bf16.msra.mxu0 %v1626
    %2128 = vmatpush.bf16.msra.mxu0 %v1622
    %2129 = vmatpush.bf16.msra.mxu0 %v1618
    %2130 = vmatpush.bf16.msra.mxu0 %v1614
    %2131 = vmatpush.bf16.msra.mxu0 %v1610
    %2132 = vmatpush.bf16.msra.mxu0 %v1606
    %2133 = vmatmul.bf16.gmra.mxu0 %v72
    %v2134 = vpop.f32.mrf.mxu0
    %v2135 = vadd.f32 %v2122, %v2134
    %v2136 = vpop.f32.mrf.mxu0
    %2137 = vdwg.mxu0
    %2138 = vmatpush.bf16.msra.mxu0 %v1666
    %2139 = vmatpush.bf16.msra.mxu0 %v1662
    %2140 = vmatpush.bf16.msra.mxu0 %v1658
    %2141 = vmatpush.bf16.msra.mxu0 %v1654
    %2142 = vmatpush.bf16.msra.mxu0 %v1650
    %2143 = vmatpush.bf16.msra.mxu0 %v1646
    %2144 = vmatpush.bf16.msra.mxu0 %v1642
    %2145 = vmatpush.bf16.msra.mxu0 %v1638
    %2146 = vmatmul.bf16.gmra.mxu0 %v73
    %v2147 = vpop.f32.mrf.mxu0
    %v2148 = vadd.f32 %v2135, %v2147
    %v2149 = vpop.f32.mrf.mxu0
    %2150 = vdwg.mxu0
    %2151 = vmatpush.bf16.msra.mxu0 %v1698
    %2152 = vmatpush.bf16.msra.mxu0 %v1694
    %2153 = vmatpush.bf16.msra.mxu0 %v1690
    %2154 = vmatpush.bf16.msra.mxu0 %v1686
    %2155 = vmatpush.bf16.msra.mxu0 %v1682
    %2156 = vmatpush.bf16.msra.mxu0 %v1678
    %2157 = vmatpush.bf16.msra.mxu0 %v1674
    %2158 = vmatpush.bf16.msra.mxu0 %v1670
    %2159 = vmatmul.bf16.gmra.mxu0 %v74
    %v2160 = vpop.f32.mrf.mxu0
    %v2161 = vadd.f32 %v2148, %v2160
    %v2162 = vpop.f32.mrf.mxu0
    %2163 = vdwg.mxu0
    %2164 = vmatpush.bf16.msra.mxu0 0
    %2165 = vmatpush.bf16.msra.mxu0 0
    %2166 = vmatpush.bf16.msra.mxu0 0
    %2167 = vmatpush.bf16.msra.mxu0 0
    %2168 = vmatpush.bf16.msra.mxu0 0
    %2169 = vmatpush.bf16.msra.mxu0 0
    %2170 = vmatpush.bf16.msra.mxu0 0
    %2171 = vmatpush.bf16.msra.mxu0 %v1702
    %2172 = vmatmul.bf16.gmra.mxu0 %v2032
    %v2173 = vpop.f32.mrf.mxu0
    %v2174 = vadd.f32 %v2161, %v2173
    %v2175 = vpop.f32.mrf.mxu0
    %2176 = vdwg.mxu0
    %2177 = vmatpush.bf16.msra.mxu0 %v1411
    %2178 = vmatpush.bf16.msra.mxu0 %v1407
    %2179 = vmatpush.bf16.msra.mxu0 %v1403
    %2180 = vmatpush.bf16.msra.mxu0 %v1399
    %2181 = vmatpush.bf16.msra.mxu0 %v1395
    %2182 = vmatpush.bf16.msra.mxu0 %v1391
    %2183 = vmatpush.bf16.msra.mxu0 %v1387
    %2184 = vmatpush.bf16.msra.mxu0 %v1383
    %2185 = vmatmul.bf16.gmra.mxu0 %v65
    %v2186 = vpop.f32.mrf.mxu0
    %v2187 = vadd.f32 %v403, %v2186
    %v2188 = vpop.f32.mrf.mxu0
    %2189 = vdwg.mxu0
    %2190 = vmatpush.bf16.msra.mxu0 %v1443
    %2191 = vmatpush.bf16.msra.mxu0 %v1439
    %2192 = vmatpush.bf16.msra.mxu0 %v1435
    %2193 = vmatpush.bf16.msra.mxu0 %v1431
    %2194 = vmatpush.bf16.msra.mxu0 %v1427
    %2195 = vmatpush.bf16.msra.mxu0 %v1423
    %2196 = vmatpush.bf16.msra.mxu0 %v1419
    %2197 = vmatpush.bf16.msra.mxu0 %v1415
    %2198 = vmatmul.bf16.gmra.mxu0 %v66
    %v2199 = vpop.f32.mrf.mxu0
    %v2200 = vadd.f32 %v2187, %v2199
    %v2201 = vpop.f32.mrf.mxu0
    %2202 = vdwg.mxu0
    %2203 = vmatpush.bf16.msra.mxu0 %v1475
    %2204 = vmatpush.bf16.msra.mxu0 %v1471
    %2205 = vmatpush.bf16.msra.mxu0 %v1467
    %2206 = vmatpush.bf16.msra.mxu0 %v1463
    %2207 = vmatpush.bf16.msra.mxu0 %v1459
    %2208 = vmatpush.bf16.msra.mxu0 %v1455
    %2209 = vmatpush.bf16.msra.mxu0 %v1451
    %2210 = vmatpush.bf16.msra.mxu0 %v1447
    %2211 = vmatmul.bf16.gmra.mxu0 %v67
    %v2212 = vpop.f32.mrf.mxu0
    %v2213 = vadd.f32 %v2200, %v2212
    %v2214 = vpop.f32.mrf.mxu0
    %2215 = vdwg.mxu0
    %2216 = vmatpush.bf16.msra.mxu0 %v1507
    %2217 = vmatpush.bf16.msra.mxu0 %v1503
    %2218 = vmatpush.bf16.msra.mxu0 %v1499
    %2219 = vmatpush.bf16.msra.mxu0 %v1495
    %2220 = vmatpush.bf16.msra.mxu0 %v1491
    %2221 = vmatpush.bf16.msra.mxu0 %v1487
    %2222 = vmatpush.bf16.msra.mxu0 %v1483
    %2223 = vmatpush.bf16.msra.mxu0 %v1479
    %2224 = vmatmul.bf16.gmra.mxu0 %v68
    %v2225 = vpop.f32.mrf.mxu0
    %v2226 = vadd.f32 %v2213, %v2225
    %v2227 = vpop.f32.mrf.mxu0
    %2228 = vdwg.mxu0
    %2229 = vmatpush.bf16.msra.mxu0 %v1539
    %2230 = vmatpush.bf16.msra.mxu0 %v1535
    %2231 = vmatpush.bf16.msra.mxu0 %v1531
    %2232 = vmatpush.bf16.msra.mxu0 %v1527
    %2233 = vmatpush.bf16.msra.mxu0 %v1523
    %2234 = vmatpush.bf16.msra.mxu0 %v1519
    %2235 = vmatpush.bf16.msra.mxu0 %v1515
    %2236 = vmatpush.bf16.msra.mxu0 %v1511
    %2237 = vmatmul.bf16.gmra.mxu0 %v69
    %v2238 = vpop.f32.mrf.mxu0
    %v2239 = vadd.f32 %v2226, %v2238
    %v2240 = vpop.f32.mrf.mxu0
    %2241 = vdwg.mxu0
    %2242 = vmatpush.bf16.msra.mxu0 %v1571
    %2243 = vmatpush.bf16.msra.mxu0 %v1567
    %2244 = vmatpush.bf16.msra.mxu0 %v1563
    %2245 = vmatpush.bf16.msra.mxu0 %v1559
    %2246 = vmatpush.bf16.msra.mxu0 %v1555
    %2247 = vmatpush.bf16.msra.mxu0 %v1551
    %2248 = vmatpush.bf16.msra.mxu0 %v1547
    %2249 = vmatpush.bf16.msra.mxu0 %v1543
    %2250 = vmatmul.bf16.gmra.mxu0 %v70
    %v2251 = vpop.f32.mrf.mxu0
    %v2252 = vadd.f32 %v2239, %v2251
    %v2253 = vpop.f32.mrf.mxu0
    %2254 = vdwg.mxu0
    %2255 = vmatpush.bf16.msra.mxu0 %v1603
    %2256 = vmatpush.bf16.msra.mxu0 %v1599
    %2257 = vmatpush.bf16.msra.mxu0 %v1595
    %2258 = vmatpush.bf16.msra.mxu0 %v1591
    %2259 = vmatpush.bf16.msra.mxu0 %v1587
    %2260 = vmatpush.bf16.msra.mxu0 %v1583
    %2261 = vmatpush.bf16.msra.mxu0 %v1579
    %2262 = vmatpush.bf16.msra.mxu0 %v1575
    %2263 = vmatmul.bf16.gmra.mxu0 %v71
    %v2264 = vpop.f32.mrf.mxu0
    %v2265 = vadd.f32 %v2252, %v2264
    %v2266 = vpop.f32.mrf.mxu0
    %2267 = vdwg.mxu0
    %2268 = vmatpush.bf16.msra.mxu0 %v1635
    %2269 = vmatpush.bf16.msra.mxu0 %v1631
    %2270 = vmatpush.bf16.msra.mxu0 %v1627
    %2271 = vmatpush.bf16.msra.mxu0 %v1623
    %2272 = vmatpush.bf16.msra.mxu0 %v1619
    %2273 = vmatpush.bf16.msra.mxu0 %v1615
    %2274 = vmatpush.bf16.msra.mxu0 %v1611
    %2275 = vmatpush.bf16.msra.mxu0 %v1607
    %2276 = vmatmul.bf16.gmra.mxu0 %v72
    %v2277 = vpop.f32.mrf.mxu0
    %v2278 = vadd.f32 %v2265, %v2277
    %v2279 = vpop.f32.mrf.mxu0
    %2280 = vdwg.mxu0
    %2281 = vmatpush.bf16.msra.mxu0 %v1667
    %2282 = vmatpush.bf16.msra.mxu0 %v1663
    %2283 = vmatpush.bf16.msra.mxu0 %v1659
    %2284 = vmatpush.bf16.msra.mxu0 %v1655
    %2285 = vmatpush.bf16.msra.mxu0 %v1651
    %2286 = vmatpush.bf16.msra.mxu0 %v1647
    %2287 = vmatpush.bf16.msra.mxu0 %v1643
    %2288 = vmatpush.bf16.msra.mxu0 %v1639
    %2289 = vmatmul.bf16.gmra.mxu0 %v73
    %v2290 = vpop.f32.mrf.mxu0
    %v2291 = vadd.f32 %v2278, %v2290
    %v2292 = vpop.f32.mrf.mxu0
    %2293 = vdwg.mxu0
    %2294 = vmatpush.bf16.msra.mxu0 %v1699
    %2295 = vmatpush.bf16.msra.mxu0 %v1695
    %2296 = vmatpush.bf16.msra.mxu0 %v1691
    %2297 = vmatpush.bf16.msra.mxu0 %v1687
    %2298 = vmatpush.bf16.msra.mxu0 %v1683
    %2299 = vmatpush.bf16.msra.mxu0 %v1679
    %2300 = vmatpush.bf16.msra.mxu0 %v1675
    %2301 = vmatpush.bf16.msra.mxu0 %v1671
    %2302 = vmatmul.bf16.gmra.mxu0 %v74
    %v2303 = vpop.f32.mrf.mxu0
    %v2304 = vadd.f32 %v2291, %v2303
    %v2305 = vpop.f32.mrf.mxu0
    %2306 = vdwg.mxu0
    %2307 = vmatpush.bf16.msra.mxu0 0
    %2308 = vmatpush.bf16.msra.mxu0 0
    %2309 = vmatpush.bf16.msra.mxu0 0
    %2310 = vmatpush.bf16.msra.mxu0 0
    %2311 = vmatpush.bf16.msra.mxu0 0
    %2312 = vmatpush.bf16.msra.mxu0 0
    %2313 = vmatpush.bf16.msra.mxu0 0
    %2314 = vmatpush.bf16.msra.mxu0 %v1703
    %2315 = vmatmul.bf16.gmra.mxu0 %v2032
    %v2316 = vpop.f32.mrf.mxu0
    %v2317 = vadd.f32 %v2304, %v2316
    %v2318 = vpop.f32.mrf.mxu0
    %2319 = vdwg.mxu0
    %2320 = vmatpush.bf16.msra.mxu0 %v1412
    %2321 = vmatpush.bf16.msra.mxu0 %v1408
    %2322 = vmatpush.bf16.msra.mxu0 %v1404
    %2323 = vmatpush.bf16.msra.mxu0 %v1400
    %2324 = vmatpush.bf16.msra.mxu0 %v1396
    %2325 = vmatpush.bf16.msra.mxu0 %v1392
    %2326 = vmatpush.bf16.msra.mxu0 %v1388
    %2327 = vmatpush.bf16.msra.mxu0 %v1384
    %2328 = vmatmul.bf16.gmra.mxu0 %v65
    %v2329 = vpop.f32.mrf.mxu0
    %v2330 = vadd.f32 %v404, %v2329
    %v2331 = vpop.f32.mrf.mxu0
    %2332 = vdwg.mxu0
    %2333 = vmatpush.bf16.msra.mxu0 %v1444
    %2334 = vmatpush.bf16.msra.mxu0 %v1440
    %2335 = vmatpush.bf16.msra.mxu0 %v1436
    %2336 = vmatpush.bf16.msra.mxu0 %v1432
    %2337 = vmatpush.bf16.msra.mxu0 %v1428
    %2338 = vmatpush.bf16.msra.mxu0 %v1424
    %2339 = vmatpush.bf16.msra.mxu0 %v1420
    %2340 = vmatpush.bf16.msra.mxu0 %v1416
    %2341 = vmatmul.bf16.gmra.mxu0 %v66
    %v2342 = vpop.f32.mrf.mxu0
    %v2343 = vadd.f32 %v2330, %v2342
    %v2344 = vpop.f32.mrf.mxu0
    %2345 = vdwg.mxu0
    %2346 = vmatpush.bf16.msra.mxu0 %v1476
    %2347 = vmatpush.bf16.msra.mxu0 %v1472
    %2348 = vmatpush.bf16.msra.mxu0 %v1468
    %2349 = vmatpush.bf16.msra.mxu0 %v1464
    %2350 = vmatpush.bf16.msra.mxu0 %v1460
    %2351 = vmatpush.bf16.msra.mxu0 %v1456
    %2352 = vmatpush.bf16.msra.mxu0 %v1452
    %2353 = vmatpush.bf16.msra.mxu0 %v1448
    %2354 = vmatmul.bf16.gmra.mxu0 %v67
    %v2355 = vpop.f32.mrf.mxu0
    %v2356 = vadd.f32 %v2343, %v2355
    %v2357 = vpop.f32.mrf.mxu0
    %2358 = vdwg.mxu0
    %2359 = vmatpush.bf16.msra.mxu0 %v1508
    %2360 = vmatpush.bf16.msra.mxu0 %v1504
    %2361 = vmatpush.bf16.msra.mxu0 %v1500
    %2362 = vmatpush.bf16.msra.mxu0 %v1496
    %2363 = vmatpush.bf16.msra.mxu0 %v1492
    %2364 = vmatpush.bf16.msra.mxu0 %v1488
    %2365 = vmatpush.bf16.msra.mxu0 %v1484
    %2366 = vmatpush.bf16.msra.mxu0 %v1480
    %2367 = vmatmul.bf16.gmra.mxu0 %v68
    %v2368 = vpop.f32.mrf.mxu0
    %v2369 = vadd.f32 %v2356, %v2368
    %v2370 = vpop.f32.mrf.mxu0
    %2371 = vdwg.mxu0
    %2372 = vmatpush.bf16.msra.mxu0 %v1540
    %2373 = vmatpush.bf16.msra.mxu0 %v1536
    %2374 = vmatpush.bf16.msra.mxu0 %v1532
    %2375 = vmatpush.bf16.msra.mxu0 %v1528
    %2376 = vmatpush.bf16.msra.mxu0 %v1524
    %2377 = vmatpush.bf16.msra.mxu0 %v1520
    %2378 = vmatpush.bf16.msra.mxu0 %v1516
    %2379 = vmatpush.bf16.msra.mxu0 %v1512
    %2380 = vmatmul.bf16.gmra.mxu0 %v69
    %v2381 = vpop.f32.mrf.mxu0
    %v2382 = vadd.f32 %v2369, %v2381
    %v2383 = vpop.f32.mrf.mxu0
    %2384 = vdwg.mxu0
    %2385 = vmatpush.bf16.msra.mxu0 %v1572
    %2386 = vmatpush.bf16.msra.mxu0 %v1568
    %2387 = vmatpush.bf16.msra.mxu0 %v1564
    %2388 = vmatpush.bf16.msra.mxu0 %v1560
    %2389 = vmatpush.bf16.msra.mxu0 %v1556
    %2390 = vmatpush.bf16.msra.mxu0 %v1552
    %2391 = vmatpush.bf16.msra.mxu0 %v1548
    %2392 = vmatpush.bf16.msra.mxu0 %v1544
    %2393 = vmatmul.bf16.gmra.mxu0 %v70
    %v2394 = vpop.f32.mrf.mxu0
    %v2395 = vadd.f32 %v2382, %v2394
    %v2396 = vpop.f32.mrf.mxu0
    %2397 = vdwg.mxu0
    %2398 = vmatpush.bf16.msra.mxu0 %v1604
    %2399 = vmatpush.bf16.msra.mxu0 %v1600
    %2400 = vmatpush.bf16.msra.mxu0 %v1596
    %2401 = vmatpush.bf16.msra.mxu0 %v1592
    %2402 = vmatpush.bf16.msra.mxu0 %v1588
    %2403 = vmatpush.bf16.msra.mxu0 %v1584
    %2404 = vmatpush.bf16.msra.mxu0 %v1580
    %2405 = vmatpush.bf16.msra.mxu0 %v1576
    %2406 = vmatmul.bf16.gmra.mxu0 %v71
    %v2407 = vpop.f32.mrf.mxu0
    %v2408 = vadd.f32 %v2395, %v2407
    %v2409 = vpop.f32.mrf.mxu0
    %2410 = vdwg.mxu0
    %2411 = vmatpush.bf16.msra.mxu0 %v1636
    %2412 = vmatpush.bf16.msra.mxu0 %v1632
    %2413 = vmatpush.bf16.msra.mxu0 %v1628
    %2414 = vmatpush.bf16.msra.mxu0 %v1624
    %2415 = vmatpush.bf16.msra.mxu0 %v1620
    %2416 = vmatpush.bf16.msra.mxu0 %v1616
    %2417 = vmatpush.bf16.msra.mxu0 %v1612
    %2418 = vmatpush.bf16.msra.mxu0 %v1608
    %2419 = vmatmul.bf16.gmra.mxu0 %v72
    %v2420 = vpop.f32.mrf.mxu0
    %v2421 = vadd.f32 %v2408, %v2420
    %v2422 = vpop.f32.mrf.mxu0
    %2423 = vdwg.mxu0
    %2424 = vmatpush.bf16.msra.mxu0 %v1668
    %2425 = vmatpush.bf16.msra.mxu0 %v1664
    %2426 = vmatpush.bf16.msra.mxu0 %v1660
    %2427 = vmatpush.bf16.msra.mxu0 %v1656
    %2428 = vmatpush.bf16.msra.mxu0 %v1652
    %2429 = vmatpush.bf16.msra.mxu0 %v1648
    %2430 = vmatpush.bf16.msra.mxu0 %v1644
    %2431 = vmatpush.bf16.msra.mxu0 %v1640
    %2432 = vmatmul.bf16.gmra.mxu0 %v73
    %v2433 = vpop.f32.mrf.mxu0
    %v2434 = vadd.f32 %v2421, %v2433
    %v2435 = vpop.f32.mrf.mxu0
    %2436 = vdwg.mxu0
    %2437 = vmatpush.bf16.msra.mxu0 %v1700
    %2438 = vmatpush.bf16.msra.mxu0 %v1696
    %2439 = vmatpush.bf16.msra.mxu0 %v1692
    %2440 = vmatpush.bf16.msra.mxu0 %v1688
    %2441 = vmatpush.bf16.msra.mxu0 %v1684
    %2442 = vmatpush.bf16.msra.mxu0 %v1680
    %2443 = vmatpush.bf16.msra.mxu0 %v1676
    %2444 = vmatpush.bf16.msra.mxu0 %v1672
    %2445 = vmatmul.bf16.gmra.mxu0 %v74
    %v2446 = vpop.f32.mrf.mxu0
    %v2447 = vadd.f32 %v2434, %v2446
    %v2448 = vpop.f32.mrf.mxu0
    %2449 = vdwg.mxu0
    %2450 = vmatpush.bf16.msra.mxu0 0
    %2451 = vmatpush.bf16.msra.mxu0 0
    %2452 = vmatpush.bf16.msra.mxu0 0
    %2453 = vmatpush.bf16.msra.mxu0 0
    %2454 = vmatpush.bf16.msra.mxu0 0
    %2455 = vmatpush.bf16.msra.mxu0 0
    %2456 = vmatpush.bf16.msra.mxu0 0
    %2457 = vmatpush.bf16.msra.mxu0 %v1704
    %2458 = vmatmul.bf16.gmra.mxu0 %v2032
    %v2459 = vpop.f32.mrf.mxu0
    %v2460 = vadd.f32 %v2447, %v2459
    %v2461 = vpop.f32.mrf.mxu0
    %2462 = vdwg.mxu0
    %2463 = vmatpush.bf16.msra.mxu0 %v1413
    %2464 = vmatpush.bf16.msra.mxu0 %v1409
    %2465 = vmatpush.bf16.msra.mxu0 %v1405
    %2466 = vmatpush.bf16.msra.mxu0 %v1401
    %2467 = vmatpush.bf16.msra.mxu0 %v1397
    %2468 = vmatpush.bf16.msra.mxu0 %v1393
    %2469 = vmatpush.bf16.msra.mxu0 %v1389
    %2470 = vmatpush.bf16.msra.mxu0 %v1385
    %2471 = vmatmul.bf16.gmra.mxu0 %v65
    %v2472 = vpop.f32.mrf.mxu0
    %v2473 = vadd.f32 %v405, %v2472
    %v2474 = vpop.f32.mrf.mxu0
    %2475 = vdwg.mxu0
    %2476 = vmatpush.bf16.msra.mxu0 %v1445
    %2477 = vmatpush.bf16.msra.mxu0 %v1441
    %2478 = vmatpush.bf16.msra.mxu0 %v1437
    %2479 = vmatpush.bf16.msra.mxu0 %v1433
    %2480 = vmatpush.bf16.msra.mxu0 %v1429
    %2481 = vmatpush.bf16.msra.mxu0 %v1425
    %2482 = vmatpush.bf16.msra.mxu0 %v1421
    %2483 = vmatpush.bf16.msra.mxu0 %v1417
    %2484 = vmatmul.bf16.gmra.mxu0 %v66
    %v2485 = vpop.f32.mrf.mxu0
    %v2486 = vadd.f32 %v2473, %v2485
    %v2487 = vpop.f32.mrf.mxu0
    %2488 = vdwg.mxu0
    %2489 = vmatpush.bf16.msra.mxu0 %v1477
    %2490 = vmatpush.bf16.msra.mxu0 %v1473
    %2491 = vmatpush.bf16.msra.mxu0 %v1469
    %2492 = vmatpush.bf16.msra.mxu0 %v1465
    %2493 = vmatpush.bf16.msra.mxu0 %v1461
    %2494 = vmatpush.bf16.msra.mxu0 %v1457
    %2495 = vmatpush.bf16.msra.mxu0 %v1453
    %2496 = vmatpush.bf16.msra.mxu0 %v1449
    %2497 = vmatmul.bf16.gmra.mxu0 %v67
    %v2498 = vpop.f32.mrf.mxu0
    %v2499 = vadd.f32 %v2486, %v2498
    %v2500 = vpop.f32.mrf.mxu0
    %2501 = vdwg.mxu0
    %2502 = vmatpush.bf16.msra.mxu0 %v1509
    %2503 = vmatpush.bf16.msra.mxu0 %v1505
    %2504 = vmatpush.bf16.msra.mxu0 %v1501
    %2505 = vmatpush.bf16.msra.mxu0 %v1497
    %2506 = vmatpush.bf16.msra.mxu0 %v1493
    %2507 = vmatpush.bf16.msra.mxu0 %v1489
    %2508 = vmatpush.bf16.msra.mxu0 %v1485
    %2509 = vmatpush.bf16.msra.mxu0 %v1481
    %2510 = vmatmul.bf16.gmra.mxu0 %v68
    %v2511 = vpop.f32.mrf.mxu0
    %v2512 = vadd.f32 %v2499, %v2511
    %v2513 = vpop.f32.mrf.mxu0
    %2514 = vdwg.mxu0
    %2515 = vmatpush.bf16.msra.mxu0 %v1541
    %2516 = vmatpush.bf16.msra.mxu0 %v1537
    %2517 = vmatpush.bf16.msra.mxu0 %v1533
    %2518 = vmatpush.bf16.msra.mxu0 %v1529
    %2519 = vmatpush.bf16.msra.mxu0 %v1525
    %2520 = vmatpush.bf16.msra.mxu0 %v1521
    %2521 = vmatpush.bf16.msra.mxu0 %v1517
    %2522 = vmatpush.bf16.msra.mxu0 %v1513
    %2523 = vmatmul.bf16.gmra.mxu0 %v69
    %v2524 = vpop.f32.mrf.mxu0
    %v2525 = vadd.f32 %v2512, %v2524
    %v2526 = vpop.f32.mrf.mxu0
    %2527 = vdwg.mxu0
    %2528 = vmatpush.bf16.msra.mxu0 %v1573
    %2529 = vmatpush.bf16.msra.mxu0 %v1569
    %2530 = vmatpush.bf16.msra.mxu0 %v1565
    %2531 = vmatpush.bf16.msra.mxu0 %v1561
    %2532 = vmatpush.bf16.msra.mxu0 %v1557
    %2533 = vmatpush.bf16.msra.mxu0 %v1553
    %2534 = vmatpush.bf16.msra.mxu0 %v1549
    %2535 = vmatpush.bf16.msra.mxu0 %v1545
    %2536 = vmatmul.bf16.gmra.mxu0 %v70
    %v2537 = vpop.f32.mrf.mxu0
    %v2538 = vadd.f32 %v2525, %v2537
    %v2539 = vpop.f32.mrf.mxu0
    %2540 = vdwg.mxu0
    %2541 = vmatpush.bf16.msra.mxu0 %v1605
    %2542 = vmatpush.bf16.msra.mxu0 %v1601
    %2543 = vmatpush.bf16.msra.mxu0 %v1597
    %2544 = vmatpush.bf16.msra.mxu0 %v1593
    %2545 = vmatpush.bf16.msra.mxu0 %v1589
    %2546 = vmatpush.bf16.msra.mxu0 %v1585
    %2547 = vmatpush.bf16.msra.mxu0 %v1581
    %2548 = vmatpush.bf16.msra.mxu0 %v1577
    %2549 = vmatmul.bf16.gmra.mxu0 %v71
    %v2550 = vpop.f32.mrf.mxu0
    %v2551 = vadd.f32 %v2538, %v2550
    %v2552 = vpop.f32.mrf.mxu0
    %2553 = vdwg.mxu0
    %2554 = vmatpush.bf16.msra.mxu0 %v1637
    %2555 = vmatpush.bf16.msra.mxu0 %v1633
    %2556 = vmatpush.bf16.msra.mxu0 %v1629
    %2557 = vmatpush.bf16.msra.mxu0 %v1625
    %2558 = vmatpush.bf16.msra.mxu0 %v1621
    %2559 = vmatpush.bf16.msra.mxu0 %v1617
    %2560 = vmatpush.bf16.msra.mxu0 %v1613
    %2561 = vmatpush.bf16.msra.mxu0 %v1609
    %2562 = vmatmul.bf16.gmra.mxu0 %v72
    %v2563 = vpop.f32.mrf.mxu0
    %v2564 = vadd.f32 %v2551, %v2563
    %v2565 = vpop.f32.mrf.mxu0
    %2566 = vdwg.mxu0
    %2567 = vmatpush.bf16.msra.mxu0 %v1669
    %2568 = vmatpush.bf16.msra.mxu0 %v1665
    %2569 = vmatpush.bf16.msra.mxu0 %v1661
    %2570 = vmatpush.bf16.msra.mxu0 %v1657
    %2571 = vmatpush.bf16.msra.mxu0 %v1653
    %2572 = vmatpush.bf16.msra.mxu0 %v1649
    %2573 = vmatpush.bf16.msra.mxu0 %v1645
    %2574 = vmatpush.bf16.msra.mxu0 %v1641
    %2575 = vmatmul.bf16.gmra.mxu0 %v73
    %v2576 = vpop.f32.mrf.mxu0
    %v2577 = vadd.f32 %v2564, %v2576
    %v2578 = vpop.f32.mrf.mxu0
    %2579 = vdwg.mxu0
    %2580 = vmatpush.bf16.msra.mxu0 %v1701
    %2581 = vmatpush.bf16.msra.mxu0 %v1697
    %2582 = vmatpush.bf16.msra.mxu0 %v1693
    %2583 = vmatpush.bf16.msra.mxu0 %v1689
    %2584 = vmatpush.bf16.msra.mxu0 %v1685
    %2585 = vmatpush.bf16.msra.mxu0 %v1681
    %2586 = vmatpush.bf16.msra.mxu0 %v1677
    %2587 = vmatpush.bf16.msra.mxu0 %v1673
    %2588 = vmatmul.bf16.gmra.mxu0 %v74
    %v2589 = vpop.f32.mrf.mxu0
    %v2590 = vadd.f32 %v2577, %v2589
    %v2591 = vpop.f32.mrf.mxu0
    %2592 = vdwg.mxu0
    %2593 = vmatpush.bf16.msra.mxu0 0
    %2594 = vmatpush.bf16.msra.mxu0 0
    %2595 = vmatpush.bf16.msra.mxu0 0
    %2596 = vmatpush.bf16.msra.mxu0 0
    %2597 = vmatpush.bf16.msra.mxu0 0
    %2598 = vmatpush.bf16.msra.mxu0 0
    %2599 = vmatpush.bf16.msra.mxu0 0
    %2600 = vmatpush.bf16.msra.mxu0 %v1705
    %2601 = vmatmul.bf16.gmra.mxu0 %v2032
    %v2602 = vpop.f32.mrf.mxu0
    %v2603 = vadd.f32 %v2590, %v2602
    %v2604 = vpop.f32.mrf.mxu0
    %2605 = vdwg.mxu0
    %v2606 = vmax.f32 %v2174, 0.0
    %v2607 = vmax.f32 %v2317, 0.0
    %v2608 = vmax.f32 %v2460, 0.0
    %v2609 = vmax.f32 %v2603, 0.0
    %v2610 = vpack.c.bf16 %v2606, %v2606
    %v2611 = vpack.c.bf16 %v2607, %v2607
    %v2612 = vpack.c.bf16 %v2608, %v2608
    %v2613 = vpack.c.bf16 %v2609, %v2609
    %v2614 = vld [vmem:[%s4] sm:$0xf]
    %v2615 = vld [vmem:[%s4 + $0x4] sm:$0xf]
    %v2616 = vld [vmem:[%s4 + $0x8] sm:$0xf]
    %v2617 = vld [vmem:[%s4 + $0xc] sm:$0xf]
    %v2618 = vld [vmem:[%s4 + $0x10] sm:$0xf]
    %v2619 = vld [vmem:[%s4 + $0x14] sm:$0xf]
    %v2620 = vld [vmem:[%s4 + $0x18] sm:$0xf]
    %v2621 = vld [vmem:[%s4 + $0x1c] sm:$0xf]
    %v2622 = vld [vmem:[%s4 + $0x20] sm:$0xf]
    %v2623 = vld [vmem:[%s4 + $0x24] sm:$0xf]
    %v2624 = vld [vmem:[%s4 + $0x28] sm:$0xf]
    %v2625 = vld [vmem:[%s4 + $0x2c] sm:$0xf]
    %v2626 = vld [vmem:[%s4 + $0x30] sm:$0xf]
    %v2627 = vld [vmem:[%s4 + $0x34] sm:$0xf]
    %v2628 = vld [vmem:[%s4 + $0x38] sm:$0xf]
    %v2629 = vld [vmem:[%s4 + $0x3c] sm:$0xf]
    %v2630 = vld [vmem:[%s4 + $0x40] sm:$0xf]
    %v2631 = vld [vmem:[%s4 + $0x44] sm:$0xf]
    %v2632 = vld [vmem:[%s4 + $0x48] sm:$0xf]
    %v2633 = vld [vmem:[%s4 + $0x4c] sm:$0xf]
    %v2634 = vld [vmem:[%s4 + $0x50] sm:$0xf]
    %v2635 = vld [vmem:[%s4 + $0x54] sm:$0xf]
    %v2636 = vld [vmem:[%s4 + $0x58] sm:$0xf]
    %v2637 = vld [vmem:[%s4 + $0x5c] sm:$0xf]
    %v2638 = vld [vmem:[%s4 + $0x60] sm:$0xf]
    %v2639 = vld [vmem:[%s4 + $0x64] sm:$0xf]
    %v2640 = vld [vmem:[%s4 + $0x68] sm:$0xf]
    %v2641 = vld [vmem:[%s4 + $0x6c] sm:$0xf]
    %v2642 = vld [vmem:[%s4 + $0x70] sm:$0xf]
    %v2643 = vld [vmem:[%s4 + $0x74] sm:$0xf]
    %v2644 = vld [vmem:[%s4 + $0x78] sm:$0xf]
    %v2645 = vld [vmem:[%s4 + $0x7c] sm:$0xf]
    %v2646 = vld [vmem:[%s4 + $0x80] sm:$0xf]
    %v2647 = vld [vmem:[%s4 + $0x84] sm:$0xf]
    %v2648 = vld [vmem:[%s4 + $0x88] sm:$0xf]
    %v2649 = vld [vmem:[%s4 + $0x8c] sm:$0xf]
    %v2650 = vld [vmem:[%s4 + $0x90] sm:$0xf]
    %v2651 = vld [vmem:[%s4 + $0x94] sm:$0xf]
    %v2652 = vld [vmem:[%s4 + $0x98] sm:$0xf]
    %v2653 = vld [vmem:[%s4 + $0x9c] sm:$0xf]
    %v2654 = vld [vmem:[%s4 + $0xa0] sm:$0xf]
    %v2655 = vld [vmem:[%s4 + $0xa4] sm:$0xf]
    %v2656 = vld [vmem:[%s4 + $0xa8] sm:$0xf]
    %v2657 = vld [vmem:[%s4 + $0xac] sm:$0xf]
    %v2658 = vld [vmem:[%s4 + $0xb0] sm:$0xf]
    %v2659 = vld [vmem:[%s4 + $0xb4] sm:$0xf]
    %v2660 = vld [vmem:[%s4 + $0xb8] sm:$0xf]
    %v2661 = vld [vmem:[%s4 + $0xbc] sm:$0xf]
    %v2662 = vld [vmem:[%s4 + $0xc0] sm:$0xf]
    %v2663 = vld [vmem:[%s4 + $0xc4] sm:$0xf]
    %v2664 = vld [vmem:[%s4 + $0xc8] sm:$0xf]
    %v2665 = vld [vmem:[%s4 + $0xcc] sm:$0xf]
    %v2666 = vld [vmem:[%s4 + $0xd0] sm:$0xf]
    %v2667 = vld [vmem:[%s4 + $0xd4] sm:$0xf]
    %v2668 = vld [vmem:[%s4 + $0xd8] sm:$0xf]
    %v2669 = vld [vmem:[%s4 + $0xdc] sm:$0xf]
    %v2670 = vld [vmem:[%s4 + $0xe0] sm:$0xf]
    %v2671 = vld [vmem:[%s4 + $0xe4] sm:$0xf]
    %v2672 = vld [vmem:[%s4 + $0xe8] sm:$0xf]
    %v2673 = vld [vmem:[%s4 + $0xec] sm:$0xf]
    %v2674 = vld [vmem:[%s4 + $0xf0] sm:$0xf]
    %v2675 = vld [vmem:[%s4 + $0xf4] sm:$0xf]
    %v2676 = vld [vmem:[%s4 + $0xf8] sm:$0xf]
    %v2677 = vld [vmem:[%s4 + $0xfc] sm:$0xf]
    %v2678 = vld [vmem:[%s5] sm:$0x1]
    %v2680 = vperm.slane %v2678, 0
    %v2746 = vunpack.c.l.b16 %v2614
    %v2747 = vunpack.c.l.b16 %v2615
    %v2748 = vunpack.c.l.b16 %v2616
    %v2749 = vunpack.c.l.b16 %v2617
    %v2750 = vunpack.c.l.b16 %v2618
    %v2751 = vunpack.c.l.b16 %v2619
    %v2752 = vunpack.c.l.b16 %v2620
    %v2753 = vunpack.c.l.b16 %v2621
    %v2754 = vunpack.c.l.b16 %v2622
    %v2755 = vunpack.c.l.b16 %v2623
    %v2756 = vunpack.c.l.b16 %v2624
    %v2757 = vunpack.c.l.b16 %v2625
    %v2758 = vunpack.c.l.b16 %v2626
    %v2759 = vunpack.c.l.b16 %v2627
    %v2760 = vunpack.c.l.b16 %v2628
    %v2761 = vunpack.c.l.b16 %v2629
    %v2762 = vunpack.c.l.b16 %v2630
    %v2763 = vunpack.c.l.b16 %v2631
    %v2764 = vunpack.c.l.b16 %v2632
    %v2765 = vunpack.c.l.b16 %v2633
    %v2766 = vunpack.c.l.b16 %v2634
    %v2767 = vunpack.c.l.b16 %v2635
    %v2768 = vunpack.c.l.b16 %v2636
    %v2769 = vunpack.c.l.b16 %v2637
    %v2770 = vunpack.c.l.b16 %v2638
    %v2771 = vunpack.c.l.b16 %v2639
    %v2772 = vunpack.c.l.b16 %v2640
    %v2773 = vunpack.c.l.b16 %v2641
    %v2774 = vunpack.c.l.b16 %v2642
    %v2775 = vunpack.c.l.b16 %v2643
    %v2776 = vunpack.c.l.b16 %v2644
    %v2777 = vunpack.c.l.b16 %v2645
    %v2778 = vunpack.c.l.b16 %v2646
    %v2779 = vunpack.c.l.b16 %v2647
    %v2780 = vunpack.c.l.b16 %v2648
    %v2781 = vunpack.c.l.b16 %v2649
    %v2782 = vunpack.c.l.b16 %v2650
    %v2783 = vunpack.c.l.b16 %v2651
    %v2784 = vunpack.c.l.b16 %v2652
    %v2785 = vunpack.c.l.b16 %v2653
    %v2786 = vunpack.c.l.b16 %v2654
    %v2787 = vunpack.c.l.b16 %v2655
    %v2788 = vunpack.c.l.b16 %v2656
    %v2789 = vunpack.c.l.b16 %v2657
    %v2790 = vunpack.c.l.b16 %v2658
    %v2791 = vunpack.c.l.b16 %v2659
    %v2792 = vunpack.c.l.b16 %v2660
    %v2793 = vunpack.c.l.b16 %v2661
    %v2794 = vunpack.c.l.b16 %v2662
    %v2795 = vunpack.c.l.b16 %v2663
    %v2796 = vunpack.c.l.b16 %v2664
    %v2797 = vunpack.c.l.b16 %v2665
    %v2798 = vunpack.c.l.b16 %v2666
    %v2799 = vunpack.c.l.b16 %v2667
    %v2800 = vunpack.c.l.b16 %v2668
    %v2801 = vunpack.c.l.b16 %v2669
    %v2802 = vunpack.c.l.b16 %v2670
    %v2803 = vunpack.c.l.b16 %v2671
    %v2804 = vunpack.c.l.b16 %v2672
    %v2805 = vunpack.c.l.b16 %v2673
    %v2806 = vunpack.c.l.b16 %v2674
    %v2807 = vunpack.c.l.b16 %v2675
    %v2808 = vunpack.c.l.b16 %v2676
    %v2809 = vunpack.c.l.b16 %v2677
    %v2810 = vpack.c.b16 %v2747, %v2746
    %v2811 = vpack.c.b16 %v2749, %v2748
    %v2812 = vpack.c.b16 %v2751, %v2750
    %v2813 = vpack.c.b16 %v2753, %v2752
    %v2814 = vpack.c.b16 %v2755, %v2754
    %v2815 = vpack.c.b16 %v2757, %v2756
    %v2816 = vpack.c.b16 %v2759, %v2758
    %v2817 = vpack.c.b16 %v2761, %v2760
    %v2818 = vpack.c.b16 %v2763, %v2762
    %v2819 = vpack.c.b16 %v2765, %v2764
    %v2820 = vpack.c.b16 %v2767, %v2766
    %v2821 = vpack.c.b16 %v2769, %v2768
    %v2822 = vpack.c.b16 %v2771, %v2770
    %v2823 = vpack.c.b16 %v2773, %v2772
    %v2824 = vpack.c.b16 %v2775, %v2774
    %v2825 = vpack.c.b16 %v2777, %v2776
    %v2826 = vpack.c.b16 %v2779, %v2778
    %v2827 = vpack.c.b16 %v2781, %v2780
    %v2828 = vpack.c.b16 %v2783, %v2782
    %v2829 = vpack.c.b16 %v2785, %v2784
    %v2830 = vpack.c.b16 %v2787, %v2786
    %v2831 = vpack.c.b16 %v2789, %v2788
    %v2832 = vpack.c.b16 %v2791, %v2790
    %v2833 = vpack.c.b16 %v2793, %v2792
    %v2834 = vpack.c.b16 %v2795, %v2794
    %v2835 = vpack.c.b16 %v2797, %v2796
    %v2836 = vpack.c.b16 %v2799, %v2798
    %v2837 = vpack.c.b16 %v2801, %v2800
    %v2838 = vpack.c.b16 %v2803, %v2802
    %v2839 = vpack.c.b16 %v2805, %v2804
    %v2840 = vpack.c.b16 %v2807, %v2806
    %v2841 = vpack.c.b16 %v2809, %v2808
    %2874 = vmatpush.bf16.msra.mxu0 %v2817
    %2875 = vmatpush.bf16.msra.mxu0 %v2816
    %2876 = vmatpush.bf16.msra.mxu0 %v2815
    %2877 = vmatpush.bf16.msra.mxu0 %v2814
    %2878 = vmatpush.bf16.msra.mxu0 %v2813
    %2879 = vmatpush.bf16.msra.mxu0 %v2812
    %2880 = vmatpush.bf16.msra.mxu0 %v2811
    %2881 = vmatpush.bf16.msra.mxu0 %v2810
    %2882 = vmatmul.bf16.gmra.mxu0 %v2610
    %v2883 = vpop.f32.mrf.mxu0
    %v2884 = vadd.f32 %v2680, %v2883
    %v2885 = vpop.f32.mrf.mxu0
    %2886 = vdwg.mxu0
    %2887 = vmatpush.bf16.msra.mxu0 %v2825
    %2888 = vmatpush.bf16.msra.mxu0 %v2824
    %2889 = vmatpush.bf16.msra.mxu0 %v2823
    %2890 = vmatpush.bf16.msra.mxu0 %v2822
    %2891 = vmatpush.bf16.msra.mxu0 %v2821
    %2892 = vmatpush.bf16.msra.mxu0 %v2820
    %2893 = vmatpush.bf16.msra.mxu0 %v2819
    %2894 = vmatpush.bf16.msra.mxu0 %v2818
    %2895 = vmatmul.bf16.gmra.mxu0 %v2611
    %v2896 = vpop.f32.mrf.mxu0
    %v2897 = vadd.f32 %v2884, %v2896
    %v2898 = vpop.f32.mrf.mxu0
    %2899 = vdwg.mxu0
    %2900 = vmatpush.bf16.msra.mxu0 %v2833
    %2901 = vmatpush.bf16.msra.mxu0 %v2832
    %2902 = vmatpush.bf16.msra.mxu0 %v2831
    %2903 = vmatpush.bf16.msra.mxu0 %v2830
    %2904 = vmatpush.bf16.msra.mxu0 %v2829
    %2905 = vmatpush.bf16.msra.mxu0 %v2828
    %2906 = vmatpush.bf16.msra.mxu0 %v2827
    %2907 = vmatpush.bf16.msra.mxu0 %v2826
    %2908 = vmatmul.bf16.gmra.mxu0 %v2612
    %v2909 = vpop.f32.mrf.mxu0
    %v2910 = vadd.f32 %v2897, %v2909
    %v2911 = vpop.f32.mrf.mxu0
    %2912 = vdwg.mxu0
    %2913 = vmatpush.bf16.msra.mxu0 %v2841
    %2914 = vmatpush.bf16.msra.mxu0 %v2840
    %2915 = vmatpush.bf16.msra.mxu0 %v2839
    %2916 = vmatpush.bf16.msra.mxu0 %v2838
    %2917 = vmatpush.bf16.msra.mxu0 %v2837
    %2918 = vmatpush.bf16.msra.mxu0 %v2836
    %2919 = vmatpush.bf16.msra.mxu0 %v2835
    %2920 = vmatpush.bf16.msra.mxu0 %v2834
    %2921 = vmatmul.bf16.gmra.mxu0 %v2613
    %v2922 = vpop.f32.mrf.mxu0
    %v2923 = vadd.f32 %v2910, %v2922
    %v2924 = vpop.f32.mrf.mxu0
    %2925 = vdwg.mxu0
    %vm2926 = vcmask 523264
    %2927 = vst.msk [vmem:[%s11] sm:$0xff] %vm2926, %v2923
    %v2928 = vld [vmem:[%s1] sm:$0xff]
    %v2929 = vmul.f32 %v2923, 0.5
    %v2930 = vmul.f32 %v2929, 1.442695
    %v2931 = vpow.pop %v2930
    %2933 = vrot.lane.b32.xlu0 %v2931, 96
    %v2934 = vpop.permute.xlu0 %2933
    %v2936 = vmul.f32 %v2928, %v2934
    %v2937 = vadd.f32 %v2923, %v2936
    %v2938 = vpack.c.bf16 %v2937, %v2937
    %v2939 = vld [vmem:[%s6] sm:$0xff]
    %v2940 = vld [vmem:[%s6 + $0x8] sm:$0xff]
    %v2941 = vld [vmem:[%s6 + $0x10] sm:$0xff]
    %v2942 = vld [vmem:[%s6 + $0x18] sm:$0xff]
    %v2943 = vld [vmem:[%s6 + $0x20] sm:$0xff]
    %v2944 = vld [vmem:[%s6 + $0x28] sm:$0xff]
    %v2945 = vld [vmem:[%s6 + $0x30] sm:$0xff]
    %v2946 = vld [vmem:[%s6 + $0x38] sm:$0xff]
    %v2947 = vld [vmem:[%s7] sm:$0xf]
    %v2949 = vperm.slane %v2947, 0
    %v2950 = vperm.slane %v2947, 1
    %v2951 = vperm.slane %v2947, 2
    %v2952 = vperm.slane %v2947, 3
    %v2965 = vunpack.c.l.b16 %v2939
    %v2966 = vunpack.c.h.b16 %v2939
    %v2967 = vunpack.c.l.b16 %v2940
    %v2968 = vunpack.c.h.b16 %v2940
    %v2969 = vunpack.c.l.b16 %v2941
    %v2970 = vunpack.c.h.b16 %v2941
    %v2971 = vunpack.c.l.b16 %v2942
    %v2972 = vunpack.c.h.b16 %v2942
    %v2973 = vunpack.c.l.b16 %v2943
    %v2974 = vunpack.c.h.b16 %v2943
    %v2975 = vunpack.c.l.b16 %v2944
    %v2976 = vunpack.c.h.b16 %v2944
    %v2977 = vunpack.c.l.b16 %v2945
    %v2978 = vunpack.c.h.b16 %v2945
    %v2979 = vunpack.c.l.b16 %v2946
    %v2980 = vunpack.c.h.b16 %v2946
    %v2981 = vpack.c.b16 %v2969, %v2965
    %v2982 = vpack.c.b16 %v2970, %v2966
    %v2983 = vpack.c.b16 %v2971, %v2967
    %v2984 = vpack.c.b16 %v2972, %v2968
    %v2985 = vpack.c.b16 %v2977, %v2973
    %v2986 = vpack.c.b16 %v2978, %v2974
    %v2987 = vpack.c.b16 %v2979, %v2975
    %v2988 = vpack.c.b16 %v2980, %v2976
    %vm2997 = vcmask 261120
    %v2999 = vsel %vm2997, %v2938, 0
    %3001 = vmatpush.bf16.msra.mxu0 0
    %3002 = vmatpush.bf16.msra.mxu0 0
    %3003 = vmatpush.bf16.msra.mxu0 0
    %3004 = vmatpush.bf16.msra.mxu0 0
    %3005 = vmatpush.bf16.msra.mxu0 0
    %3006 = vmatpush.bf16.msra.mxu0 0
    %3007 = vmatpush.bf16.msra.mxu0 %v2985
    %3008 = vmatpush.bf16.msra.mxu0 %v2981
    %3009 = vmatmul.bf16.gmra.mxu0 %v2999
    %v3010 = vpop.f32.mrf.mxu0
    %v3011 = vadd.f32 %v2949, %v3010
    %v3012 = vpop.f32.mrf.mxu0
    %3013 = vdwg.mxu0
    %3014 = vmatpush.bf16.msra.mxu0 0
    %3015 = vmatpush.bf16.msra.mxu0 0
    %3016 = vmatpush.bf16.msra.mxu0 0
    %3017 = vmatpush.bf16.msra.mxu0 0
    %3018 = vmatpush.bf16.msra.mxu0 0
    %3019 = vmatpush.bf16.msra.mxu0 0
    %3020 = vmatpush.bf16.msra.mxu0 %v2986
    %3021 = vmatpush.bf16.msra.mxu0 %v2982
    %3022 = vmatmul.bf16.gmra.mxu0 %v2999
    %v3023 = vpop.f32.mrf.mxu0
    %v3024 = vadd.f32 %v2950, %v3023
    %v3025 = vpop.f32.mrf.mxu0
    %3026 = vdwg.mxu0
    %3027 = vmatpush.bf16.msra.mxu0 0
    %3028 = vmatpush.bf16.msra.mxu0 0
    %3029 = vmatpush.bf16.msra.mxu0 0
    %3030 = vmatpush.bf16.msra.mxu0 0
    %3031 = vmatpush.bf16.msra.mxu0 0
    %3032 = vmatpush.bf16.msra.mxu0 0
    %3033 = vmatpush.bf16.msra.mxu0 %v2987
    %3034 = vmatpush.bf16.msra.mxu0 %v2983
    %3035 = vmatmul.bf16.gmra.mxu0 %v2999
    %v3036 = vpop.f32.mrf.mxu0
    %v3037 = vadd.f32 %v2951, %v3036
    %v3038 = vpop.f32.mrf.mxu0
    %3039 = vdwg.mxu0
    %3040 = vmatpush.bf16.msra.mxu0 0
    %3041 = vmatpush.bf16.msra.mxu0 0
    %3042 = vmatpush.bf16.msra.mxu0 0
    %3043 = vmatpush.bf16.msra.mxu0 0
    %3044 = vmatpush.bf16.msra.mxu0 0
    %3045 = vmatpush.bf16.msra.mxu0 0
    %3046 = vmatpush.bf16.msra.mxu0 %v2988
    %3047 = vmatpush.bf16.msra.mxu0 %v2984
    %3048 = vmatmul.bf16.gmra.mxu0 %v2999
    %v3049 = vpop.f32.mrf.mxu0
    %v3050 = vadd.f32 %v2952, %v3049
    %v3051 = vpop.f32.mrf.mxu0
    %3052 = vdwg.mxu0
    %v3053 = vmax.f32 %v3011, 0.0
    %v3054 = vmax.f32 %v3024, 0.0
    %v3055 = vmax.f32 %v3037, 0.0
    %v3056 = vmax.f32 %v3050, 0.0
    %v3057 = vpack.c.bf16 %v3053, %v3053
    %v3058 = vpack.c.bf16 %v3054, %v3054
    %v3059 = vpack.c.bf16 %v3055, %v3055
    %v3060 = vpack.c.bf16 %v3056, %v3056
    %v3061 = vld [vmem:[#allocation2] sm:$0xff]
    %v3062 = vld [vmem:[#allocation2 + $0x8] sm:$0xff]
    %v3063 = vld [vmem:[#allocation2 + $0x10] sm:$0xff]
    %v3064 = vld [vmem:[#allocation2 + $0x18] sm:$0xff]
    %v3065 = vld [vmem:[#allocation2 + $0x20] sm:$0xff]
    %v3066 = vld [vmem:[#allocation2 + $0x28] sm:$0xff]
    %v3067 = vld [vmem:[#allocation2 + $0x30] sm:$0xff]
    %v3068 = vld [vmem:[#allocation2 + $0x38] sm:$0xff]
    %v3069 = vld [vmem:[#allocation2 + $0x40] sm:$0xff]
    %v3070 = vld [vmem:[#allocation2 + $0x48] sm:$0xff]
    %v3071 = vld [vmem:[#allocation2 + $0x50] sm:$0xff]
    %v3072 = vld [vmem:[#allocation2 + $0x58] sm:$0xff]
    %v3073 = vld [vmem:[#allocation2 + $0x60] sm:$0xff]
    %v3074 = vld [vmem:[#allocation2 + $0x68] sm:$0xff]
    %v3075 = vld [vmem:[#allocation2 + $0x70] sm:$0xff]
    %v3076 = vld [vmem:[#allocation2 + $0x78] sm:$0xff]
    %v3077 = vld [vmem:[#allocation2 + $0x80] sm:$0xff]
    %v3078 = vld [vmem:[#allocation2 + $0x88] sm:$0xff]
    %v3079 = vld [vmem:[#allocation2 + $0x90] sm:$0xff]
    %v3080 = vld [vmem:[#allocation2 + $0x98] sm:$0xff]
    %v3081 = vld [vmem:[#allocation2 + $0xa0] sm:$0xff]
    %v3082 = vld [vmem:[#allocation2 + $0xa8] sm:$0xff]
    %v3083 = vld [vmem:[#allocation2 + $0xb0] sm:$0xff]
    %v3084 = vld [vmem:[#allocation2 + $0xb8] sm:$0xff]
    %v3085 = vld [vmem:[#allocation2 + $0xc0] sm:$0xff]
    %v3086 = vld [vmem:[#allocation2 + $0xc8] sm:$0xff]
    %v3087 = vld [vmem:[#allocation2 + $0xd0] sm:$0xff]
    %v3088 = vld [vmem:[#allocation2 + $0xd8] sm:$0xff]
    %v3089 = vld [vmem:[#allocation2 + $0xe0] sm:$0xff]
    %v3090 = vld [vmem:[#allocation2 + $0xe8] sm:$0xff]
    %v3091 = vld [vmem:[#allocation2 + $0xf0] sm:$0xff]
    %v3092 = vld [vmem:[#allocation2 + $0xf8] sm:$0xff]
    %v3093 = vld [vmem:[#allocation2 + $0x100] sm:$0xff]
    %v3094 = vld [vmem:[#allocation2 + $0x108] sm:$0xff]
    %v3095 = vld [vmem:[#allocation2 + $0x110] sm:$0xff]
    %v3096 = vld [vmem:[#allocation2 + $0x118] sm:$0xff]
    %v3097 = vld [vmem:[#allocation2 + $0x120] sm:$0xff]
    %v3098 = vld [vmem:[#allocation2 + $0x128] sm:$0xff]
    %v3099 = vld [vmem:[#allocation2 + $0x130] sm:$0xff]
    %v3100 = vld [vmem:[#allocation2 + $0x138] sm:$0xff]
    %v3101 = vld [vmem:[#allocation2 + $0x140] sm:$0xff]
    %v3102 = vld [vmem:[#allocation2 + $0x148] sm:$0xff]
    %v3103 = vld [vmem:[#allocation2 + $0x150] sm:$0xff]
    %v3104 = vld [vmem:[#allocation2 + $0x158] sm:$0xff]
    %v3105 = vld [vmem:[#allocation2 + $0x160] sm:$0xff]
    %v3106 = vld [vmem:[#allocation2 + $0x168] sm:$0xff]
    %v3107 = vld [vmem:[#allocation2 + $0x170] sm:$0xff]
    %v3108 = vld [vmem:[#allocation2 + $0x178] sm:$0xff]
    %v3109 = vld [vmem:[#allocation2 + $0x180] sm:$0xff]
    %v3110 = vld [vmem:[#allocation2 + $0x188] sm:$0xff]
    %v3111 = vld [vmem:[#allocation2 + $0x190] sm:$0xff]
    %v3112 = vld [vmem:[#allocation2 + $0x198] sm:$0xff]
    %v3113 = vld [vmem:[#allocation2 + $0x1a0] sm:$0xff]
    %v3114 = vld [vmem:[#allocation2 + $0x1a8] sm:$0xff]
    %v3115 = vld [vmem:[#allocation2 + $0x1b0] sm:$0xff]
    %v3116 = vld [vmem:[#allocation2 + $0x1b8] sm:$0xff]
    %v3117 = vld [vmem:[#allocation2 + $0x1c0] sm:$0xff]
    %v3118 = vld [vmem:[#allocation2 + $0x1c8] sm:$0xff]
    %v3119 = vld [vmem:[#allocation2 + $0x1d0] sm:$0xff]
    %v3120 = vld [vmem:[#allocation2 + $0x1d8] sm:$0xff]
    %v3121 = vld [vmem:[#allocation2 + $0x1e0] sm:$0xff]
    %v3122 = vld [vmem:[#allocation2 + $0x1e8] sm:$0xff]
    %v3123 = vld [vmem:[#allocation2 + $0x1f0] sm:$0xff]
    %v3124 = vld [vmem:[#allocation2 + $0x1f8] sm:$0xff]
    %v3125 = vld [vmem:[#allocation2 + $0x200] sm:$0xff]
    %v3126 = vld [vmem:[#allocation2 + $0x208] sm:$0xff]
    %v3127 = vld [vmem:[#allocation2 + $0x210] sm:$0xff]
    %v3128 = vld [vmem:[#allocation2 + $0x218] sm:$0xff]
    %v3129 = vld [vmem:[#allocation2 + $0x220] sm:$0xff]
    %v3130 = vld [vmem:[#allocation2 + $0x228] sm:$0xff]
    %v3131 = vld [vmem:[#allocation2 + $0x230] sm:$0xff]
    %v3132 = vld [vmem:[#allocation2 + $0x238] sm:$0xff]
    %v3133 = vld [vmem:[#allocation2 + $0x240] sm:$0xff]
    %v3134 = vld [vmem:[#allocation2 + $0x248] sm:$0xff]
    %v3135 = vld [vmem:[#allocation2 + $0x250] sm:$0xff]
    %v3136 = vld [vmem:[#allocation2 + $0x258] sm:$0xff]
    %v3137 = vld [vmem:[#allocation2 + $0x260] sm:$0xff]
    %v3138 = vld [vmem:[#allocation2 + $0x268] sm:$0xff]
    %v3139 = vld [vmem:[#allocation2 + $0x270] sm:$0xff]
    %v3140 = vld [vmem:[#allocation2 + $0x278] sm:$0xff]
    %v3141 = vld [vmem:[#allocation2 + $0x280] sm:$0xff]
    %v3142 = vld [vmem:[#allocation2 + $0x288] sm:$0xff]
    %v3143 = vld [vmem:[#allocation2 + $0x290] sm:$0xff]
    %v3144 = vld [vmem:[#allocation2 + $0x298] sm:$0xff]
    %v3145 = vld [vmem:[#allocation2 + $0x2a0] sm:$0xff]
    %v3146 = vld [vmem:[#allocation2 + $0x2a8] sm:$0xff]
    %v3147 = vld [vmem:[#allocation2 + $0x2b0] sm:$0xff]
    %v3148 = vld [vmem:[#allocation2 + $0x2b8] sm:$0xff]
    %v3149 = vld [vmem:[#allocation2 + $0x2c0] sm:$0xff]
    %v3150 = vld [vmem:[#allocation2 + $0x2c8] sm:$0xff]
    %v3151 = vld [vmem:[#allocation2 + $0x2d0] sm:$0xff]
    %v3152 = vld [vmem:[#allocation2 + $0x2d8] sm:$0xff]
    %v3153 = vld [vmem:[#allocation2 + $0x2e0] sm:$0xff]
    %v3154 = vld [vmem:[#allocation2 + $0x2e8] sm:$0xff]
    %v3155 = vld [vmem:[#allocation2 + $0x2f0] sm:$0xff]
    %v3156 = vld [vmem:[#allocation2 + $0x2f8] sm:$0xff]
    %v3157 = vld [vmem:[#allocation2 + $0x300] sm:$0xff]
    %v3158 = vld [vmem:[#allocation2 + $0x308] sm:$0xff]
    %v3159 = vld [vmem:[#allocation2 + $0x310] sm:$0xff]
    %v3160 = vld [vmem:[#allocation2 + $0x318] sm:$0xff]
    %v3161 = vld [vmem:[#allocation2 + $0x320] sm:$0xff]
    %v3162 = vld [vmem:[#allocation2 + $0x328] sm:$0xff]
    %v3163 = vld [vmem:[#allocation2 + $0x330] sm:$0xff]
    %v3164 = vld [vmem:[#allocation2 + $0x338] sm:$0xff]
    %v3165 = vld [vmem:[#allocation2 + $0x340] sm:$0xff]
    %v3166 = vld [vmem:[#allocation2 + $0x348] sm:$0xff]
    %v3167 = vld [vmem:[#allocation2 + $0x350] sm:$0xff]
    %v3168 = vld [vmem:[#allocation2 + $0x358] sm:$0xff]
    %v3169 = vld [vmem:[#allocation2 + $0x360] sm:$0xff]
    %v3170 = vld [vmem:[#allocation2 + $0x368] sm:$0xff]
    %v3171 = vld [vmem:[#allocation2 + $0x370] sm:$0xff]
    %v3172 = vld [vmem:[#allocation2 + $0x378] sm:$0xff]
    %v3173 = vld [vmem:[#allocation2 + $0x380] sm:$0xff]
    %v3174 = vld [vmem:[#allocation2 + $0x388] sm:$0xff]
    %v3175 = vld [vmem:[#allocation2 + $0x390] sm:$0xff]
    %v3176 = vld [vmem:[#allocation2 + $0x398] sm:$0xff]
    %v3177 = vld [vmem:[#allocation2 + $0x3a0] sm:$0xff]
    %v3178 = vld [vmem:[#allocation2 + $0x3a8] sm:$0xff]
    %v3179 = vld [vmem:[#allocation2 + $0x3b0] sm:$0xff]
    %v3180 = vld [vmem:[#allocation2 + $0x3b8] sm:$0xff]
    %v3181 = vld [vmem:[#allocation2 + $0x3c0] sm:$0xff]
    %v3182 = vld [vmem:[#allocation2 + $0x3c8] sm:$0xff]
    %v3183 = vld [vmem:[#allocation2 + $0x3d0] sm:$0xff]
    %v3184 = vld [vmem:[#allocation2 + $0x3d8] sm:$0xff]
    %v3185 = vld [vmem:[#allocation2 + $0x3e0] sm:$0xff]
    %v3186 = vld [vmem:[#allocation2 + $0x3e8] sm:$0xff]
    %v3187 = vld [vmem:[#allocation2 + $0x3f0] sm:$0xff]
    %v3188 = vld [vmem:[#allocation2 + $0x3f8] sm:$0xff]
    %v3189 = vld [vmem:[#allocation2 + $0x400] sm:$0xff]
    %v3190 = vld [vmem:[#allocation2 + $0x408] sm:$0xff]
    %v3191 = vld [vmem:[#allocation2 + $0x410] sm:$0xff]
    %v3192 = vld [vmem:[#allocation2 + $0x418] sm:$0xff]
    %v3193 = vld [vmem:[#allocation2 + $0x420] sm:$0xff]
    %v3194 = vld [vmem:[#allocation2 + $0x428] sm:$0xff]
    %v3195 = vld [vmem:[#allocation2 + $0x430] sm:$0xff]
    %v3196 = vld [vmem:[#allocation2 + $0x438] sm:$0xff]
    %v3197 = vld [vmem:[#allocation2 + $0x440] sm:$0xff]
    %v3198 = vld [vmem:[#allocation2 + $0x448] sm:$0xff]
    %v3199 = vld [vmem:[#allocation2 + $0x450] sm:$0xff]
    %v3200 = vld [vmem:[#allocation2 + $0x458] sm:$0xff]
    %v3201 = vld [vmem:[#allocation2 + $0x460] sm:$0xff]
    %v3202 = vld [vmem:[#allocation2 + $0x468] sm:$0xff]
    %v3203 = vld [vmem:[#allocation2 + $0x470] sm:$0xff]
    %v3204 = vld [vmem:[#allocation2 + $0x478] sm:$0xff]
    %v3205 = vld [vmem:[#allocation2 + $0x480] sm:$0xff]
    %v3206 = vld [vmem:[#allocation2 + $0x488] sm:$0xff]
    %v3207 = vld [vmem:[#allocation2 + $0x490] sm:$0xff]
    %v3208 = vld [vmem:[#allocation2 + $0x498] sm:$0xff]
    %v3209 = vld [vmem:[#allocation2 + $0x4a0] sm:$0xff]
    %v3210 = vld [vmem:[#allocation2 + $0x4a8] sm:$0xff]
    %v3211 = vld [vmem:[#allocation2 + $0x4b0] sm:$0xff]
    %v3212 = vld [vmem:[#allocation2 + $0x4b8] sm:$0xff]
    %v3213 = vld [vmem:[#allocation2 + $0x4c0] sm:$0xff]
    %v3214 = vld [vmem:[#allocation2 + $0x4c8] sm:$0xff]
    %v3215 = vld [vmem:[#allocation2 + $0x4d0] sm:$0xff]
    %v3216 = vld [vmem:[#allocation2 + $0x4d8] sm:$0xff]
    %v3217 = vld [vmem:[#allocation2 + $0x4e0] sm:$0xff]
    %v3218 = vld [vmem:[#allocation2 + $0x4e8] sm:$0xff]
    %v3219 = vld [vmem:[#allocation2 + $0x4f0] sm:$0xff]
    %v3220 = vld [vmem:[#allocation2 + $0x4f8] sm:$0xff]
    %v3221 = vld [vmem:[#allocation2 + $0x500] sm:$0xff]
    %v3222 = vld [vmem:[#allocation2 + $0x508] sm:$0xff]
    %v3223 = vld [vmem:[#allocation2 + $0x510] sm:$0xff]
    %v3224 = vld [vmem:[#allocation2 + $0x518] sm:$0xff]
    %v3225 = vld [vmem:[#allocation2 + $0x520] sm:$0xff]
    %v3226 = vld [vmem:[#allocation2 + $0x528] sm:$0xff]
    %v3227 = vld [vmem:[#allocation2 + $0x530] sm:$0xff]
    %v3228 = vld [vmem:[#allocation2 + $0x538] sm:$0xff]
    %v3229 = vld [vmem:[#allocation2 + $0x540] sm:$0xff]
    %v3230 = vld [vmem:[#allocation2 + $0x548] sm:$0xff]
    %v3231 = vld [vmem:[#allocation2 + $0x550] sm:$0xff]
    %v3232 = vld [vmem:[#allocation2 + $0x558] sm:$0xff]
    %v3233 = vld [vmem:[#allocation2 + $0x560] sm:$0xff]
    %v3234 = vld [vmem:[#allocation2 + $0x568] sm:$0xff]
    %v3235 = vld [vmem:[#allocation2 + $0x570] sm:$0xff]
    %v3236 = vld [vmem:[#allocation2 + $0x578] sm:$0xff]
    %v3237 = vld [vmem:[#allocation2 + $0x580] sm:$0xff]
    %v3238 = vld [vmem:[#allocation2 + $0x588] sm:$0xff]
    %v3239 = vld [vmem:[#allocation2 + $0x590] sm:$0xff]
    %v3240 = vld [vmem:[#allocation2 + $0x598] sm:$0xff]
    %v3241 = vld [vmem:[#allocation2 + $0x5a0] sm:$0xff]
    %v3242 = vld [vmem:[#allocation2 + $0x5a8] sm:$0xff]
    %v3243 = vld [vmem:[#allocation2 + $0x5b0] sm:$0xff]
    %v3244 = vld [vmem:[#allocation2 + $0x5b8] sm:$0xff]
    %v3245 = vld [vmem:[#allocation2 + $0x5c0] sm:$0xff]
    %v3246 = vld [vmem:[#allocation2 + $0x5c8] sm:$0xff]
    %v3247 = vld [vmem:[#allocation2 + $0x5d0] sm:$0xff]
    %v3248 = vld [vmem:[#allocation2 + $0x5d8] sm:$0xff]
    %v3249 = vld [vmem:[#allocation2 + $0x5e0] sm:$0xff]
    %v3250 = vld [vmem:[#allocation2 + $0x5e8] sm:$0xff]
    %v3251 = vld [vmem:[#allocation2 + $0x5f0] sm:$0xff]
    %v3252 = vld [vmem:[#allocation2 + $0x5f8] sm:$0xff]
    %v3253 = vld [vmem:[#allocation2 + $0x600] sm:$0xff]
    %v3254 = vld [vmem:[#allocation2 + $0x608] sm:$0xff]
    %v3255 = vld [vmem:[#allocation2 + $0x610] sm:$0xff]
    %v3256 = vld [vmem:[#allocation2 + $0x618] sm:$0xff]
    %v3257 = vld [vmem:[#allocation2 + $0x620] sm:$0xff]
    %v3258 = vld [vmem:[#allocation2 + $0x628] sm:$0xff]
    %v3259 = vld [vmem:[#allocation2 + $0x630] sm:$0xff]
    %v3260 = vld [vmem:[#allocation2 + $0x638] sm:$0xff]
    %v3261 = vld [vmem:[#allocation2 + $0x640] sm:$0xff]
    %v3262 = vld [vmem:[#allocation2 + $0x648] sm:$0xff]
    %v3263 = vld [vmem:[#allocation2 + $0x650] sm:$0xff]
    %v3264 = vld [vmem:[#allocation2 + $0x658] sm:$0xff]
    %v3265 = vld [vmem:[#allocation2 + $0x660] sm:$0xff]
    %v3266 = vld [vmem:[#allocation2 + $0x668] sm:$0xff]
    %v3267 = vld [vmem:[#allocation2 + $0x670] sm:$0xff]
    %v3268 = vld [vmem:[#allocation2 + $0x678] sm:$0xff]
    %v3269 = vld [vmem:[#allocation2 + $0x680] sm:$0xff]
    %v3270 = vld [vmem:[#allocation2 + $0x688] sm:$0xff]
    %v3271 = vld [vmem:[#allocation2 + $0x690] sm:$0xff]
    %v3272 = vld [vmem:[#allocation2 + $0x698] sm:$0xff]
    %v3273 = vld [vmem:[#allocation2 + $0x6a0] sm:$0xff]
    %v3274 = vld [vmem:[#allocation2 + $0x6a8] sm:$0xff]
    %v3275 = vld [vmem:[#allocation2 + $0x6b0] sm:$0xff]
    %v3276 = vld [vmem:[#allocation2 + $0x6b8] sm:$0xff]
    %v3277 = vld [vmem:[#allocation2 + $0x6c0] sm:$0xff]
    %v3278 = vld [vmem:[#allocation2 + $0x6c8] sm:$0xff]
    %v3279 = vld [vmem:[#allocation2 + $0x6d0] sm:$0xff]
    %v3280 = vld [vmem:[#allocation2 + $0x6d8] sm:$0xff]
    %v3281 = vld [vmem:[#allocation2 + $0x6e0] sm:$0xff]
    %v3282 = vld [vmem:[#allocation2 + $0x6e8] sm:$0xff]
    %v3283 = vld [vmem:[#allocation2 + $0x6f0] sm:$0xff]
    %v3284 = vld [vmem:[#allocation2 + $0x6f8] sm:$0xff]
    %v3285 = vld [vmem:[#allocation2 + $0x700] sm:$0xff]
    %v3286 = vld [vmem:[#allocation2 + $0x708] sm:$0xff]
    %v3287 = vld [vmem:[#allocation2 + $0x710] sm:$0xff]
    %v3288 = vld [vmem:[#allocation2 + $0x718] sm:$0xff]
    %v3289 = vld [vmem:[#allocation2 + $0x720] sm:$0xff]
    %v3290 = vld [vmem:[#allocation2 + $0x728] sm:$0xff]
    %v3291 = vld [vmem:[#allocation2 + $0x730] sm:$0xff]
    %v3292 = vld [vmem:[#allocation2 + $0x738] sm:$0xff]
    %v3293 = vld [vmem:[#allocation2 + $0x740] sm:$0xff]
    %v3294 = vld [vmem:[#allocation2 + $0x748] sm:$0xff]
    %v3295 = vld [vmem:[#allocation2 + $0x750] sm:$0xff]
    %v3296 = vld [vmem:[#allocation2 + $0x758] sm:$0xff]
    %v3297 = vld [vmem:[#allocation2 + $0x760] sm:$0xff]
    %v3298 = vld [vmem:[#allocation2 + $0x768] sm:$0xff]
    %v3299 = vld [vmem:[#allocation2 + $0x770] sm:$0xff]
    %v3300 = vld [vmem:[#allocation2 + $0x778] sm:$0xff]
    %v3301 = vld [vmem:[#allocation2 + $0x780] sm:$0xff]
    %v3302 = vld [vmem:[#allocation2 + $0x788] sm:$0xff]
    %v3303 = vld [vmem:[#allocation2 + $0x790] sm:$0xff]
    %v3304 = vld [vmem:[#allocation2 + $0x798] sm:$0xff]
    %v3305 = vld [vmem:[#allocation2 + $0x7a0] sm:$0xff]
    %v3306 = vld [vmem:[#allocation2 + $0x7a8] sm:$0xff]
    %v3307 = vld [vmem:[#allocation2 + $0x7b0] sm:$0xff]
    %v3308 = vld [vmem:[#allocation2 + $0x7b8] sm:$0xff]
    %v3309 = vld [vmem:[#allocation2 + $0x7c0] sm:$0xff]
    %v3310 = vld [vmem:[#allocation2 + $0x7c8] sm:$0xff]
    %v3311 = vld [vmem:[#allocation2 + $0x7d0] sm:$0xff]
    %v3312 = vld [vmem:[#allocation2 + $0x7d8] sm:$0xff]
    %v3313 = vld [vmem:[#allocation2 + $0x7e0] sm:$0xff]
    %v3314 = vld [vmem:[#allocation2 + $0x7e8] sm:$0xff]
    %v3315 = vld [vmem:[#allocation2 + $0x7f0] sm:$0xff]
    %v3316 = vld [vmem:[#allocation2 + $0x7f8] sm:$0xff]
    %v3317 = vld [vmem:[%s9] sm:$0xff]
    %v3319 = vperm.slane %v3317, 0
    %v3320 = vperm.slane %v3317, 1
    %v3321 = vperm.slane %v3317, 2
    %v3322 = vperm.slane %v3317, 3
    %v3323 = vperm.slane %v3317, 4
    %v3324 = vperm.slane %v3317, 5
    %v3325 = vperm.slane %v3317, 6
    %v3326 = vperm.slane %v3317, 7
    %v3591 = vunpack.c.l.b16 %v3061
    %v3592 = vunpack.c.h.b16 %v3061
    %v3593 = vunpack.c.l.b16 %v3062
    %v3594 = vunpack.c.h.b16 %v3062
    %v3595 = vunpack.c.l.b16 %v3063
    %v3596 = vunpack.c.h.b16 %v3063
    %v3597 = vunpack.c.l.b16 %v3064
    %v3598 = vunpack.c.h.b16 %v3064
    %v3599 = vunpack.c.l.b16 %v3065
    %v3600 = vunpack.c.h.b16 %v3065
    %v3601 = vunpack.c.l.b16 %v3066
    %v3602 = vunpack.c.h.b16 %v3066
    %v3603 = vunpack.c.l.b16 %v3067
    %v3604 = vunpack.c.h.b16 %v3067
    %v3605 = vunpack.c.l.b16 %v3068
    %v3606 = vunpack.c.h.b16 %v3068
    %v3607 = vunpack.c.l.b16 %v3069
    %v3608 = vunpack.c.h.b16 %v3069
    %v3609 = vunpack.c.l.b16 %v3070
    %v3610 = vunpack.c.h.b16 %v3070
    %v3611 = vunpack.c.l.b16 %v3071
    %v3612 = vunpack.c.h.b16 %v3071
    %v3613 = vunpack.c.l.b16 %v3072
    %v3614 = vunpack.c.h.b16 %v3072
    %v3615 = vunpack.c.l.b16 %v3073
    %v3616 = vunpack.c.h.b16 %v3073
    %v3617 = vunpack.c.l.b16 %v3074
    %v3618 = vunpack.c.h.b16 %v3074
    %v3619 = vunpack.c.l.b16 %v3075
    %v3620 = vunpack.c.h.b16 %v3075
    %v3621 = vunpack.c.l.b16 %v3076
    %v3622 = vunpack.c.h.b16 %v3076
    %v3623 = vunpack.c.l.b16 %v3077
    %v3624 = vunpack.c.h.b16 %v3077
    %v3625 = vunpack.c.l.b16 %v3078
    %v3626 = vunpack.c.h.b16 %v3078
    %v3627 = vunpack.c.l.b16 %v3079
    %v3628 = vunpack.c.h.b16 %v3079
    %v3629 = vunpack.c.l.b16 %v3080
    %v3630 = vunpack.c.h.b16 %v3080
    %v3631 = vunpack.c.l.b16 %v3081
    %v3632 = vunpack.c.h.b16 %v3081
    %v3633 = vunpack.c.l.b16 %v3082
    %v3634 = vunpack.c.h.b16 %v3082
    %v3635 = vunpack.c.l.b16 %v3083
    %v3636 = vunpack.c.h.b16 %v3083
    %v3637 = vunpack.c.l.b16 %v3084
    %v3638 = vunpack.c.h.b16 %v3084
    %v3639 = vunpack.c.l.b16 %v3085
    %v3640 = vunpack.c.h.b16 %v3085
    %v3641 = vunpack.c.l.b16 %v3086
    %v3642 = vunpack.c.h.b16 %v3086
    %v3643 = vunpack.c.l.b16 %v3087
    %v3644 = vunpack.c.h.b16 %v3087
    %v3645 = vunpack.c.l.b16 %v3088
    %v3646 = vunpack.c.h.b16 %v3088
    %v3647 = vunpack.c.l.b16 %v3089
    %v3648 = vunpack.c.h.b16 %v3089
    %v3649 = vunpack.c.l.b16 %v3090
    %v3650 = vunpack.c.h.b16 %v3090
    %v3651 = vunpack.c.l.b16 %v3091
    %v3652 = vunpack.c.h.b16 %v3091
    %v3653 = vunpack.c.l.b16 %v3092
    %v3654 = vunpack.c.h.b16 %v3092
    %v3655 = vunpack.c.l.b16 %v3093
    %v3656 = vunpack.c.h.b16 %v3093
    %v3657 = vunpack.c.l.b16 %v3094
    %v3658 = vunpack.c.h.b16 %v3094
    %v3659 = vunpack.c.l.b16 %v3095
    %v3660 = vunpack.c.h.b16 %v3095
    %v3661 = vunpack.c.l.b16 %v3096
    %v3662 = vunpack.c.h.b16 %v3096
    %v3663 = vunpack.c.l.b16 %v3097
    %v3664 = vunpack.c.h.b16 %v3097
    %v3665 = vunpack.c.l.b16 %v3098
    %v3666 = vunpack.c.h.b16 %v3098
    %v3667 = vunpack.c.l.b16 %v3099
    %v3668 = vunpack.c.h.b16 %v3099
    %v3669 = vunpack.c.l.b16 %v3100
    %v3670 = vunpack.c.h.b16 %v3100
    %v3671 = vunpack.c.l.b16 %v3101
    %v3672 = vunpack.c.h.b16 %v3101
    %v3673 = vunpack.c.l.b16 %v3102
    %v3674 = vunpack.c.h.b16 %v3102
    %v3675 = vunpack.c.l.b16 %v3103
    %v3676 = vunpack.c.h.b16 %v3103
    %v3677 = vunpack.c.l.b16 %v3104
    %v3678 = vunpack.c.h.b16 %v3104
    %v3679 = vunpack.c.l.b16 %v3105
    %v3680 = vunpack.c.h.b16 %v3105
    %v3681 = vunpack.c.l.b16 %v3106
    %v3682 = vunpack.c.h.b16 %v3106
    %v3683 = vunpack.c.l.b16 %v3107
    %v3684 = vunpack.c.h.b16 %v3107
    %v3685 = vunpack.c.l.b16 %v3108
    %v3686 = vunpack.c.h.b16 %v3108
    %v3687 = vunpack.c.l.b16 %v3109
    %v3688 = vunpack.c.h.b16 %v3109
    %v3689 = vunpack.c.l.b16 %v3110
    %v3690 = vunpack.c.h.b16 %v3110
    %v3691 = vunpack.c.l.b16 %v3111
    %v3692 = vunpack.c.h.b16 %v3111
    %v3693 = vunpack.c.l.b16 %v3112
    %v3694 = vunpack.c.h.b16 %v3112
    %v3695 = vunpack.c.l.b16 %v3113
    %v3696 = vunpack.c.h.b16 %v3113
    %v3697 = vunpack.c.l.b16 %v3114
    %v3698 = vunpack.c.h.b16 %v3114
    %v3699 = vunpack.c.l.b16 %v3115
    %v3700 = vunpack.c.h.b16 %v3115
    %v3701 = vunpack.c.l.b16 %v3116
    %v3702 = vunpack.c.h.b16 %v3116
    %v3703 = vunpack.c.l.b16 %v3117
    %v3704 = vunpack.c.h.b16 %v3117
    %v3705 = vunpack.c.l.b16 %v3118
    %v3706 = vunpack.c.h.b16 %v3118
    %v3707 = vunpack.c.l.b16 %v3119
    %v3708 = vunpack.c.h.b16 %v3119
    %v3709 = vunpack.c.l.b16 %v3120
    %v3710 = vunpack.c.h.b16 %v3120
    %v3711 = vunpack.c.l.b16 %v3121
    %v3712 = vunpack.c.h.b16 %v3121
    %v3713 = vunpack.c.l.b16 %v3122
    %v3714 = vunpack.c.h.b16 %v3122
    %v3715 = vunpack.c.l.b16 %v3123
    %v3716 = vunpack.c.h.b16 %v3123
    %v3717 = vunpack.c.l.b16 %v3124
    %v3718 = vunpack.c.h.b16 %v3124
    %v3719 = vunpack.c.l.b16 %v3125
    %v3720 = vunpack.c.h.b16 %v3125
    %v3721 = vunpack.c.l.b16 %v3126
    %v3722 = vunpack.c.h.b16 %v3126
    %v3723 = vunpack.c.l.b16 %v3127
    %v3724 = vunpack.c.h.b16 %v3127
    %v3725 = vunpack.c.l.b16 %v3128
    %v3726 = vunpack.c.h.b16 %v3128
    %v3727 = vunpack.c.l.b16 %v3129
    %v3728 = vunpack.c.h.b16 %v3129
    %v3729 = vunpack.c.l.b16 %v3130
    %v3730 = vunpack.c.h.b16 %v3130
    %v3731 = vunpack.c.l.b16 %v3131
    %v3732 = vunpack.c.h.b16 %v3131
    %v3733 = vunpack.c.l.b16 %v3132
    %v3734 = vunpack.c.h.b16 %v3132
    %v3735 = vunpack.c.l.b16 %v3133
    %v3736 = vunpack.c.h.b16 %v3133
    %v3737 = vunpack.c.l.b16 %v3134
    %v3738 = vunpack.c.h.b16 %v3134
    %v3739 = vunpack.c.l.b16 %v3135
    %v3740 = vunpack.c.h.b16 %v3135
    %v3741 = vunpack.c.l.b16 %v3136
    %v3742 = vunpack.c.h.b16 %v3136
    %v3743 = vunpack.c.l.b16 %v3137
    %v3744 = vunpack.c.h.b16 %v3137
    %v3745 = vunpack.c.l.b16 %v3138
    %v3746 = vunpack.c.h.b16 %v3138
    %v3747 = vunpack.c.l.b16 %v3139
    %v3748 = vunpack.c.h.b16 %v3139
    %v3749 = vunpack.c.l.b16 %v3140
    %v3750 = vunpack.c.h.b16 %v3140
    %v3751 = vunpack.c.l.b16 %v3141
    %v3752 = vunpack.c.h.b16 %v3141
    %v3753 = vunpack.c.l.b16 %v3142
    %v3754 = vunpack.c.h.b16 %v3142
    %v3755 = vunpack.c.l.b16 %v3143
    %v3756 = vunpack.c.h.b16 %v3143
    %v3757 = vunpack.c.l.b16 %v3144
    %v3758 = vunpack.c.h.b16 %v3144
    %v3759 = vunpack.c.l.b16 %v3145
    %v3760 = vunpack.c.h.b16 %v3145
    %v3761 = vunpack.c.l.b16 %v3146
    %v3762 = vunpack.c.h.b16 %v3146
    %v3763 = vunpack.c.l.b16 %v3147
    %v3764 = vunpack.c.h.b16 %v3147
    %v3765 = vunpack.c.l.b16 %v3148
    %v3766 = vunpack.c.h.b16 %v3148
    %v3767 = vunpack.c.l.b16 %v3149
    %v3768 = vunpack.c.h.b16 %v3149
    %v3769 = vunpack.c.l.b16 %v3150
    %v3770 = vunpack.c.h.b16 %v3150
    %v3771 = vunpack.c.l.b16 %v3151
    %v3772 = vunpack.c.h.b16 %v3151
    %v3773 = vunpack.c.l.b16 %v3152
    %v3774 = vunpack.c.h.b16 %v3152
    %v3775 = vunpack.c.l.b16 %v3153
    %v3776 = vunpack.c.h.b16 %v3153
    %v3777 = vunpack.c.l.b16 %v3154
    %v3778 = vunpack.c.h.b16 %v3154
    %v3779 = vunpack.c.l.b16 %v3155
    %v3780 = vunpack.c.h.b16 %v3155
    %v3781 = vunpack.c.l.b16 %v3156
    %v3782 = vunpack.c.h.b16 %v3156
    %v3783 = vunpack.c.l.b16 %v3157
    %v3784 = vunpack.c.h.b16 %v3157
    %v3785 = vunpack.c.l.b16 %v3158
    %v3786 = vunpack.c.h.b16 %v3158
    %v3787 = vunpack.c.l.b16 %v3159
    %v3788 = vunpack.c.h.b16 %v3159
    %v3789 = vunpack.c.l.b16 %v3160
    %v3790 = vunpack.c.h.b16 %v3160
    %v3791 = vunpack.c.l.b16 %v3161
    %v3792 = vunpack.c.h.b16 %v3161
    %v3793 = vunpack.c.l.b16 %v3162
    %v3794 = vunpack.c.h.b16 %v3162
    %v3795 = vunpack.c.l.b16 %v3163
    %v3796 = vunpack.c.h.b16 %v3163
    %v3797 = vunpack.c.l.b16 %v3164
    %v3798 = vunpack.c.h.b16 %v3164
    %v3799 = vunpack.c.l.b16 %v3165
    %v3800 = vunpack.c.h.b16 %v3165
    %v3801 = vunpack.c.l.b16 %v3166
    %v3802 = vunpack.c.h.b16 %v3166
    %v3803 = vunpack.c.l.b16 %v3167
    %v3804 = vunpack.c.h.b16 %v3167
    %v3805 = vunpack.c.l.b16 %v3168
    %v3806 = vunpack.c.h.b16 %v3168
    %v3807 = vunpack.c.l.b16 %v3169
    %v3808 = vunpack.c.h.b16 %v3169
    %v3809 = vunpack.c.l.b16 %v3170
    %v3810 = vunpack.c.h.b16 %v3170
    %v3811 = vunpack.c.l.b16 %v3171
    %v3812 = vunpack.c.h.b16 %v3171
    %v3813 = vunpack.c.l.b16 %v3172
    %v3814 = vunpack.c.h.b16 %v3172
    %v3815 = vunpack.c.l.b16 %v3173
    %v3816 = vunpack.c.h.b16 %v3173
    %v3817 = vunpack.c.l.b16 %v3174
    %v3818 = vunpack.c.h.b16 %v3174
    %v3819 = vunpack.c.l.b16 %v3175
    %v3820 = vunpack.c.h.b16 %v3175
    %v3821 = vunpack.c.l.b16 %v3176
    %v3822 = vunpack.c.h.b16 %v3176
    %v3823 = vunpack.c.l.b16 %v3177
    %v3824 = vunpack.c.h.b16 %v3177
    %v3825 = vunpack.c.l.b16 %v3178
    %v3826 = vunpack.c.h.b16 %v3178
    %v3827 = vunpack.c.l.b16 %v3179
    %v3828 = vunpack.c.h.b16 %v3179
    %v3829 = vunpack.c.l.b16 %v3180
    %v3830 = vunpack.c.h.b16 %v3180
    %v3831 = vunpack.c.l.b16 %v3181
    %v3832 = vunpack.c.h.b16 %v3181
    %v3833 = vunpack.c.l.b16 %v3182
    %v3834 = vunpack.c.h.b16 %v3182
    %v3835 = vunpack.c.l.b16 %v3183
    %v3836 = vunpack.c.h.b16 %v3183
    %v3837 = vunpack.c.l.b16 %v3184
    %v3838 = vunpack.c.h.b16 %v3184
    %v3839 = vunpack.c.l.b16 %v3185
    %v3840 = vunpack.c.h.b16 %v3185
    %v3841 = vunpack.c.l.b16 %v3186
    %v3842 = vunpack.c.h.b16 %v3186
    %v3843 = vunpack.c.l.b16 %v3187
    %v3844 = vunpack.c.h.b16 %v3187
    %v3845 = vunpack.c.l.b16 %v3188
    %v3846 = vunpack.c.h.b16 %v3188
    %v3847 = vunpack.c.l.b16 %v3189
    %v3848 = vunpack.c.h.b16 %v3189
    %v3849 = vunpack.c.l.b16 %v3190
    %v3850 = vunpack.c.h.b16 %v3190
    %v3851 = vunpack.c.l.b16 %v3191
    %v3852 = vunpack.c.h.b16 %v3191
    %v3853 = vunpack.c.l.b16 %v3192
    %v3854 = vunpack.c.h.b16 %v3192
    %v3855 = vunpack.c.l.b16 %v3193
    %v3856 = vunpack.c.h.b16 %v3193
    %v3857 = vunpack.c.l.b16 %v3194
    %v3858 = vunpack.c.h.b16 %v3194
    %v3859 = vunpack.c.l.b16 %v3195
    %v3860 = vunpack.c.h.b16 %v3195
    %v3861 = vunpack.c.l.b16 %v3196
    %v3862 = vunpack.c.h.b16 %v3196
    %v3863 = vunpack.c.l.b16 %v3197
    %v3864 = vunpack.c.h.b16 %v3197
    %v3865 = vunpack.c.l.b16 %v3198
    %v3866 = vunpack.c.h.b16 %v3198
    %v3867 = vunpack.c.l.b16 %v3199
    %v3868 = vunpack.c.h.b16 %v3199
    %v3869 = vunpack.c.l.b16 %v3200
    %v3870 = vunpack.c.h.b16 %v3200
    %v3871 = vunpack.c.l.b16 %v3201
    %v3872 = vunpack.c.h.b16 %v3201
    %v3873 = vunpack.c.l.b16 %v3202
    %v3874 = vunpack.c.h.b16 %v3202
    %v3875 = vunpack.c.l.b16 %v3203
    %v3876 = vunpack.c.h.b16 %v3203
    %v3877 = vunpack.c.l.b16 %v3204
    %v3878 = vunpack.c.h.b16 %v3204
    %v3879 = vunpack.c.l.b16 %v3205
    %v3880 = vunpack.c.h.b16 %v3205
    %v3881 = vunpack.c.l.b16 %v3206
    %v3882 = vunpack.c.h.b16 %v3206
    %v3883 = vunpack.c.l.b16 %v3207
    %v3884 = vunpack.c.h.b16 %v3207
    %v3885 = vunpack.c.l.b16 %v3208
    %v3886 = vunpack.c.h.b16 %v3208
    %v3887 = vunpack.c.l.b16 %v3209
    %v3888 = vunpack.c.h.b16 %v3209
    %v3889 = vunpack.c.l.b16 %v3210
    %v3890 = vunpack.c.h.b16 %v3210
    %v3891 = vunpack.c.l.b16 %v3211
    %v3892 = vunpack.c.h.b16 %v3211
    %v3893 = vunpack.c.l.b16 %v3212
    %v3894 = vunpack.c.h.b16 %v3212
    %v3895 = vunpack.c.l.b16 %v3213
    %v3896 = vunpack.c.h.b16 %v3213
    %v3897 = vunpack.c.l.b16 %v3214
    %v3898 = vunpack.c.h.b16 %v3214
    %v3899 = vunpack.c.l.b16 %v3215
    %v3900 = vunpack.c.h.b16 %v3215
    %v3901 = vunpack.c.l.b16 %v3216
    %v3902 = vunpack.c.h.b16 %v3216
    %v3903 = vunpack.c.l.b16 %v3217
    %v3904 = vunpack.c.h.b16 %v3217
    %v3905 = vunpack.c.l.b16 %v3218
    %v3906 = vunpack.c.h.b16 %v3218
    %v3907 = vunpack.c.l.b16 %v3219
    %v3908 = vunpack.c.h.b16 %v3219
    %v3909 = vunpack.c.l.b16 %v3220
    %v3910 = vunpack.c.h.b16 %v3220
    %v3911 = vunpack.c.l.b16 %v3221
    %v3912 = vunpack.c.h.b16 %v3221
    %v3913 = vunpack.c.l.b16 %v3222
    %v3914 = vunpack.c.h.b16 %v3222
    %v3915 = vunpack.c.l.b16 %v3223
    %v3916 = vunpack.c.h.b16 %v3223
    %v3917 = vunpack.c.l.b16 %v3224
    %v3918 = vunpack.c.h.b16 %v3224
    %v3919 = vunpack.c.l.b16 %v3225
    %v3920 = vunpack.c.h.b16 %v3225
    %v3921 = vunpack.c.l.b16 %v3226
    %v3922 = vunpack.c.h.b16 %v3226
    %v3923 = vunpack.c.l.b16 %v3227
    %v3924 = vunpack.c.h.b16 %v3227
    %v3925 = vunpack.c.l.b16 %v3228
    %v3926 = vunpack.c.h.b16 %v3228
    %v3927 = vunpack.c.l.b16 %v3229
    %v3928 = vunpack.c.h.b16 %v3229
    %v3929 = vunpack.c.l.b16 %v3230
    %v3930 = vunpack.c.h.b16 %v3230
    %v3931 = vunpack.c.l.b16 %v3231
    %v3932 = vunpack.c.h.b16 %v3231
    %v3933 = vunpack.c.l.b16 %v3232
    %v3934 = vunpack.c.h.b16 %v3232
    %v3935 = vunpack.c.l.b16 %v3233
    %v3936 = vunpack.c.h.b16 %v3233
    %v3937 = vunpack.c.l.b16 %v3234
    %v3938 = vunpack.c.h.b16 %v3234
    %v3939 = vunpack.c.l.b16 %v3235
    %v3940 = vunpack.c.h.b16 %v3235
    %v3941 = vunpack.c.l.b16 %v3236
    %v3942 = vunpack.c.h.b16 %v3236
    %v3943 = vunpack.c.l.b16 %v3237
    %v3944 = vunpack.c.h.b16 %v3237
    %v3945 = vunpack.c.l.b16 %v3238
    %v3946 = vunpack.c.h.b16 %v3238
    %v3947 = vunpack.c.l.b16 %v3239
    %v3948 = vunpack.c.h.b16 %v3239
    %v3949 = vunpack.c.l.b16 %v3240
    %v3950 = vunpack.c.h.b16 %v3240
    %v3951 = vunpack.c.l.b16 %v3241
    %v3952 = vunpack.c.h.b16 %v3241
    %v3953 = vunpack.c.l.b16 %v3242
    %v3954 = vunpack.c.h.b16 %v3242
    %v3955 = vunpack.c.l.b16 %v3243
    %v3956 = vunpack.c.h.b16 %v3243
    %v3957 = vunpack.c.l.b16 %v3244
    %v3958 = vunpack.c.h.b16 %v3244
    %v3959 = vunpack.c.l.b16 %v3245
    %v3960 = vunpack.c.h.b16 %v3245
    %v3961 = vunpack.c.l.b16 %v3246
    %v3962 = vunpack.c.h.b16 %v3246
    %v3963 = vunpack.c.l.b16 %v3247
    %v3964 = vunpack.c.h.b16 %v3247
    %v3965 = vunpack.c.l.b16 %v3248
    %v3966 = vunpack.c.h.b16 %v3248
    %v3967 = vunpack.c.l.b16 %v3249
    %v3968 = vunpack.c.h.b16 %v3249
    %v3969 = vunpack.c.l.b16 %v3250
    %v3970 = vunpack.c.h.b16 %v3250
    %v3971 = vunpack.c.l.b16 %v3251
    %v3972 = vunpack.c.h.b16 %v3251
    %v3973 = vunpack.c.l.b16 %v3252
    %v3974 = vunpack.c.h.b16 %v3252
    %v3975 = vunpack.c.l.b16 %v3253
    %v3976 = vunpack.c.h.b16 %v3253
    %v3977 = vunpack.c.l.b16 %v3254
    %v3978 = vunpack.c.h.b16 %v3254
    %v3979 = vunpack.c.l.b16 %v3255
    %v3980 = vunpack.c.h.b16 %v3255
    %v3981 = vunpack.c.l.b16 %v3256
    %v3982 = vunpack.c.h.b16 %v3256
    %v3983 = vunpack.c.l.b16 %v3257
    %v3984 = vunpack.c.h.b16 %v3257
    %v3985 = vunpack.c.l.b16 %v3258
    %v3986 = vunpack.c.h.b16 %v3258
    %v3987 = vunpack.c.l.b16 %v3259
    %v3988 = vunpack.c.h.b16 %v3259
    %v3989 = vunpack.c.l.b16 %v3260
    %v3990 = vunpack.c.h.b16 %v3260
    %v3991 = vunpack.c.l.b16 %v3261
    %v3992 = vunpack.c.h.b16 %v3261
    %v3993 = vunpack.c.l.b16 %v3262
    %v3994 = vunpack.c.h.b16 %v3262
    %v3995 = vunpack.c.l.b16 %v3263
    %v3996 = vunpack.c.h.b16 %v3263
    %v3997 = vunpack.c.l.b16 %v3264
    %v3998 = vunpack.c.h.b16 %v3264
    %v3999 = vunpack.c.l.b16 %v3265
    %v4000 = vunpack.c.h.b16 %v3265
    %v4001 = vunpack.c.l.b16 %v3266
    %v4002 = vunpack.c.h.b16 %v3266
    %v4003 = vunpack.c.l.b16 %v3267
    %v4004 = vunpack.c.h.b16 %v3267
    %v4005 = vunpack.c.l.b16 %v3268
    %v4006 = vunpack.c.h.b16 %v3268
    %v4007 = vunpack.c.l.b16 %v3269
    %v4008 = vunpack.c.h.b16 %v3269
    %v4009 = vunpack.c.l.b16 %v3270
    %v4010 = vunpack.c.h.b16 %v3270
    %v4011 = vunpack.c.l.b16 %v3271
    %v4012 = vunpack.c.h.b16 %v3271
    %v4013 = vunpack.c.l.b16 %v3272
    %v4014 = vunpack.c.h.b16 %v3272
    %v4015 = vunpack.c.l.b16 %v3273
    %v4016 = vunpack.c.h.b16 %v3273
    %v4017 = vunpack.c.l.b16 %v3274
    %v4018 = vunpack.c.h.b16 %v3274
    %v4019 = vunpack.c.l.b16 %v3275
    %v4020 = vunpack.c.h.b16 %v3275
    %v4021 = vunpack.c.l.b16 %v3276
    %v4022 = vunpack.c.h.b16 %v3276
    %v4023 = vunpack.c.l.b16 %v3277
    %v4024 = vunpack.c.h.b16 %v3277
    %v4025 = vunpack.c.l.b16 %v3278
    %v4026 = vunpack.c.h.b16 %v3278
    %v4027 = vunpack.c.l.b16 %v3279
    %v4028 = vunpack.c.h.b16 %v3279
    %v4029 = vunpack.c.l.b16 %v3280
    %v4030 = vunpack.c.h.b16 %v3280
    %v4031 = vunpack.c.l.b16 %v3281
    %v4032 = vunpack.c.h.b16 %v3281
    %v4033 = vunpack.c.l.b16 %v3282
    %v4034 = vunpack.c.h.b16 %v3282
    %v4035 = vunpack.c.l.b16 %v3283
    %v4036 = vunpack.c.h.b16 %v3283
    %v4037 = vunpack.c.l.b16 %v3284
    %v4038 = vunpack.c.h.b16 %v3284
    %v4039 = vunpack.c.l.b16 %v3285
    %v4040 = vunpack.c.h.b16 %v3285
    %v4041 = vunpack.c.l.b16 %v3286
    %v4042 = vunpack.c.h.b16 %v3286
    %v4043 = vunpack.c.l.b16 %v3287
    %v4044 = vunpack.c.h.b16 %v3287
    %v4045 = vunpack.c.l.b16 %v3288
    %v4046 = vunpack.c.h.b16 %v3288
    %v4047 = vunpack.c.l.b16 %v3289
    %v4048 = vunpack.c.h.b16 %v3289
    %v4049 = vunpack.c.l.b16 %v3290
    %v4050 = vunpack.c.h.b16 %v3290
    %v4051 = vunpack.c.l.b16 %v3291
    %v4052 = vunpack.c.h.b16 %v3291
    %v4053 = vunpack.c.l.b16 %v3292
    %v4054 = vunpack.c.h.b16 %v3292
    %v4055 = vunpack.c.l.b16 %v3293
    %v4056 = vunpack.c.h.b16 %v3293
    %v4057 = vunpack.c.l.b16 %v3294
    %v4058 = vunpack.c.h.b16 %v3294
    %v4059 = vunpack.c.l.b16 %v3295
    %v4060 = vunpack.c.h.b16 %v3295
    %v4061 = vunpack.c.l.b16 %v3296
    %v4062 = vunpack.c.h.b16 %v3296
    %v4063 = vunpack.c.l.b16 %v3297
    %v4064 = vunpack.c.h.b16 %v3297
    %v4065 = vunpack.c.l.b16 %v3298
    %v4066 = vunpack.c.h.b16 %v3298
    %v4067 = vunpack.c.l.b16 %v3299
    %v4068 = vunpack.c.h.b16 %v3299
    %v4069 = vunpack.c.l.b16 %v3300
    %v4070 = vunpack.c.h.b16 %v3300
    %v4071 = vunpack.c.l.b16 %v3301
    %v4072 = vunpack.c.h.b16 %v3301
    %v4073 = vunpack.c.l.b16 %v3302
    %v4074 = vunpack.c.h.b16 %v3302
    %v4075 = vunpack.c.l.b16 %v3303
    %v4076 = vunpack.c.h.b16 %v3303
    %v4077 = vunpack.c.l.b16 %v3304
    %v4078 = vunpack.c.h.b16 %v3304
    %v4079 = vunpack.c.l.b16 %v3305
    %v4080 = vunpack.c.h.b16 %v3305
    %v4081 = vunpack.c.l.b16 %v3306
    %v4082 = vunpack.c.h.b16 %v3306
    %v4083 = vunpack.c.l.b16 %v3307
    %v4084 = vunpack.c.h.b16 %v3307
    %v4085 = vunpack.c.l.b16 %v3308
    %v4086 = vunpack.c.h.b16 %v3308
    %v4087 = vunpack.c.l.b16 %v3309
    %v4088 = vunpack.c.h.b16 %v3309
    %v4089 = vunpack.c.l.b16 %v3310
    %v4090 = vunpack.c.h.b16 %v3310
    %v4091 = vunpack.c.l.b16 %v3311
    %v4092 = vunpack.c.h.b16 %v3311
    %v4093 = vunpack.c.l.b16 %v3312
    %v4094 = vunpack.c.h.b16 %v3312
    %v4095 = vunpack.c.l.b16 %v3313
    %v4096 = vunpack.c.h.b16 %v3313
    %v4097 = vunpack.c.l.b16 %v3314
    %v4098 = vunpack.c.h.b16 %v3314
    %v4099 = vunpack.c.l.b16 %v3315
    %v4100 = vunpack.c.h.b16 %v3315
    %v4101 = vunpack.c.l.b16 %v3316
    %v4102 = vunpack.c.h.b16 %v3316
    %v4103 = vpack.c.b16 %v3599, %v3591
    %v4104 = vpack.c.b16 %v3600, %v3592
    %v4105 = vpack.c.b16 %v3601, %v3593
    %v4106 = vpack.c.b16 %v3602, %v3594
    %v4107 = vpack.c.b16 %v3603, %v3595
    %v4108 = vpack.c.b16 %v3604, %v3596
    %v4109 = vpack.c.b16 %v3605, %v3597
    %v4110 = vpack.c.b16 %v3606, %v3598
    %v4111 = vpack.c.b16 %v3615, %v3607
    %v4112 = vpack.c.b16 %v3616, %v3608
    %v4113 = vpack.c.b16 %v3617, %v3609
    %v4114 = vpack.c.b16 %v3618, %v3610
    %v4115 = vpack.c.b16 %v3619, %v3611
    %v4116 = vpack.c.b16 %v3620, %v3612
    %v4117 = vpack.c.b16 %v3621, %v3613
    %v4118 = vpack.c.b16 %v3622, %v3614
    %v4119 = vpack.c.b16 %v3631, %v3623
    %v4120 = vpack.c.b16 %v3632, %v3624
    %v4121 = vpack.c.b16 %v3633, %v3625
    %v4122 = vpack.c.b16 %v3634, %v3626
    %v4123 = vpack.c.b16 %v3635, %v3627
    %v4124 = vpack.c.b16 %v3636, %v3628
    %v4125 = vpack.c.b16 %v3637, %v3629
    %v4126 = vpack.c.b16 %v3638, %v3630
    %v4127 = vpack.c.b16 %v3647, %v3639
    %v4128 = vpack.c.b16 %v3648, %v3640
    %v4129 = vpack.c.b16 %v3649, %v3641
    %v4130 = vpack.c.b16 %v3650, %v3642
    %v4131 = vpack.c.b16 %v3651, %v3643
    %v4132 = vpack.c.b16 %v3652, %v3644
    %v4133 = vpack.c.b16 %v3653, %v3645
    %v4134 = vpack.c.b16 %v3654, %v3646
    %v4135 = vpack.c.b16 %v3663, %v3655
    %v4136 = vpack.c.b16 %v3664, %v3656
    %v4137 = vpack.c.b16 %v3665, %v3657
    %v4138 = vpack.c.b16 %v3666, %v3658
    %v4139 = vpack.c.b16 %v3667, %v3659
    %v4140 = vpack.c.b16 %v3668, %v3660
    %v4141 = vpack.c.b16 %v3669, %v3661
    %v4142 = vpack.c.b16 %v3670, %v3662
    %v4143 = vpack.c.b16 %v3679, %v3671
    %v4144 = vpack.c.b16 %v3680, %v3672
    %v4145 = vpack.c.b16 %v3681, %v3673
    %v4146 = vpack.c.b16 %v3682, %v3674
    %v4147 = vpack.c.b16 %v3683, %v3675
    %v4148 = vpack.c.b16 %v3684, %v3676
    %v4149 = vpack.c.b16 %v3685, %v3677
    %v4150 = vpack.c.b16 %v3686, %v3678
    %v4151 = vpack.c.b16 %v3695, %v3687
    %v4152 = vpack.c.b16 %v3696, %v3688
    %v4153 = vpack.c.b16 %v3697, %v3689
    %v4154 = vpack.c.b16 %v3698, %v3690
    %v4155 = vpack.c.b16 %v3699, %v3691
    %v4156 = vpack.c.b16 %v3700, %v3692
    %v4157 = vpack.c.b16 %v3701, %v3693
    %v4158 = vpack.c.b16 %v3702, %v3694
    %v4159 = vpack.c.b16 %v3711, %v3703
    %v4160 = vpack.c.b16 %v3712, %v3704
    %v4161 = vpack.c.b16 %v3713, %v3705
    %v4162 = vpack.c.b16 %v3714, %v3706
    %v4163 = vpack.c.b16 %v3715, %v3707
    %v4164 = vpack.c.b16 %v3716, %v3708
    %v4165 = vpack.c.b16 %v3717, %v3709
    %v4166 = vpack.c.b16 %v3718, %v3710
    %v4167 = vpack.c.b16 %v3727, %v3719
    %v4168 = vpack.c.b16 %v3728, %v3720
    %v4169 = vpack.c.b16 %v3729, %v3721
    %v4170 = vpack.c.b16 %v3730, %v3722
    %v4171 = vpack.c.b16 %v3731, %v3723
    %v4172 = vpack.c.b16 %v3732, %v3724
    %v4173 = vpack.c.b16 %v3733, %v3725
    %v4174 = vpack.c.b16 %v3734, %v3726
    %v4175 = vpack.c.b16 %v3743, %v3735
    %v4176 = vpack.c.b16 %v3744, %v3736
    %v4177 = vpack.c.b16 %v3745, %v3737
    %v4178 = vpack.c.b16 %v3746, %v3738
    %v4179 = vpack.c.b16 %v3747, %v3739
    %v4180 = vpack.c.b16 %v3748, %v3740
    %v4181 = vpack.c.b16 %v3749, %v3741
    %v4182 = vpack.c.b16 %v3750, %v3742
    %v4183 = vpack.c.b16 %v3759, %v3751
    %v4184 = vpack.c.b16 %v3760, %v3752
    %v4185 = vpack.c.b16 %v3761, %v3753
    %v4186 = vpack.c.b16 %v3762, %v3754
    %v4187 = vpack.c.b16 %v3763, %v3755
    %v4188 = vpack.c.b16 %v3764, %v3756
    %v4189 = vpack.c.b16 %v3765, %v3757
    %v4190 = vpack.c.b16 %v3766, %v3758
    %v4191 = vpack.c.b16 %v3775, %v3767
    %v4192 = vpack.c.b16 %v3776, %v3768
    %v4193 = vpack.c.b16 %v3777, %v3769
    %v4194 = vpack.c.b16 %v3778, %v3770
    %v4195 = vpack.c.b16 %v3779, %v3771
    %v4196 = vpack.c.b16 %v3780, %v3772
    %v4197 = vpack.c.b16 %v3781, %v3773
    %v4198 = vpack.c.b16 %v3782, %v3774
    %v4199 = vpack.c.b16 %v3791, %v3783
    %v4200 = vpack.c.b16 %v3792, %v3784
    %v4201 = vpack.c.b16 %v3793, %v3785
    %v4202 = vpack.c.b16 %v3794, %v3786
    %v4203 = vpack.c.b16 %v3795, %v3787
    %v4204 = vpack.c.b16 %v3796, %v3788
    %v4205 = vpack.c.b16 %v3797, %v3789
    %v4206 = vpack.c.b16 %v3798, %v3790
    %v4207 = vpack.c.b16 %v3807, %v3799
    %v4208 = vpack.c.b16 %v3808, %v3800
    %v4209 = vpack.c.b16 %v3809, %v3801
    %v4210 = vpack.c.b16 %v3810, %v3802
    %v4211 = vpack.c.b16 %v3811, %v3803
    %v4212 = vpack.c.b16 %v3812, %v3804
    %v4213 = vpack.c.b16 %v3813, %v3805
    %v4214 = vpack.c.b16 %v3814, %v3806
    %v4215 = vpack.c.b16 %v3823, %v3815
    %v4216 = vpack.c.b16 %v3824, %v3816
    %v4217 = vpack.c.b16 %v3825, %v3817
    %v4218 = vpack.c.b16 %v3826, %v3818
    %v4219 = vpack.c.b16 %v3827, %v3819
    %v4220 = vpack.c.b16 %v3828, %v3820
    %v4221 = vpack.c.b16 %v3829, %v3821
    %v4222 = vpack.c.b16 %v3830, %v3822
    %v4223 = vpack.c.b16 %v3839, %v3831
    %v4224 = vpack.c.b16 %v3840, %v3832
    %v4225 = vpack.c.b16 %v3841, %v3833
    %v4226 = vpack.c.b16 %v3842, %v3834
    %v4227 = vpack.c.b16 %v3843, %v3835
    %v4228 = vpack.c.b16 %v3844, %v3836
    %v4229 = vpack.c.b16 %v3845, %v3837
    %v4230 = vpack.c.b16 %v3846, %v3838
    %v4231 = vpack.c.b16 %v3855, %v3847
    %v4232 = vpack.c.b16 %v3856, %v3848
    %v4233 = vpack.c.b16 %v3857, %v3849
    %v4234 = vpack.c.b16 %v3858, %v3850
    %v4235 = vpack.c.b16 %v3859, %v3851
    %v4236 = vpack.c.b16 %v3860, %v3852
    %v4237 = vpack.c.b16 %v3861, %v3853
    %v4238 = vpack.c.b16 %v3862, %v3854
    %v4239 = vpack.c.b16 %v3871, %v3863
    %v4240 = vpack.c.b16 %v3872, %v3864
    %v4241 = vpack.c.b16 %v3873, %v3865
    %v4242 = vpack.c.b16 %v3874, %v3866
    %v4243 = vpack.c.b16 %v3875, %v3867
    %v4244 = vpack.c.b16 %v3876, %v3868
    %v4245 = vpack.c.b16 %v3877, %v3869
    %v4246 = vpack.c.b16 %v3878, %v3870
    %v4247 = vpack.c.b16 %v3887, %v3879
    %v4248 = vpack.c.b16 %v3888, %v3880
    %v4249 = vpack.c.b16 %v3889, %v3881
    %v4250 = vpack.c.b16 %v3890, %v3882
    %v4251 = vpack.c.b16 %v3891, %v3883
    %v4252 = vpack.c.b16 %v3892, %v3884
    %v4253 = vpack.c.b16 %v3893, %v3885
    %v4254 = vpack.c.b16 %v3894, %v3886
    %v4255 = vpack.c.b16 %v3903, %v3895
    %v4256 = vpack.c.b16 %v3904, %v3896
    %v4257 = vpack.c.b16 %v3905, %v3897
    %v4258 = vpack.c.b16 %v3906, %v3898
    %v4259 = vpack.c.b16 %v3907, %v3899
    %v4260 = vpack.c.b16 %v3908, %v3900
    %v4261 = vpack.c.b16 %v3909, %v3901
    %v4262 = vpack.c.b16 %v3910, %v3902
    %v4263 = vpack.c.b16 %v3919, %v3911
    %v4264 = vpack.c.b16 %v3920, %v3912
    %v4265 = vpack.c.b16 %v3921, %v3913
    %v4266 = vpack.c.b16 %v3922, %v3914
    %v4267 = vpack.c.b16 %v3923, %v3915
    %v4268 = vpack.c.b16 %v3924, %v3916
    %v4269 = vpack.c.b16 %v3925, %v3917
    %v4270 = vpack.c.b16 %v3926, %v3918
    %v4271 = vpack.c.b16 %v3935, %v3927
    %v4272 = vpack.c.b16 %v3936, %v3928
    %v4273 = vpack.c.b16 %v3937, %v3929
    %v4274 = vpack.c.b16 %v3938, %v3930
    %v4275 = vpack.c.b16 %v3939, %v3931
    %v4276 = vpack.c.b16 %v3940, %v3932
    %v4277 = vpack.c.b16 %v3941, %v3933
    %v4278 = vpack.c.b16 %v3942, %v3934
    %v4279 = vpack.c.b16 %v3951, %v3943
    %v4280 = vpack.c.b16 %v3952, %v3944
    %v4281 = vpack.c.b16 %v3953, %v3945
    %v4282 = vpack.c.b16 %v3954, %v3946
    %v4283 = vpack.c.b16 %v3955, %v3947
    %v4284 = vpack.c.b16 %v3956, %v3948
    %v4285 = vpack.c.b16 %v3957, %v3949
    %v4286 = vpack.c.b16 %v3958, %v3950
    %v4287 = vpack.c.b16 %v3967, %v3959
    %v4288 = vpack.c.b16 %v3968, %v3960
    %v4289 = vpack.c.b16 %v3969, %v3961
    %v4290 = vpack.c.b16 %v3970, %v3962
    %v4291 = vpack.c.b16 %v3971, %v3963
    %v4292 = vpack.c.b16 %v3972, %v3964
    %v4293 = vpack.c.b16 %v3973, %v3965
    %v4294 = vpack.c.b16 %v3974, %v3966
    %v4295 = vpack.c.b16 %v3983, %v3975
    %v4296 = vpack.c.b16 %v3984, %v3976
    %v4297 = vpack.c.b16 %v3985, %v3977
    %v4298 = vpack.c.b16 %v3986, %v3978
    %v4299 = vpack.c.b16 %v3987, %v3979
    %v4300 = vpack.c.b16 %v3988, %v3980
    %v4301 = vpack.c.b16 %v3989, %v3981
    %v4302 = vpack.c.b16 %v3990, %v3982
    %v4303 = vpack.c.b16 %v3999, %v3991
    %v4304 = vpack.c.b16 %v4000, %v3992
    %v4305 = vpack.c.b16 %v4001, %v3993
    %v4306 = vpack.c.b16 %v4002, %v3994
    %v4307 = vpack.c.b16 %v4003, %v3995
    %v4308 = vpack.c.b16 %v4004, %v3996
    %v4309 = vpack.c.b16 %v4005, %v3997
    %v4310 = vpack.c.b16 %v4006, %v3998
    %v4311 = vpack.c.b16 %v4015, %v4007
    %v4312 = vpack.c.b16 %v4016, %v4008
    %v4313 = vpack.c.b16 %v4017, %v4009
    %v4314 = vpack.c.b16 %v4018, %v4010
    %v4315 = vpack.c.b16 %v4019, %v4011
    %v4316 = vpack.c.b16 %v4020, %v4012
    %v4317 = vpack.c.b16 %v4021, %v4013
    %v4318 = vpack.c.b16 %v4022, %v4014
    %v4319 = vpack.c.b16 %v4031, %v4023
    %v4320 = vpack.c.b16 %v4032, %v4024
    %v4321 = vpack.c.b16 %v4033, %v4025
    %v4322 = vpack.c.b16 %v4034, %v4026
    %v4323 = vpack.c.b16 %v4035, %v4027
    %v4324 = vpack.c.b16 %v4036, %v4028
    %v4325 = vpack.c.b16 %v4037, %v4029
    %v4326 = vpack.c.b16 %v4038, %v4030
    %v4327 = vpack.c.b16 %v4047, %v4039
    %v4328 = vpack.c.b16 %v4048, %v4040
    %v4329 = vpack.c.b16 %v4049, %v4041
    %v4330 = vpack.c.b16 %v4050, %v4042
    %v4331 = vpack.c.b16 %v4051, %v4043
    %v4332 = vpack.c.b16 %v4052, %v4044
    %v4333 = vpack.c.b16 %v4053, %v4045
    %v4334 = vpack.c.b16 %v4054, %v4046
    %v4335 = vpack.c.b16 %v4063, %v4055
    %v4336 = vpack.c.b16 %v4064, %v4056
    %v4337 = vpack.c.b16 %v4065, %v4057
    %v4338 = vpack.c.b16 %v4066, %v4058
    %v4339 = vpack.c.b16 %v4067, %v4059
    %v4340 = vpack.c.b16 %v4068, %v4060
    %v4341 = vpack.c.b16 %v4069, %v4061
    %v4342 = vpack.c.b16 %v4070, %v4062
    %v4343 = vpack.c.b16 %v4079, %v4071
    %v4344 = vpack.c.b16 %v4080, %v4072
    %v4345 = vpack.c.b16 %v4081, %v4073
    %v4346 = vpack.c.b16 %v4082, %v4074
    %v4347 = vpack.c.b16 %v4083, %v4075
    %v4348 = vpack.c.b16 %v4084, %v4076
    %v4349 = vpack.c.b16 %v4085, %v4077
    %v4350 = vpack.c.b16 %v4086, %v4078
    %v4351 = vpack.c.b16 %v4095, %v4087
    %v4352 = vpack.c.b16 %v4096, %v4088
    %v4353 = vpack.c.b16 %v4097, %v4089
    %v4354 = vpack.c.b16 %v4098, %v4090
    %v4355 = vpack.c.b16 %v4099, %v4091
    %v4356 = vpack.c.b16 %v4100, %v4092
    %v4357 = vpack.c.b16 %v4101, %v4093
    %v4358 = vpack.c.b16 %v4102, %v4094
    %4615 = vmatpush.bf16.msra.mxu0 %v4159
    %4616 = vmatpush.bf16.msra.mxu0 %v4151
    %4617 = vmatpush.bf16.msra.mxu0 %v4143
    %4618 = vmatpush.bf16.msra.mxu0 %v4135
    %4619 = vmatpush.bf16.msra.mxu0 %v4127
    %4620 = vmatpush.bf16.msra.mxu0 %v4119
    %4621 = vmatpush.bf16.msra.mxu0 %v4111
    %4622 = vmatpush.bf16.msra.mxu0 %v4103
    %4623 = vmatmul.bf16.gmra.mxu0 %v3057
    %v4624 = vpop.f32.mrf.mxu0
    %v4625 = vadd.f32 %v3319, %v4624
    %v4626 = vpop.f32.mrf.mxu0
    %4627 = vdwg.mxu0
    %4628 = vmatpush.bf16.msra.mxu0 %v4223
    %4629 = vmatpush.bf16.msra.mxu0 %v4215
    %4630 = vmatpush.bf16.msra.mxu0 %v4207
    %4631 = vmatpush.bf16.msra.mxu0 %v4199
    %4632 = vmatpush.bf16.msra.mxu0 %v4191
    %4633 = vmatpush.bf16.msra.mxu0 %v4183
    %4634 = vmatpush.bf16.msra.mxu0 %v4175
    %4635 = vmatpush.bf16.msra.mxu0 %v4167
    %4636 = vmatmul.bf16.gmra.mxu0 %v3058
    %v4637 = vpop.f32.mrf.mxu0
    %v4638 = vadd.f32 %v4625, %v4637
    %v4639 = vpop.f32.mrf.mxu0
    %4640 = vdwg.mxu0
    %4641 = vmatpush.bf16.msra.mxu0 %v4287
    %4642 = vmatpush.bf16.msra.mxu0 %v4279
    %4643 = vmatpush.bf16.msra.mxu0 %v4271
    %4644 = vmatpush.bf16.msra.mxu0 %v4263
    %4645 = vmatpush.bf16.msra.mxu0 %v4255
    %4646 = vmatpush.bf16.msra.mxu0 %v4247
    %4647 = vmatpush.bf16.msra.mxu0 %v4239
    %4648 = vmatpush.bf16.msra.mxu0 %v4231
    %4649 = vmatmul.bf16.gmra.mxu0 %v3059
    %v4650 = vpop.f32.mrf.mxu0
    %v4651 = vadd.f32 %v4638, %v4650
    %v4652 = vpop.f32.mrf.mxu0
    %4653 = vdwg.mxu0
    %4654 = vmatpush.bf16.msra.mxu0 %v4351
    %4655 = vmatpush.bf16.msra.mxu0 %v4343
    %4656 = vmatpush.bf16.msra.mxu0 %v4335
    %4657 = vmatpush.bf16.msra.mxu0 %v4327
    %4658 = vmatpush.bf16.msra.mxu0 %v4319
    %4659 = vmatpush.bf16.msra.mxu0 %v4311
    %4660 = vmatpush.bf16.msra.mxu0 %v4303
    %4661 = vmatpush.bf16.msra.mxu0 %v4295
    %4662 = vmatmul.bf16.gmra.mxu0 %v3060
    %v4663 = vpop.f32.mrf.mxu0
    %v4664 = vadd.f32 %v4651, %v4663
    %v4665 = vpop.f32.mrf.mxu0
    %4666 = vdwg.mxu0
    %4667 = vmatpush.bf16.msra.mxu0 %v4160
    %4668 = vmatpush.bf16.msra.mxu0 %v4152
    %4669 = vmatpush.bf16.msra.mxu0 %v4144
    %4670 = vmatpush.bf16.msra.mxu0 %v4136
    %4671 = vmatpush.bf16.msra.mxu0 %v4128
    %4672 = vmatpush.bf16.msra.mxu0 %v4120
    %4673 = vmatpush.bf16.msra.mxu0 %v4112
    %4674 = vmatpush.bf16.msra.mxu0 %v4104
    %4675 = vmatmul.bf16.gmra.mxu0 %v3057
    %v4676 = vpop.f32.mrf.mxu0
    %v4677 = vadd.f32 %v3320, %v4676
    %v4678 = vpop.f32.mrf.mxu0
    %4679 = vdwg.mxu0
    %4680 = vmatpush.bf16.msra.mxu0 %v4224
    %4681 = vmatpush.bf16.msra.mxu0 %v4216
    %4682 = vmatpush.bf16.msra.mxu0 %v4208
    %4683 = vmatpush.bf16.msra.mxu0 %v4200
    %4684 = vmatpush.bf16.msra.mxu0 %v4192
    %4685 = vmatpush.bf16.msra.mxu0 %v4184
    %4686 = vmatpush.bf16.msra.mxu0 %v4176
    %4687 = vmatpush.bf16.msra.mxu0 %v4168
    %4688 = vmatmul.bf16.gmra.mxu0 %v3058
    %v4689 = vpop.f32.mrf.mxu0
    %v4690 = vadd.f32 %v4677, %v4689
    %v4691 = vpop.f32.mrf.mxu0
    %4692 = vdwg.mxu0
    %4693 = vmatpush.bf16.msra.mxu0 %v4288
    %4694 = vmatpush.bf16.msra.mxu0 %v4280
    %4695 = vmatpush.bf16.msra.mxu0 %v4272
    %4696 = vmatpush.bf16.msra.mxu0 %v4264
    %4697 = vmatpush.bf16.msra.mxu0 %v4256
    %4698 = vmatpush.bf16.msra.mxu0 %v4248
    %4699 = vmatpush.bf16.msra.mxu0 %v4240
    %4700 = vmatpush.bf16.msra.mxu0 %v4232
    %4701 = vmatmul.bf16.gmra.mxu0 %v3059
    %v4702 = vpop.f32.mrf.mxu0
    %v4703 = vadd.f32 %v4690, %v4702
    %v4704 = vpop.f32.mrf.mxu0
    %4705 = vdwg.mxu0
    %4706 = vmatpush.bf16.msra.mxu0 %v4352
    %4707 = vmatpush.bf16.msra.mxu0 %v4344
    %4708 = vmatpush.bf16.msra.mxu0 %v4336
    %4709 = vmatpush.bf16.msra.mxu0 %v4328
    %4710 = vmatpush.bf16.msra.mxu0 %v4320
    %4711 = vmatpush.bf16.msra.mxu0 %v4312
    %4712 = vmatpush.bf16.msra.mxu0 %v4304
    %4713 = vmatpush.bf16.msra.mxu0 %v4296
    %4714 = vmatmul.bf16.gmra.mxu0 %v3060
    %v4715 = vpop.f32.mrf.mxu0
    %v4716 = vadd.f32 %v4703, %v4715
    %v4717 = vpop.f32.mrf.mxu0
    %4718 = vdwg.mxu0
    %4719 = vmatpush.bf16.msra.mxu0 %v4161
    %4720 = vmatpush.bf16.msra.mxu0 %v4153
    %4721 = vmatpush.bf16.msra.mxu0 %v4145
    %4722 = vmatpush.bf16.msra.mxu0 %v4137
    %4723 = vmatpush.bf16.msra.mxu0 %v4129
    %4724 = vmatpush.bf16.msra.mxu0 %v4121
    %4725 = vmatpush.bf16.msra.mxu0 %v4113
    %4726 = vmatpush.bf16.msra.mxu0 %v4105
    %4727 = vmatmul.bf16.gmra.mxu0 %v3057
    %v4728 = vpop.f32.mrf.mxu0
    %v4729 = vadd.f32 %v3321, %v4728
    %v4730 = vpop.f32.mrf.mxu0
    %4731 = vdwg.mxu0
    %4732 = vmatpush.bf16.msra.mxu0 %v4225
    %4733 = vmatpush.bf16.msra.mxu0 %v4217
    %4734 = vmatpush.bf16.msra.mxu0 %v4209
    %4735 = vmatpush.bf16.msra.mxu0 %v4201
    %4736 = vmatpush.bf16.msra.mxu0 %v4193
    %4737 = vmatpush.bf16.msra.mxu0 %v4185
    %4738 = vmatpush.bf16.msra.mxu0 %v4177
    %4739 = vmatpush.bf16.msra.mxu0 %v4169
    %4740 = vmatmul.bf16.gmra.mxu0 %v3058
    %v4741 = vpop.f32.mrf.mxu0
    %v4742 = vadd.f32 %v4729, %v4741
    %v4743 = vpop.f32.mrf.mxu0
    %4744 = vdwg.mxu0
    %4745 = vmatpush.bf16.msra.mxu0 %v4289
    %4746 = vmatpush.bf16.msra.mxu0 %v4281
    %4747 = vmatpush.bf16.msra.mxu0 %v4273
    %4748 = vmatpush.bf16.msra.mxu0 %v4265
    %4749 = vmatpush.bf16.msra.mxu0 %v4257
    %4750 = vmatpush.bf16.msra.mxu0 %v4249
    %4751 = vmatpush.bf16.msra.mxu0 %v4241
    %4752 = vmatpush.bf16.msra.mxu0 %v4233
    %4753 = vmatmul.bf16.gmra.mxu0 %v3059
    %v4754 = vpop.f32.mrf.mxu0
    %v4755 = vadd.f32 %v4742, %v4754
    %v4756 = vpop.f32.mrf.mxu0
    %4757 = vdwg.mxu0
    %4758 = vmatpush.bf16.msra.mxu0 %v4353
    %4759 = vmatpush.bf16.msra.mxu0 %v4345
    %4760 = vmatpush.bf16.msra.mxu0 %v4337
    %4761 = vmatpush.bf16.msra.mxu0 %v4329
    %4762 = vmatpush.bf16.msra.mxu0 %v4321
    %4763 = vmatpush.bf16.msra.mxu0 %v4313
    %4764 = vmatpush.bf16.msra.mxu0 %v4305
    %4765 = vmatpush.bf16.msra.mxu0 %v4297
    %4766 = vmatmul.bf16.gmra.mxu0 %v3060
    %v4767 = vpop.f32.mrf.mxu0
    %v4768 = vadd.f32 %v4755, %v4767
    %v4769 = vpop.f32.mrf.mxu0
    %4770 = vdwg.mxu0
    %4771 = vmatpush.bf16.msra.mxu0 %v4162
    %4772 = vmatpush.bf16.msra.mxu0 %v4154
    %4773 = vmatpush.bf16.msra.mxu0 %v4146
    %4774 = vmatpush.bf16.msra.mxu0 %v4138
    %4775 = vmatpush.bf16.msra.mxu0 %v4130
    %4776 = vmatpush.bf16.msra.mxu0 %v4122
    %4777 = vmatpush.bf16.msra.mxu0 %v4114
    %4778 = vmatpush.bf16.msra.mxu0 %v4106
    %4779 = vmatmul.bf16.gmra.mxu0 %v3057
    %v4780 = vpop.f32.mrf.mxu0
    %v4781 = vadd.f32 %v3322, %v4780
    %v4782 = vpop.f32.mrf.mxu0
    %4783 = vdwg.mxu0
    %4784 = vmatpush.bf16.msra.mxu0 %v4226
    %4785 = vmatpush.bf16.msra.mxu0 %v4218
    %4786 = vmatpush.bf16.msra.mxu0 %v4210
    %4787 = vmatpush.bf16.msra.mxu0 %v4202
    %4788 = vmatpush.bf16.msra.mxu0 %v4194
    %4789 = vmatpush.bf16.msra.mxu0 %v4186
    %4790 = vmatpush.bf16.msra.mxu0 %v4178
    %4791 = vmatpush.bf16.msra.mxu0 %v4170
    %4792 = vmatmul.bf16.gmra.mxu0 %v3058
    %v4793 = vpop.f32.mrf.mxu0
    %v4794 = vadd.f32 %v4781, %v4793
    %v4795 = vpop.f32.mrf.mxu0
    %4796 = vdwg.mxu0
    %4797 = vmatpush.bf16.msra.mxu0 %v4290
    %4798 = vmatpush.bf16.msra.mxu0 %v4282
    %4799 = vmatpush.bf16.msra.mxu0 %v4274
    %4800 = vmatpush.bf16.msra.mxu0 %v4266
    %4801 = vmatpush.bf16.msra.mxu0 %v4258
    %4802 = vmatpush.bf16.msra.mxu0 %v4250
    %4803 = vmatpush.bf16.msra.mxu0 %v4242
    %4804 = vmatpush.bf16.msra.mxu0 %v4234
    %4805 = vmatmul.bf16.gmra.mxu0 %v3059
    %v4806 = vpop.f32.mrf.mxu0
    %v4807 = vadd.f32 %v4794, %v4806
    %v4808 = vpop.f32.mrf.mxu0
    %4809 = vdwg.mxu0
    %4810 = vmatpush.bf16.msra.mxu0 %v4354
    %4811 = vmatpush.bf16.msra.mxu0 %v4346
    %4812 = vmatpush.bf16.msra.mxu0 %v4338
    %4813 = vmatpush.bf16.msra.mxu0 %v4330
    %4814 = vmatpush.bf16.msra.mxu0 %v4322
    %4815 = vmatpush.bf16.msra.mxu0 %v4314
    %4816 = vmatpush.bf16.msra.mxu0 %v4306
    %4817 = vmatpush.bf16.msra.mxu0 %v4298
    %4818 = vmatmul.bf16.gmra.mxu0 %v3060
    %v4819 = vpop.f32.mrf.mxu0
    %v4820 = vadd.f32 %v4807, %v4819
    %v4821 = vpop.f32.mrf.mxu0
    %4822 = vdwg.mxu0
    %4823 = vmatpush.bf16.msra.mxu0 %v4163
    %4824 = vmatpush.bf16.msra.mxu0 %v4155
    %4825 = vmatpush.bf16.msra.mxu0 %v4147
    %4826 = vmatpush.bf16.msra.mxu0 %v4139
    %4827 = vmatpush.bf16.msra.mxu0 %v4131
    %4828 = vmatpush.bf16.msra.mxu0 %v4123
    %4829 = vmatpush.bf16.msra.mxu0 %v4115
    %4830 = vmatpush.bf16.msra.mxu0 %v4107
    %4831 = vmatmul.bf16.gmra.mxu0 %v3057
    %v4832 = vpop.f32.mrf.mxu0
    %v4833 = vadd.f32 %v3323, %v4832
    %v4834 = vpop.f32.mrf.mxu0
    %4835 = vdwg.mxu0
    %4836 = vmatpush.bf16.msra.mxu0 %v4227
    %4837 = vmatpush.bf16.msra.mxu0 %v4219
    %4838 = vmatpush.bf16.msra.mxu0 %v4211
    %4839 = vmatpush.bf16.msra.mxu0 %v4203
    %4840 = vmatpush.bf16.msra.mxu0 %v4195
    %4841 = vmatpush.bf16.msra.mxu0 %v4187
    %4842 = vmatpush.bf16.msra.mxu0 %v4179
    %4843 = vmatpush.bf16.msra.mxu0 %v4171
    %4844 = vmatmul.bf16.gmra.mxu0 %v3058
    %v4845 = vpop.f32.mrf.mxu0
    %v4846 = vadd.f32 %v4833, %v4845
    %v4847 = vpop.f32.mrf.mxu0
    %4848 = vdwg.mxu0
    %4849 = vmatpush.bf16.msra.mxu0 %v4291
    %4850 = vmatpush.bf16.msra.mxu0 %v4283
    %4851 = vmatpush.bf16.msra.mxu0 %v4275
    %4852 = vmatpush.bf16.msra.mxu0 %v4267
    %4853 = vmatpush.bf16.msra.mxu0 %v4259
    %4854 = vmatpush.bf16.msra.mxu0 %v4251
    %4855 = vmatpush.bf16.msra.mxu0 %v4243
    %4856 = vmatpush.bf16.msra.mxu0 %v4235
    %4857 = vmatmul.bf16.gmra.mxu0 %v3059
    %v4858 = vpop.f32.mrf.mxu0
    %v4859 = vadd.f32 %v4846, %v4858
    %v4860 = vpop.f32.mrf.mxu0
    %4861 = vdwg.mxu0
    %4862 = vmatpush.bf16.msra.mxu0 %v4355
    %4863 = vmatpush.bf16.msra.mxu0 %v4347
    %4864 = vmatpush.bf16.msra.mxu0 %v4339
    %4865 = vmatpush.bf16.msra.mxu0 %v4331
    %4866 = vmatpush.bf16.msra.mxu0 %v4323
    %4867 = vmatpush.bf16.msra.mxu0 %v4315
    %4868 = vmatpush.bf16.msra.mxu0 %v4307
    %4869 = vmatpush.bf16.msra.mxu0 %v4299
    %4870 = vmatmul.bf16.gmra.mxu0 %v3060
    %v4871 = vpop.f32.mrf.mxu0
    %v4872 = vadd.f32 %v4859, %v4871
    %v4873 = vpop.f32.mrf.mxu0
    %4874 = vdwg.mxu0
    %4875 = vmatpush.bf16.msra.mxu0 %v4164
    %4876 = vmatpush.bf16.msra.mxu0 %v4156
    %4877 = vmatpush.bf16.msra.mxu0 %v4148
    %4878 = vmatpush.bf16.msra.mxu0 %v4140
    %4879 = vmatpush.bf16.msra.mxu0 %v4132
    %4880 = vmatpush.bf16.msra.mxu0 %v4124
    %4881 = vmatpush.bf16.msra.mxu0 %v4116
    %4882 = vmatpush.bf16.msra.mxu0 %v4108
    %4883 = vmatmul.bf16.gmra.mxu0 %v3057
    %v4884 = vpop.f32.mrf.mxu0
    %v4885 = vadd.f32 %v3324, %v4884
    %v4886 = vpop.f32.mrf.mxu0
    %4887 = vdwg.mxu0
    %4888 = vmatpush.bf16.msra.mxu0 %v4228
    %4889 = vmatpush.bf16.msra.mxu0 %v4220
    %4890 = vmatpush.bf16.msra.mxu0 %v4212
    %4891 = vmatpush.bf16.msra.mxu0 %v4204
    %4892 = vmatpush.bf16.msra.mxu0 %v4196
    %4893 = vmatpush.bf16.msra.mxu0 %v4188
    %4894 = vmatpush.bf16.msra.mxu0 %v4180
    %4895 = vmatpush.bf16.msra.mxu0 %v4172
    %4896 = vmatmul.bf16.gmra.mxu0 %v3058
    %v4897 = vpop.f32.mrf.mxu0
    %v4898 = vadd.f32 %v4885, %v4897
    %v4899 = vpop.f32.mrf.mxu0
    %4900 = vdwg.mxu0
    %4901 = vmatpush.bf16.msra.mxu0 %v4292
    %4902 = vmatpush.bf16.msra.mxu0 %v4284
    %4903 = vmatpush.bf16.msra.mxu0 %v4276
    %4904 = vmatpush.bf16.msra.mxu0 %v4268
    %4905 = vmatpush.bf16.msra.mxu0 %v4260
    %4906 = vmatpush.bf16.msra.mxu0 %v4252
    %4907 = vmatpush.bf16.msra.mxu0 %v4244
    %4908 = vmatpush.bf16.msra.mxu0 %v4236
    %4909 = vmatmul.bf16.gmra.mxu0 %v3059
    %v4910 = vpop.f32.mrf.mxu0
    %v4911 = vadd.f32 %v4898, %v4910
    %v4912 = vpop.f32.mrf.mxu0
    %4913 = vdwg.mxu0
    %4914 = vmatpush.bf16.msra.mxu0 %v4356
    %4915 = vmatpush.bf16.msra.mxu0 %v4348
    %4916 = vmatpush.bf16.msra.mxu0 %v4340
    %4917 = vmatpush.bf16.msra.mxu0 %v4332
    %4918 = vmatpush.bf16.msra.mxu0 %v4324
    %4919 = vmatpush.bf16.msra.mxu0 %v4316
    %4920 = vmatpush.bf16.msra.mxu0 %v4308
    %4921 = vmatpush.bf16.msra.mxu0 %v4300
    %4922 = vmatmul.bf16.gmra.mxu0 %v3060
    %v4923 = vpop.f32.mrf.mxu0
    %v4924 = vadd.f32 %v4911, %v4923
    %v4925 = vpop.f32.mrf.mxu0
    %4926 = vdwg.mxu0
    %4927 = vmatpush.bf16.msra.mxu0 %v4165
    %4928 = vmatpush.bf16.msra.mxu0 %v4157
    %4929 = vmatpush.bf16.msra.mxu0 %v4149
    %4930 = vmatpush.bf16.msra.mxu0 %v4141
    %4931 = vmatpush.bf16.msra.mxu0 %v4133
    %4932 = vmatpush.bf16.msra.mxu0 %v4125
    %4933 = vmatpush.bf16.msra.mxu0 %v4117
    %4934 = vmatpush.bf16.msra.mxu0 %v4109
    %4935 = vmatmul.bf16.gmra.mxu0 %v3057
    %v4936 = vpop.f32.mrf.mxu0
    %v4937 = vadd.f32 %v3325, %v4936
    %v4938 = vpop.f32.mrf.mxu0
    %4939 = vdwg.mxu0
    %4940 = vmatpush.bf16.msra.mxu0 %v4229
    %4941 = vmatpush.bf16.msra.mxu0 %v4221
    %4942 = vmatpush.bf16.msra.mxu0 %v4213
    %4943 = vmatpush.bf16.msra.mxu0 %v4205
    %4944 = vmatpush.bf16.msra.mxu0 %v4197
    %4945 = vmatpush.bf16.msra.mxu0 %v4189
    %4946 = vmatpush.bf16.msra.mxu0 %v4181
    %4947 = vmatpush.bf16.msra.mxu0 %v4173
    %4948 = vmatmul.bf16.gmra.mxu0 %v3058
    %v4949 = vpop.f32.mrf.mxu0
    %v4950 = vadd.f32 %v4937, %v4949
    %v4951 = vpop.f32.mrf.mxu0
    %4952 = vdwg.mxu0
    %4953 = vmatpush.bf16.msra.mxu0 %v4293
    %4954 = vmatpush.bf16.msra.mxu0 %v4285
    %4955 = vmatpush.bf16.msra.mxu0 %v4277
    %4956 = vmatpush.bf16.msra.mxu0 %v4269
    %4957 = vmatpush.bf16.msra.mxu0 %v4261
    %4958 = vmatpush.bf16.msra.mxu0 %v4253
    %4959 = vmatpush.bf16.msra.mxu0 %v4245
    %4960 = vmatpush.bf16.msra.mxu0 %v4237
    %4961 = vmatmul.bf16.gmra.mxu0 %v3059
    %v4962 = vpop.f32.mrf.mxu0
    %v4963 = vadd.f32 %v4950, %v4962
    %v4964 = vpop.f32.mrf.mxu0
    %4965 = vdwg.mxu0
    %4966 = vmatpush.bf16.msra.mxu0 %v4357
    %4967 = vmatpush.bf16.msra.mxu0 %v4349
    %4968 = vmatpush.bf16.msra.mxu0 %v4341
    %4969 = vmatpush.bf16.msra.mxu0 %v4333
    %4970 = vmatpush.bf16.msra.mxu0 %v4325
    %4971 = vmatpush.bf16.msra.mxu0 %v4317
    %4972 = vmatpush.bf16.msra.mxu0 %v4309
    %4973 = vmatpush.bf16.msra.mxu0 %v4301
    %4974 = vmatmul.bf16.gmra.mxu0 %v3060
    %v4975 = vpop.f32.mrf.mxu0
    %v4976 = vadd.f32 %v4963, %v4975
    %v4977 = vpop.f32.mrf.mxu0
    %4978 = vdwg.mxu0
    %4979 = vmatpush.bf16.msra.mxu0 %v4166
    %4980 = vmatpush.bf16.msra.mxu0 %v4158
    %4981 = vmatpush.bf16.msra.mxu0 %v4150
    %4982 = vmatpush.bf16.msra.mxu0 %v4142
    %4983 = vmatpush.bf16.msra.mxu0 %v4134
    %4984 = vmatpush.bf16.msra.mxu0 %v4126
    %4985 = vmatpush.bf16.msra.mxu0 %v4118
    %4986 = vmatpush.bf16.msra.mxu0 %v4110
    %4987 = vmatmul.bf16.gmra.mxu0 %v3057
    %v4988 = vpop.f32.mrf.mxu0
    %v4989 = vadd.f32 %v3326, %v4988
    %v4990 = vpop.f32.mrf.mxu0
    %4991 = vdwg.mxu0
    %4992 = vmatpush.bf16.msra.mxu0 %v4230
    %4993 = vmatpush.bf16.msra.mxu0 %v4222
    %4994 = vmatpush.bf16.msra.mxu0 %v4214
    %4995 = vmatpush.bf16.msra.mxu0 %v4206
    %4996 = vmatpush.bf16.msra.mxu0 %v4198
    %4997 = vmatpush.bf16.msra.mxu0 %v4190
    %4998 = vmatpush.bf16.msra.mxu0 %v4182
    %4999 = vmatpush.bf16.msra.mxu0 %v4174
    %5000 = vmatmul.bf16.gmra.mxu0 %v3058
    %v5001 = vpop.f32.mrf.mxu0
    %v5002 = vadd.f32 %v4989, %v5001
    %v5003 = vpop.f32.mrf.mxu0
    %5004 = vdwg.mxu0
    %5005 = vmatpush.bf16.msra.mxu0 %v4294
    %5006 = vmatpush.bf16.msra.mxu0 %v4286
    %5007 = vmatpush.bf16.msra.mxu0 %v4278
    %5008 = vmatpush.bf16.msra.mxu0 %v4270
    %5009 = vmatpush.bf16.msra.mxu0 %v4262
    %5010 = vmatpush.bf16.msra.mxu0 %v4254
    %5011 = vmatpush.bf16.msra.mxu0 %v4246
    %5012 = vmatpush.bf16.msra.mxu0 %v4238
    %5013 = vmatmul.bf16.gmra.mxu0 %v3059
    %v5014 = vpop.f32.mrf.mxu0
    %v5015 = vadd.f32 %v5002, %v5014
    %v5016 = vpop.f32.mrf.mxu0
    %5017 = vdwg.mxu0
    %5018 = vmatpush.bf16.msra.mxu0 %v4358
    %5019 = vmatpush.bf16.msra.mxu0 %v4350
    %5020 = vmatpush.bf16.msra.mxu0 %v4342
    %5021 = vmatpush.bf16.msra.mxu0 %v4334
    %5022 = vmatpush.bf16.msra.mxu0 %v4326
    %5023 = vmatpush.bf16.msra.mxu0 %v4318
    %5024 = vmatpush.bf16.msra.mxu0 %v4310
    %5025 = vmatpush.bf16.msra.mxu0 %v4302
    %5026 = vmatmul.bf16.gmra.mxu0 %v3060
    %v5027 = vpop.f32.mrf.mxu0
    %v5028 = vadd.f32 %v5015, %v5027
    %v5029 = vpop.f32.mrf.mxu0
    %5030 = vdwg.mxu0
    %5031 = vst [vmem:[%s10] sm:$0xff] %v4664
    %5032 = vst [vmem:[%s10 + $0x8] sm:$0xff] %v4716
    %5033 = vst [vmem:[%s10 + $0x10] sm:$0xff] %v4768
    %5034 = vst [vmem:[%s10 + $0x18] sm:$0xff] %v4820
    %5035 = vst [vmem:[%s10 + $0x20] sm:$0xff] %v4872
    %5036 = vst [vmem:[%s10 + $0x28] sm:$0xff] %v4924
    %5037 = vst [vmem:[%s10 + $0x30] sm:$0xff] %v4976
    %5038 = vst [vmem:[%s10 + $0x38] sm:$0xff] %v5028
    // Predicated region
    $region46: #{_vae_apply.1} parent=1 // pred_check
      _
    $region47: #{_vae_apply.1} parent=1 // pred_check_branch
      %5040 = sbr.rel (0) target = $region49
    $region48: #{_vae_apply.1} parent=1 // pred_region
      _
    $region49: #{_vae_apply.1} parent=1 // pred_fallthru
      _
    // Predicated region
    $region50: #{_vae_apply.1} parent=1 // pred_check
      _
    $region51: #{_vae_apply.1} parent=1 // pred_check_branch
      %5042 = sbr.rel (0) target = $region53
    $region52: #{_vae_apply.1} parent=1 // pred_region
      _
    $region53: #{_vae_apply.1} parent=1 // pred_fallthru
      _
    // Predicated region
    $region54: #{_vae_apply.1} parent=1 // pred_check
      _
    $region55: #{_vae_apply.1} parent=1 // pred_check_branch
      %5044 = sbr.rel (0) target = $region57
    $region56: #{_vae_apply.1} parent=1 // pred_region
      _
    $region57: #{_vae_apply.1} parent=1 // pred_fallthru
      _
    // Predicated region
    $region58: #{_vae_apply.1} parent=1 // pred_check
      _
    $region59: #{_vae_apply.1} parent=1 // pred_check_branch
      %5046 = sbr.rel (0) target = $region61
    $region60: #{_vae_apply.1} parent=1 // pred_region
      _
    $region61: #{_vae_apply.1} parent=1 // pred_fallthru
      _
    %5047 = vsyncpa [#allocation3], 1

</llo_original>
